<compile_context>
chip_gen: v6e
topology: v6e:2x2x1
jax: 0.10.0
libtpu: 0.0.40
codegen_flags: <defaults>
</compile_context>

<pallas_src>
import functools

import numpy as np

import jax
import jax.numpy as jnp
from jax import lax
from jax.experimental import pallas as pl
from jax.experimental.pallas import tpu as pltpu


def _round_up(a, b):
    return -(-a // b) * b


# --------------------------------------------------------------------------
# Pallas kernel: fused 3x3 conv (9 shifted matmuls) + bias + SiLU.
# --------------------------------------------------------------------------
def _repvgg_conv3x3_kernel(x_ref, w_ref, b_ref, o_ref, *, bh, wout, stride, cin):
    # x_ref: (Hp, Wp, Cin)   whole padded image, resident across the inner
    #                        grid axes (its block index depends only on b).
    # w_ref: (9, Cin, bc)    fused 3x3 weights, tap-major (ky*3+kx).
    # b_ref: (1, bc)         fused bias (f32).
    # o_ref: (bh*Wout, bc)   output row-block (lane dim = out channels).
    r = pl.program_id(2)
    row0 = r * (bh * stride)
    if (bh * stride) % 8 == 0:
        row0 = pl.multiple_of(row0, 8)

    bc = o_ref.shape[-1]
    acc = jnp.zeros((bh * wout, bc), jnp.float32)

    # 3x3 conv == 9 shifted (bh*Wout, Cin) @ (Cin, bc) matmuls on the MXU,
    # accumulated in f32.  Taps are plain VMEM slices of the resident image.
    for ky in range(3):
        for kx in range(3):
            if stride == 1:
                tap = x_ref[pl.ds(row0 + ky, bh), pl.ds(kx, wout), :]
            else:
                tap = x_ref[pl.ds(row0 + ky, bh, stride=stride),
                            pl.ds(kx, wout, stride=stride), :]
            tap2d = tap.reshape(bh * wout, cin)
            acc = acc + jnp.dot(tap2d, w_ref[ky * 3 + kx],
                                preferred_element_type=jnp.float32)

    acc = acc + b_ref[...].astype(jnp.float32)
    # SiLU: exp() goes to the EUP; keep the exact divide so results match the
    # f32 reference (pl.reciprocal(..., approx=True) would also use the EUP,
    # at ~1e-3 relative error -- flip only if the kernel becomes VALU-bound).
    sig = 1.0 / (1.0 + jnp.exp(-acc))
    o_ref[...] = (acc * sig).astype(o_ref.dtype)


# --------------------------------------------------------------------------
# Tiling heuristics.
# --------------------------------------------------------------------------
def _choose_bc(cout, cin, itemsize, budget=(12 << 20)):
    """Out-channel tile: keep the resident (9, Cin, bc) weight buffer small."""
    if 9 * cin * cout * itemsize <= budget:
        return cout
    cands = [c for c in range(128, cout, 128) if cout % c == 0]
    good = [c for c in cands if 9 * cin * c * itemsize <= budget]
    if good:
        return good[-1]
    return cands[0] if cands else cout


def _choose_bh(hout, wout, n_batch, n_cblocks, itemsize, max_rows=4096):
    """Output row-block height: big aligned M tiles, >=2 total grid steps."""
    align = 16 if itemsize < 4 else 8          # bf16 sublane packing is 16
    divs = [d for d in range(1, hout + 1) if hout % d == 0]
    feas = [d for d in divs if (d * wout) % align == 0 or d == hout]
    if not feas:
        feas = [hout]
    best = feas[0]
    for d in feas:                              # divisors ascending
        if d * wout <= max_rows:
            best = d
    # v7x has 2 TensorCores: make sure the (parallel) grid has >= 2 steps.
    if n_batch * n_cblocks * (hout // best) < 2:
        smaller = [d for d in feas if d < best and (hout // d) >= 2]
        if smaller:
            best = smaller[-1]
    return best


def _vmem_block_bytes(shape, dtype):
    s = list(shape)
    lead = int(np.prod(s[:-2])) if len(s) > 2 else 1
    return lead * _round_up(s[-2], 8) * _round_up(s[-1], 128) * np.dtype(dtype).itemsize


# --------------------------------------------------------------------------
# pallas_call wrapper.
# --------------------------------------------------------------------------
def _fused_conv_silu_pallas(x_pad_nhwc, w_taps, bias, *, stride, hout, wout, out_dtype):
    N, Hp, Wp, Cin = x_pad_nhwc.shape
    taps, Cin2, Cout = w_taps.shape
    assert taps == 9 and Cin2 == Cin
    itemsize = int(np.dtype(x_pad_nhwc.dtype).itemsize)

    bc = _choose_bc(Cout, Cin, itemsize)
    nc = Cout // bc
    bh = _choose_bh(hout, wout, N, nc, itemsize)
    nr = hout // bh

    b2 = bias.reshape(1, Cout).astype(jnp.float32)

    # Explicit scoped-VMEM budget: 2x (double-buffered) image/weight/bias/out
    # blocks + f32 accumulator, with layout padding to (8, 128) tiles.
    est = (2 * _vmem_block_bytes((Hp, Wp, Cin), x_pad_nhwc.dtype)
           + 2 * _vmem_block_bytes((9, Cin, bc), w_taps.dtype)
           + 2 * _vmem_block_bytes((1, bc), jnp.float32)
           + 2 * _vmem_block_bytes((bh * wout, bc), out_dtype)
           + _vmem_block_bytes((bh * wout, bc), jnp.float32))
    vmem_limit = int(min(max(2 * est + (8 << 20), 32 << 20), 48 << 20))

    cost = pl.CostEstimate(
        flops=2 * N * hout * wout * 9 * Cin * Cout,
        transcendentals=N * hout * wout * Cout,
        bytes_accessed=(x_pad_nhwc.size * itemsize + w_taps.size * itemsize
                        + b2.size * 4
                        + N * hout * wout * Cout * int(np.dtype(out_dtype).itemsize)),
    )

    kernel = functools.partial(_repvgg_conv3x3_kernel,
                               bh=bh, wout=wout, stride=stride, cin=Cin)

    out = pl.pallas_call(
        kernel,
        out_shape=jax.ShapeDtypeStruct((N, hout * wout, Cout), out_dtype),
        grid_spec=pltpu.PrefetchScalarGridSpec(
            num_scalar_prefetch=0,
            grid=(N, nc, nr),                       # b outer, row-blocks inner
            in_specs=[
                # Whole padded image; block index depends only on b, so it is
                # fetched once per image and reused across (c, r).
                pl.BlockSpec((None, Hp, Wp, Cin), lambda b, c, r: (b, 0, 0, 0)),
                pl.BlockSpec((9, Cin, bc), lambda b, c, r: (0, 0, c)),
                pl.BlockSpec((1, bc), lambda b, c, r: (0, c)),
            ],
            out_specs=pl.BlockSpec((None, bh * wout, bc), lambda b, c, r: (b, r, c)),
        ),
        compiler_params=pltpu.CompilerParams(
            dimension_semantics=("parallel", "parallel", "parallel"),
            vmem_limit_bytes=vmem_limit,
        ),
        cost_estimate=cost,
    )(x_pad_nhwc, w_taps, b2)
    return out


# --------------------------------------------------------------------------
# Pure-JAX glue: BN folding + branch fusion (mirrors get_equivalent_kernel_bias).
# --------------------------------------------------------------------------
def _fuse_conv_bn(kernel, gamma, beta, mean, var, eps):
    std = jnp.sqrt(var + eps)
    t = (gamma / std).reshape(-1, 1, 1, 1)
    return kernel * t, beta - mean * gamma / std


def get_equivalent_kernel_bias(p, in_channels, groups, has_identity, eps):
    k3, b3 = _fuse_conv_bn(p["dense_w"], p["dense_gamma"], p["dense_beta"],
                           p["dense_mean"], p["dense_var"], eps)
    k1, b1 = _fuse_conv_bn(p["one_w"], p["one_gamma"], p["one_beta"],
                           p["one_mean"], p["one_var"], eps)
    k1 = jnp.pad(k1, ((0, 0), (0, 0), (1, 1), (1, 1)))   # _pad_1x1_to_3x3_tensor
    if has_identity:
        input_dim = in_channels // groups
        id_np = np.zeros((in_channels, input_dim, 3, 3), dtype=np.float32)
        for i in range(in_channels):
            id_np[i, i % input_dim, 1, 1] = 1.0
        kid, bid = _fuse_conv_bn(jnp.asarray(id_np), p["id_gamma"], p["id_beta"],
                                 p["id_mean"], p["id_var"], eps)
    else:
        kid, bid = 0.0, 0.0
    return k3 + k1 + kid, b3 + b1 + bid


# --------------------------------------------------------------------------
# Forward passes (NHWC fast path + NCHW wrapper matching PyTorch layout).
# --------------------------------------------------------------------------
def repvgg_block_forward_nhwc(x_nhwc, params, *, stride=1, padding=1, groups=1,
                              has_identity=None, eps=1e-5):
    """x: (N, H, W, Cin) NHWC -> (N, Hout, Wout, Cout). No layout transposes."""
    # TODO(synk): grouped conv (groups > 1) and SEBlock (use_se=True) are not
    # implemented in the Pallas kernel; module defaults are groups=1, se=Identity.
    assert groups == 1, "grouped conv not implemented"
    N, H, W, Cin = x_nhwc.shape
    Cout = params["dense_w"].shape[0]

    identity_ok = (Cout == Cin and stride == 1)
    if has_identity is None:
        has_identity = identity_ok and ("id_gamma" in params)
    if has_identity and not identity_ok:
        raise ValueError("identity branch requires out_channels == in_channels "
                         "and stride == 1 (PyTorch only builds rbr_identity then)")

    w_eq, b_eq = get_equivalent_kernel_bias(params, Cin, groups, has_identity, eps)
    # (Cout, Cin, 3, 3) -> (ky, kx, Cin, Cout) -> (9, Cin, Cout): tap-major.
    w_taps = jnp.transpose(w_eq, (2, 3, 1, 0)).reshape(9, Cin, Cout).astype(x_nhwc.dtype)

    Hp, Wp = H + 2 * padding, W + 2 * padding
    Hout = (Hp - 3) // stride + 1
    Wout = (Wp - 3) // stride + 1
    x_pad = jnp.pad(x_nhwc, ((0, 0), (padding, padding), (padding, padding), (0, 0)))

    out = _fused_conv_silu_pallas(x_pad, w_taps, b_eq.astype(jnp.float32),
                                  stride=stride, hout=Hout, wout=Wout,
                                  out_dtype=x_nhwc.dtype)
    return out.reshape(N, Hout, Wout, Cout)


def repvgg_block_forward(x, params, *, stride=1, padding=1, groups=1,
                         has_identity=None, eps=1e-5):
    """x: (N, Cin, H, W) NCHW -> (N, Cout, Hout, Wout) (PyTorch layout)."""
    y = repvgg_block_forward_nhwc(jnp.transpose(x, (0, 2, 3, 1)), params,
                                  stride=stride, padding=padding, groups=groups,
                                  has_identity=has_identity, eps=eps)
    return jnp.transpose(y, (0, 3, 1, 2))


# --------------------------------------------------------------------------
# Pure-JAX reference: the three branches computed separately, then SiLU.
# --------------------------------------------------------------------------
def _conv2d_nchw(x, w, stride, padding):
    return lax.conv_general_dilated(
        x, w, window_strides=(stride, stride),
        padding=((padding, padding), (padding, padding)),
        dimension_numbers=("NCHW", "OIHW", "NCHW"))


def _bn_eval(x, gamma, beta, mean, var, eps):
    g = gamma.reshape(1, -1, 1, 1)
    b = beta.reshape(1, -1, 1, 1)
    m = mean.reshape(1, -1, 1, 1)
    v = var.reshape(1, -1, 1, 1)
    return (x - m) * g / jnp.sqrt(v + eps) + b


def repvgg_block_reference(x, p, *, stride=1, padding=1, has_identity=True, eps=1e-5):
    padding_11 = padding - 3 // 2
    dense = _bn_eval(_conv2d_nchw(x, p["dense_w"], stride, padding),
                     p["dense_gamma"], p["dense_beta"], p["dense_mean"],
                     p["dense_var"], eps)
    one = _bn_eval(_conv2d_nchw(x, p["one_w"], stride, padding_11),
                   p["one_gamma"], p["one_beta"], p["one_mean"],
                   p["one_var"], eps)
    ident = (_bn_eval(x, p["id_gamma"], p["id_beta"], p["id_mean"],
                      p["id_var"], eps) if has_identity else 0.0)
    y = dense + one + ident
    return y * jax.nn.sigmoid(y)     # SiLU


# --------------------------------------------------------------------------
if __name__ == "__main__":
    key = jax.random.PRNGKey(0)
    N, Cin, Cout, H, W = 2, 4, 4, 16, 16
    stride, padding, groups = 1, 1, 1
    eps = 1e-5
    has_identity = (Cin == Cout and stride == 1)

    ks = jax.random.split(key, 16)
    f32 = jnp.float32
    params = {
        # 3x3 conv + BN branch
        "dense_w": 0.1 * jax.random.normal(ks[0], (Cout, Cin, 3, 3), f32),
        "dense_gamma": 1.0 + 0.1 * jax.random.normal(ks[1], (Cout,), f32),
        "dense_beta": 0.1 * jax.random.normal(ks[2], (Cout,), f32),
        "dense_mean": 0.1 * jax.random.normal(ks[3], (Cout,), f32),
        "dense_var": jax.random.uniform(ks[4], (Cout,), f32, 0.5, 1.5),
        # 1x1 conv + BN branch
        "one_w": 0.1 * jax.random.normal(ks[5], (Cout, Cin, 1, 1), f32),
        "one_gamma": 1.0 + 0.1 * jax.random.normal(ks[6], (Cout,), f32),
        "one_beta": 0.1 * jax.random.normal(ks[7], (Cout,), f32),
        "one_mean": 0.1 * jax.random.normal(ks[8], (Cout,), f32),
        "one_var": jax.random.uniform(ks[9], (Cout,), f32, 0.5, 1.5),
        # identity BN branch
        "id_gamma": 1.0 + 0.1 * jax.random.normal(ks[10], (Cin,), f32),
        "id_beta": 0.1 * jax.random.normal(ks[11], (Cin,), f32),
        "id_mean": 0.1 * jax.random.normal(ks[12], (Cin,), f32),
        "id_var": jax.random.uniform(ks[13], (Cin,), f32, 0.5, 1.5),
    }

    x = jax.random.normal(ks[14], (N, Cin, H, W), f32)

    y = repvgg_block_forward(x, params, stride=stride, padding=padding,
                             groups=groups, has_identity=has_identity, eps=eps)
    y = jax.block_until_ready(y)

    ref = repvgg_block_reference(x, params, stride=stride, padding=padding,
                                 has_identity=has_identity, eps=eps)
    ref = jax.block_until_ready(ref)

    assert y.shape == ref.shape and y.dtype == x.dtype
    assert jnp.allclose(y, ref, atol=1e-4, rtol=1e-4), (
        float(jnp.max(jnp.abs(y - ref))))

    print("KERNEL_OK")
</pallas_src>

<mosaic_0001>
module attributes {stable_mosaic.version = 11 : i64} {
  func.func @_repvgg_conv3x3_kernel(%arg0: i32, %arg1: i32, %arg2: i32, %arg3: memref<1x18x18x4xf32, #tpu.memory_space<vmem>>, %arg4: memref<9x4x4xf32, #tpu.memory_space<vmem>>, %arg5: memref<1x4xf32, #tpu.memory_space<vmem>>, %arg6: memref<1x256x4xf32, #tpu.memory_space<vmem>>) attributes {dimension_semantics = [#tpu.dimension_semantics<parallel>, #tpu.dimension_semantics<parallel>, #tpu.dimension_semantics<parallel>], iteration_bounds = array<i64: 2, 1, 1>, scalar_prefetch = 0 : i64, scratch_operands = 0 : i64, tpu.core_type = #tpu.core_type<tc>, window_params = [{transform_indices = @transform_0, window_bounds = array<i64: 1, 18, 18, 4>}, {transform_indices = @transform_1, window_bounds = array<i64: 9, 4, 4>}, {transform_indices = @transform_2, window_bounds = array<i64: 1, 4>}, {transform_indices = @transform_3, window_bounds = array<i64: 1, 256, 4>}]} {
    %c16_i32 = arith.constant 16 : i32
    %0 = arith.muli %arg2, %c16_i32 : i32
    %1 = tpu.assume_multiple %0, 8 : i32
    %cst = arith.constant 0.000000e+00 : f32
    %2 = vector.broadcast %cst : f32 to vector<256x4xf32>
    %c0_i32 = arith.constant 0 : i32
    %3 = arith.addi %1, %c0_i32 : i32
    %c0 = arith.constant 0 : index
    %4 = arith.index_cast %3 : i32 to index
    %c0_0 = arith.constant 0 : index
    %c0_1 = arith.constant 0 : index
    %5 = vector.load %arg3[%c0, %4, %c0_0, %c0_1] : memref<1x18x18x4xf32, #tpu.memory_space<vmem>>, vector<1x16x16x4xf32>
    %6 = vector.shape_cast %5 : vector<1x16x16x4xf32> to vector<16x16x4xf32>
    %7 = vector.shape_cast %6 : vector<16x16x4xf32> to vector<256x4xf32>
    %c0_2 = arith.constant 0 : index
    %c0_3 = arith.constant 0 : index
    %c0_4 = arith.constant 0 : index
    %8 = vector.load %arg4[%c0_2, %c0_3, %c0_4] : memref<9x4x4xf32, #tpu.memory_space<vmem>>, vector<1x4x4xf32>
    %9 = vector.shape_cast %8 : vector<1x4x4xf32> to vector<4x4xf32>
    %cst_5 = arith.constant dense<0.000000e+00> : vector<256x4xf32>
    %10 = tpu.matmul %7, %9, %cst_5 {dimension_numbers = #tpu.dot_dimension_numbers<[1], [0], [0], [1], [0, 0, 1, 1], [], []>} : vector<256x4xf32>, vector<4x4xf32>, vector<256x4xf32> -> vector<256x4xf32>
    %11 = arith.addf %2, %10 : vector<256x4xf32>
    %c0_i32_6 = arith.constant 0 : i32
    %12 = arith.addi %1, %c0_i32_6 : i32
    %c0_7 = arith.constant 0 : index
    %13 = arith.index_cast %12 : i32 to index
    %c1 = arith.constant 1 : index
    %c0_8 = arith.constant 0 : index
    %14 = vector.load %arg3[%c0_7, %13, %c1, %c0_8] : memref<1x18x18x4xf32, #tpu.memory_space<vmem>>, vector<1x16x16x4xf32>
    %15 = vector.shape_cast %14 : vector<1x16x16x4xf32> to vector<16x16x4xf32>
    %16 = vector.shape_cast %15 : vector<16x16x4xf32> to vector<256x4xf32>
    %c1_9 = arith.constant 1 : index
    %c0_10 = arith.constant 0 : index
    %c0_11 = arith.constant 0 : index
    %17 = vector.load %arg4[%c1_9, %c0_10, %c0_11] : memref<9x4x4xf32, #tpu.memory_space<vmem>>, vector<1x4x4xf32>
    %18 = vector.shape_cast %17 : vector<1x4x4xf32> to vector<4x4xf32>
    %cst_12 = arith.constant dense<0.000000e+00> : vector<256x4xf32>
    %19 = tpu.matmul %16, %18, %cst_12 {dimension_numbers = #tpu.dot_dimension_numbers<[1], [0], [0], [1], [0, 0, 1, 1], [], []>} : vector<256x4xf32>, vector<4x4xf32>, vector<256x4xf32> -> vector<256x4xf32>
    %20 = arith.addf %11, %19 : vector<256x4xf32>
    %c0_i32_13 = arith.constant 0 : i32
    %21 = arith.addi %1, %c0_i32_13 : i32
    %c0_14 = arith.constant 0 : index
    %22 = arith.index_cast %21 : i32 to index
    %c2 = arith.constant 2 : index
    %c0_15 = arith.constant 0 : index
    %23 = vector.load %arg3[%c0_14, %22, %c2, %c0_15] : memref<1x18x18x4xf32, #tpu.memory_space<vmem>>, vector<1x16x16x4xf32>
    %24 = vector.shape_cast %23 : vector<1x16x16x4xf32> to vector<16x16x4xf32>
    %25 = vector.shape_cast %24 : vector<16x16x4xf32> to vector<256x4xf32>
    %c2_16 = arith.constant 2 : index
    %c0_17 = arith.constant 0 : index
    %c0_18 = arith.constant 0 : index
    %26 = vector.load %arg4[%c2_16, %c0_17, %c0_18] : memref<9x4x4xf32, #tpu.memory_space<vmem>>, vector<1x4x4xf32>
    %27 = vector.shape_cast %26 : vector<1x4x4xf32> to vector<4x4xf32>
    %cst_19 = arith.constant dense<0.000000e+00> : vector<256x4xf32>
    %28 = tpu.matmul %25, %27, %cst_19 {dimension_numbers = #tpu.dot_dimension_numbers<[1], [0], [0], [1], [0, 0, 1, 1], [], []>} : vector<256x4xf32>, vector<4x4xf32>, vector<256x4xf32> -> vector<256x4xf32>
    %29 = arith.addf %20, %28 : vector<256x4xf32>
    %c1_i32 = arith.constant 1 : i32
    %30 = arith.addi %1, %c1_i32 : i32
    %c0_20 = arith.constant 0 : index
    %31 = arith.index_cast %30 : i32 to index
    %c0_21 = arith.constant 0 : index
    %c0_22 = arith.constant 0 : index
    %32 = vector.load %arg3[%c0_20, %31, %c0_21, %c0_22] : memref<1x18x18x4xf32, #tpu.memory_space<vmem>>, vector<1x16x16x4xf32>
    %33 = vector.shape_cast %32 : vector<1x16x16x4xf32> to vector<16x16x4xf32>
    %34 = vector.shape_cast %33 : vector<16x16x4xf32> to vector<256x4xf32>
    %c3 = arith.constant 3 : index
    %c0_23 = arith.constant 0 : index
    %c0_24 = arith.constant 0 : index
    %35 = vector.load %arg4[%c3, %c0_23, %c0_24] : memref<9x4x4xf32, #tpu.memory_space<vmem>>, vector<1x4x4xf32>
    %36 = vector.shape_cast %35 : vector<1x4x4xf32> to vector<4x4xf32>
    %cst_25 = arith.constant dense<0.000000e+00> : vector<256x4xf32>
    %37 = tpu.matmul %34, %36, %cst_25 {dimension_numbers = #tpu.dot_dimension_numbers<[1], [0], [0], [1], [0, 0, 1, 1], [], []>} : vector<256x4xf32>, vector<4x4xf32>, vector<256x4xf32> -> vector<256x4xf32>
    %38 = arith.addf %29, %37 : vector<256x4xf32>
    %c1_i32_26 = arith.constant 1 : i32
    %39 = arith.addi %1, %c1_i32_26 : i32
    %c0_27 = arith.constant 0 : index
    %40 = arith.index_cast %39 : i32 to index
    %c1_28 = arith.constant 1 : index
    %c0_29 = arith.constant 0 : index
    %41 = vector.load %arg3[%c0_27, %40, %c1_28, %c0_29] : memref<1x18x18x4xf32, #tpu.memory_space<vmem>>, vector<1x16x16x4xf32>
    %42 = vector.shape_cast %41 : vector<1x16x16x4xf32> to vector<16x16x4xf32>
    %43 = vector.shape_cast %42 : vector<16x16x4xf32> to vector<256x4xf32>
    %c4 = arith.constant 4 : index
    %c0_30 = arith.constant 0 : index
    %c0_31 = arith.constant 0 : index
    %44 = vector.load %arg4[%c4, %c0_30, %c0_31] : memref<9x4x4xf32, #tpu.memory_space<vmem>>, vector<1x4x4xf32>
    %45 = vector.shape_cast %44 : vector<1x4x4xf32> to vector<4x4xf32>
    %cst_32 = arith.constant dense<0.000000e+00> : vector<256x4xf32>
    %46 = tpu.matmul %43, %45, %cst_32 {dimension_numbers = #tpu.dot_dimension_numbers<[1], [0], [0], [1], [0, 0, 1, 1], [], []>} : vector<256x4xf32>, vector<4x4xf32>, vector<256x4xf32> -> vector<256x4xf32>
    %47 = arith.addf %38, %46 : vector<256x4xf32>
    %c1_i32_33 = arith.constant 1 : i32
    %48 = arith.addi %1, %c1_i32_33 : i32
    %c0_34 = arith.constant 0 : index
    %49 = arith.index_cast %48 : i32 to index
    %c2_35 = arith.constant 2 : index
    %c0_36 = arith.constant 0 : index
    %50 = vector.load %arg3[%c0_34, %49, %c2_35, %c0_36] : memref<1x18x18x4xf32, #tpu.memory_space<vmem>>, vector<1x16x16x4xf32>
    %51 = vector.shape_cast %50 : vector<1x16x16x4xf32> to vector<16x16x4xf32>
    %52 = vector.shape_cast %51 : vector<16x16x4xf32> to vector<256x4xf32>
    %c5 = arith.constant 5 : index
    %c0_37 = arith.constant 0 : index
    %c0_38 = arith.constant 0 : index
    %53 = vector.load %arg4[%c5, %c0_37, %c0_38] : memref<9x4x4xf32, #tpu.memory_space<vmem>>, vector<1x4x4xf32>
    %54 = vector.shape_cast %53 : vector<1x4x4xf32> to vector<4x4xf32>
    %cst_39 = arith.constant dense<0.000000e+00> : vector<256x4xf32>
    %55 = tpu.matmul %52, %54, %cst_39 {dimension_numbers = #tpu.dot_dimension_numbers<[1], [0], [0], [1], [0, 0, 1, 1], [], []>} : vector<256x4xf32>, vector<4x4xf32>, vector<256x4xf32> -> vector<256x4xf32>
    %56 = arith.addf %47, %55 : vector<256x4xf32>
    %c2_i32 = arith.constant 2 : i32
    %57 = arith.addi %1, %c2_i32 : i32
    %c0_40 = arith.constant 0 : index
    %58 = arith.index_cast %57 : i32 to index
    %c0_41 = arith.constant 0 : index
    %c0_42 = arith.constant 0 : index
    %59 = vector.load %arg3[%c0_40, %58, %c0_41, %c0_42] : memref<1x18x18x4xf32, #tpu.memory_space<vmem>>, vector<1x16x16x4xf32>
    %60 = vector.shape_cast %59 : vector<1x16x16x4xf32> to vector<16x16x4xf32>
    %61 = vector.shape_cast %60 : vector<16x16x4xf32> to vector<256x4xf32>
    %c6 = arith.constant 6 : index
    %c0_43 = arith.constant 0 : index
    %c0_44 = arith.constant 0 : index
    %62 = vector.load %arg4[%c6, %c0_43, %c0_44] : memref<9x4x4xf32, #tpu.memory_space<vmem>>, vector<1x4x4xf32>
    %63 = vector.shape_cast %62 : vector<1x4x4xf32> to vector<4x4xf32>
    %cst_45 = arith.constant dense<0.000000e+00> : vector<256x4xf32>
    %64 = tpu.matmul %61, %63, %cst_45 {dimension_numbers = #tpu.dot_dimension_numbers<[1], [0], [0], [1], [0, 0, 1, 1], [], []>} : vector<256x4xf32>, vector<4x4xf32>, vector<256x4xf32> -> vector<256x4xf32>
    %65 = arith.addf %56, %64 : vector<256x4xf32>
    %c2_i32_46 = arith.constant 2 : i32
    %66 = arith.addi %1, %c2_i32_46 : i32
    %c0_47 = arith.constant 0 : index
    %67 = arith.index_cast %66 : i32 to index
    %c1_48 = arith.constant 1 : index
    %c0_49 = arith.constant 0 : index
    %68 = vector.load %arg3[%c0_47, %67, %c1_48, %c0_49] : memref<1x18x18x4xf32, #tpu.memory_space<vmem>>, vector<1x16x16x4xf32>
    %69 = vector.shape_cast %68 : vector<1x16x16x4xf32> to vector<16x16x4xf32>
    %70 = vector.shape_cast %69 : vector<16x16x4xf32> to vector<256x4xf32>
    %c7 = arith.constant 7 : index
    %c0_50 = arith.constant 0 : index
    %c0_51 = arith.constant 0 : index
    %71 = vector.load %arg4[%c7, %c0_50, %c0_51] : memref<9x4x4xf32, #tpu.memory_space<vmem>>, vector<1x4x4xf32>
    %72 = vector.shape_cast %71 : vector<1x4x4xf32> to vector<4x4xf32>
    %cst_52 = arith.constant dense<0.000000e+00> : vector<256x4xf32>
    %73 = tpu.matmul %70, %72, %cst_52 {dimension_numbers = #tpu.dot_dimension_numbers<[1], [0], [0], [1], [0, 0, 1, 1], [], []>} : vector<256x4xf32>, vector<4x4xf32>, vector<256x4xf32> -> vector<256x4xf32>
    %74 = arith.addf %65, %73 : vector<256x4xf32>
    %c2_i32_53 = arith.constant 2 : i32
    %75 = arith.addi %1, %c2_i32_53 : i32
    %c0_54 = arith.constant 0 : index
    %76 = arith.index_cast %75 : i32 to index
    %c2_55 = arith.constant 2 : index
    %c0_56 = arith.constant 0 : index
    %77 = vector.load %arg3[%c0_54, %76, %c2_55, %c0_56] : memref<1x18x18x4xf32, #tpu.memory_space<vmem>>, vector<1x16x16x4xf32>
    %78 = vector.shape_cast %77 : vector<1x16x16x4xf32> to vector<16x16x4xf32>
    %79 = vector.shape_cast %78 : vector<16x16x4xf32> to vector<256x4xf32>
    %c8 = arith.constant 8 : index
    %c0_57 = arith.constant 0 : index
    %c0_58 = arith.constant 0 : index
    %80 = vector.load %arg4[%c8, %c0_57, %c0_58] : memref<9x4x4xf32, #tpu.memory_space<vmem>>, vector<1x4x4xf32>
    %81 = vector.shape_cast %80 : vector<1x4x4xf32> to vector<4x4xf32>
    %cst_59 = arith.constant dense<0.000000e+00> : vector<256x4xf32>
    %82 = tpu.matmul %79, %81, %cst_59 {dimension_numbers = #tpu.dot_dimension_numbers<[1], [0], [0], [1], [0, 0, 1, 1], [], []>} : vector<256x4xf32>, vector<4x4xf32>, vector<256x4xf32> -> vector<256x4xf32>
    %83 = arith.addf %74, %82 : vector<256x4xf32>
    %c0_60 = arith.constant 0 : index
    %c0_61 = arith.constant 0 : index
    %84 = vector.load %arg5[%c0_60, %c0_61] : memref<1x4xf32, #tpu.memory_space<vmem>>, vector<1x4xf32>
    %85 = vector.broadcast %84 : vector<1x4xf32> to vector<256x4xf32>
    %86 = arith.addf %83, %85 : vector<256x4xf32>
    %cst_62 = arith.constant 0.000000e+00 : f32
    %87 = vector.broadcast %cst_62 : f32 to vector<256x4xf32>
    %88 = arith.subf %87, %86 : vector<256x4xf32>
    %89 = math.exp %88 : vector<256x4xf32>
    %cst_63 = arith.constant 1.000000e+00 : f32
    %90 = vector.broadcast %cst_63 : f32 to vector<256x4xf32>
    %91 = arith.addf %90, %89 : vector<256x4xf32>
    %cst_64 = arith.constant 1.000000e+00 : f32
    %92 = vector.broadcast %cst_64 : f32 to vector<256x4xf32>
    %93 = arith.divf %92, %91 : vector<256x4xf32>
    %94 = arith.mulf %86, %93 : vector<256x4xf32>
    %c0_65 = arith.constant 0 : index
    %c0_66 = arith.constant 0 : index
    %c0_67 = arith.constant 0 : index
    %95 = vector.load %arg6[%c0_65, %c0_66, %c0_67] : memref<1x256x4xf32, #tpu.memory_space<vmem>>, vector<1x256x4xf32>
    %96 = vector.shape_cast %95 : vector<1x256x4xf32> to vector<256x4xf32>
    %97 = vector.shape_cast %94 : vector<256x4xf32> to vector<1x256x4xf32>
    tpu.vector_store %arg6[%c0_65, %c0_66, %c0_67], %97 {strides = array<i32>} : memref<1x256x4xf32, #tpu.memory_space<vmem>>, vector<1x256x4xf32>,
    return
  }
  func.func @transform_0(%arg0: i32, %arg1: i32, %arg2: i32) -> (i32, i32, i32, i32) {
    %c0_i32 = arith.constant 0 : i32
    %c0_i32_0 = arith.constant 0 : i32
    %c0_i32_1 = arith.constant 0 : i32
    %c0_i32_2 = arith.constant 0 : i32
    return %arg0, %c0_i32, %c0_i32_0, %c0_i32_1 : i32, i32, i32, i32
  }
  func.func @transform_1(%arg0: i32, %arg1: i32, %arg2: i32) -> (i32, i32, i32) {
    %c0_i32 = arith.constant 0 : i32
    %c0_i32_0 = arith.constant 0 : i32
    %c0_i32_1 = arith.constant 0 : i32
    return %c0_i32, %c0_i32_0, %arg1 : i32, i32, i32
  }
  func.func @transform_2(%arg0: i32, %arg1: i32, %arg2: i32) -> (i32, i32) {
    %c0_i32 = arith.constant 0 : i32
    %c0_i32_0 = arith.constant 0 : i32
    return %c0_i32, %arg1 : i32, i32
  }
  func.func @transform_3(%arg0: i32, %arg1: i32, %arg2: i32) -> (i32, i32, i32) {
    %c0_i32 = arith.constant 0 : i32
    return %arg0, %arg2, %arg1 : i32, i32, i32
  }
}

</mosaic_0001>

<llo_original>
// kernel: tpu_custom_call.1
$region0: #{tpu_custom_call.1}
  #allocation0 [shape = 'u32[]', space=smem, size = 0x4, offset = 0x4, fixed_abs, tag = 'smem constant byte address 0x4 - core index']
  #allocation1 [shape = 'u32[144,128]{1,0:T(1,128)}', space=vmem, size = 0x12000, scoped, tag = 'internal scratch']
  %s0 = inlined_call_operand.vmem [shape: f32[2,18,18,4], index: 0, kind: input, shape index: {}]
  %s1 = inlined_call_operand.vmem [shape: f32[9,4,4], index: 1, kind: input, shape index: {}]
  %s2 = inlined_call_operand.vmem [shape: f32[1,4], index: 2, kind: input, shape index: {}]
  %s3 = inlined_call_operand.vmem [shape: f32[2,256,4], index: 3, kind: output, shape index: {}]
  %s4 = sld [smem:[#allocation0]]
  $region45: #{tpu_custom_call.1} parent=0
    _
  %s6 = ssub.s32 1, %s4
  %s7 = scalar_select 0, %s6, %s4
  loop: start=0, step=1, limit=4
  $region2: #{tpu_custom_call.1} parent=0 // loop_pre_header
    _
  $region3: #{tpu_custom_call.1} parent=0 // loop_header
    %s9 = sphi 0, %s13
    %p10 = scmp.ge.s32.totalorder %s9, 4
    %s16 = sphi 0, %s35
    %s17 = sphi 0, %s31
    %s18 = sphi 0, %s27
    %s19 = sphi 0, %s16
    %s20 = sphi 0, %s17
    %s21 = sphi 0, %s18
    %s22 = sphi 0, %s19
    %s23 = sphi 0, %s20
    %s24 = sphi 0, %s21
    %s38 = sphi 0, %s40
    %s41 = sphi 0, %s38
    %s42 = sphi 0, %s41
    %s58 = sphi 0, %s42
    %s64 = sphi 0, %s66
    %s67 = sphi 0, %s64
    %s68 = sphi 0, %s67
    %s84 = sphi 0, %s68
    %s90 = sphi 0, %s92
    %s93 = sphi 0, %s90
    %s94 = sphi 0, %s93
    %s110 = sphi 0, %s94
    %s120 = sphi 0, %s122
    %s123 = sphi 0, %s120
    %s124 = sphi 0, %s123
    %s140 = sphi 0, %s124
  $region4: #{tpu_custom_call.1} parent=0 // loop_header_branch
    %12 = sbr.rel (%p10) target = $region8
  $region5: #{tpu_custom_call.1} parent=0 // loop_body
    %s14 = ssub.s32 %s9, 1
    %s15 = ssub.s32 %s9, 2
    %s25 = sadd.s32 1, %s18
    %p26 = scmp.ge.s32.totalorder %s25, 1
    %s27 = scalar_select %p26, 0, %s25
    %s28 = sadd.s32 1, %s17
    %s29 = scalar_select %p26, %s28, %s17
    %p30 = scmp.ge.s32.totalorder %s29, 1
    %s31 = scalar_select %p30, 0, %s29
    %s32 = sadd.s32 1, %s16
    %s33 = scalar_select %p30, %s32, %s16
    %p34 = scmp.ge.s32.totalorder %s33, 2
    %s35 = scalar_select %p34, 0, %s33
    %s36 = ssub.s32 %s16, %s35
    %p37 = scmp.eq.s32.totalorder %s36, 0
    %s39 = sadd.s32 %s38, 1
    %s40 = scalar_select %p37, %s38, %s39
    %p43 = pneg %p37
    %p44 = scmp.eq.s32.totalorder %s9, 1
    %p45 = por %p43, %p44
    %p46 = scmp.ne.s32.totalorder %s38, %s41
    %p47 = scmp.eq.s32.totalorder %s9, 0
    %p48 = por %p46, %p47
    %p49 = scmp.ne.s32.totalorder %s38, %s41
    %p50 = scmp.eq.s32.totalorder %s14, 1
    %p51 = por %p49, %p50
    %p52 = scmp.ne.s32.totalorder %s41, %s42
    %p53 = scmp.eq.s32.totalorder %s14, 0
    %p54 = por %p52, %p53
    %p55 = scmp.ne.s32.totalorder %s41, %s42
    %p56 = scmp.eq.s32.totalorder %s15, 1
    %p57 = por %p55, %p56
    %p59 = scmp.ne.s32.totalorder %s42, %s58
    %p60 = scmp.eq.s32.totalorder %s15, 0
    %p61 = por %p59, %p60
    %s62 = ssub.s32 %s17, %s31
    %p63 = scmp.eq.s32.totalorder %s62, 0
    %s65 = sadd.s32 %s64, 1
    %s66 = scalar_select %p63, %s64, %s65
    %p69 = pneg %p63
    %p70 = scmp.eq.s32.totalorder %s9, 1
    %p71 = por %p69, %p70
    %p72 = scmp.ne.s32.totalorder %s64, %s67
    %p73 = scmp.eq.s32.totalorder %s9, 0
    %p74 = por %p72, %p73
    %p75 = scmp.ne.s32.totalorder %s64, %s67
    %p76 = scmp.eq.s32.totalorder %s14, 1
    %p77 = por %p75, %p76
    %p78 = scmp.ne.s32.totalorder %s67, %s68
    %p79 = scmp.eq.s32.totalorder %s14, 0
    %p80 = por %p78, %p79
    %p81 = scmp.ne.s32.totalorder %s67, %s68
    %p82 = scmp.eq.s32.totalorder %s15, 1
    %p83 = por %p81, %p82
    %p85 = scmp.ne.s32.totalorder %s68, %s84
    %p86 = scmp.eq.s32.totalorder %s15, 0
    %p87 = por %p85, %p86
    %s88 = ssub.s32 %s17, %s31
    %p89 = scmp.eq.s32.totalorder %s88, 0
    %s91 = sadd.s32 %s90, 1
    %s92 = scalar_select %p89, %s90, %s91
    %p95 = pneg %p89
    %p96 = scmp.eq.s32.totalorder %s9, 1
    %p97 = por %p95, %p96
    %p98 = scmp.ne.s32.totalorder %s90, %s93
    %p99 = scmp.eq.s32.totalorder %s9, 0
    %p100 = por %p98, %p99
    %p101 = scmp.ne.s32.totalorder %s90, %s93
    %p102 = scmp.eq.s32.totalorder %s14, 1
    %p103 = por %p101, %p102
    %p104 = scmp.ne.s32.totalorder %s93, %s94
    %p105 = scmp.eq.s32.totalorder %s14, 0
    %p106 = por %p104, %p105
    %p107 = scmp.ne.s32.totalorder %s93, %s94
    %p108 = scmp.eq.s32.totalorder %s15, 1
    %p109 = por %p107, %p108
    %p111 = scmp.ne.s32.totalorder %s94, %s110
    %p112 = scmp.eq.s32.totalorder %s15, 0
    %p113 = por %p111, %p112
    %s114 = ssub.s32 %s16, %s35
    %s115 = ssub.s32 %s18, %s27
    %s116 = sor.u32 %s114, %s115
    %s117 = ssub.s32 %s17, %s31
    %s118 = sor.u32 %s116, %s117
    %p119 = scmp.eq.s32.totalorder %s118, 0
    %s121 = sadd.s32 %s120, 1
    %s122 = scalar_select %p119, %s120, %s121
    %p125 = pneg %p119
    %p126 = scmp.eq.s32.totalorder %s9, 1
    %p127 = por %p125, %p126
    %p128 = scmp.ne.s32.totalorder %s120, %s123
    %p129 = scmp.eq.s32.totalorder %s9, 0
    %p130 = por %p128, %p129
    %p131 = scmp.ne.s32.totalorder %s120, %s123
    %p132 = scmp.eq.s32.totalorder %s14, 1
    %p133 = por %p131, %p132
    %p134 = scmp.ne.s32.totalorder %s123, %s124
    %p135 = scmp.eq.s32.totalorder %s14, 0
    %p136 = por %p134, %p135
    %p137 = scmp.ne.s32.totalorder %s123, %s124
    %p138 = scmp.eq.s32.totalorder %s15, 1
    %p139 = por %p137, %p138
    %p141 = scmp.ne.s32.totalorder %s124, %s140
    %p142 = scmp.eq.s32.totalorder %s15, 0
    %p143 = por %p141, %p142
    %p144 = scmp.le.s32.totalorder 1, %s9
    %p145 = scmp.lt.s32.totalorder %s9, 3
    %p146 = pnand %p144, %p145
    %p147 = pneg %p146
    // Predicated region
    $region9: #{tpu_custom_call.1} parent=5 // pred_check
      _
    $region10: #{tpu_custom_call.1} parent=5 // pred_check_branch
      %149 = sbr.rel (%p146) target = $region12
    $region11: #{tpu_custom_call.1} parent=5 // pred_region
      %s150 = ssub.s32 %s9, 1
      // Predicated region
      $region13: #{tpu_custom_call.1} parent=11 // pred_check
        %p151 = pneg %p80
      $region14: #{tpu_custom_call.1} parent=11 // pred_check_branch
        %153 = sbr.rel (%p151) target = $region16
      $region15: #{tpu_custom_call.1} parent=11 // pred_region
        %p154 = scmp.lt.s32.totalorder %s20, 0
        %s155 = scalar_select %p154, %s20, 0
        %s156 = smul.addr %s155, 4
        %s157 = scalar_lea.vmem %s1, %s156
      $region16: #{tpu_custom_call.1} parent=11 // pred_fallthru
        _
      // Predicated region
      $region17: #{tpu_custom_call.1} parent=11 // pred_check
        %p158 = pneg %p106
      $region18: #{tpu_custom_call.1} parent=11 // pred_check_branch
        %160 = sbr.rel (%p158) target = $region20
      $region19: #{tpu_custom_call.1} parent=11 // pred_region
        %p161 = scmp.lt.s32.totalorder %s20, 0
        %s162 = scalar_select %p161, %s20, 0
        %s163 = scalar_lea.vmem %s2, %s162
      $region20: #{tpu_custom_call.1} parent=11 // pred_fallthru
        _
    $region12: #{tpu_custom_call.1} parent=5 // pred_fallthru
      _
    %p164 = scmp.lt.s32.totalorder %s9, 2
    // Predicated region
    $region21: #{tpu_custom_call.1} parent=5 // pred_check
      %p165 = pneg %p164
    $region22: #{tpu_custom_call.1} parent=5 // pred_check_branch
      %167 = sbr.rel (%p165) target = $region24
    $region23: #{tpu_custom_call.1} parent=5 // pred_region
      // Predicated region
      $region25: #{tpu_custom_call.1} parent=23 // pred_check
        %p168 = pneg %p48
      $region26: #{tpu_custom_call.1} parent=23 // pred_check_branch
        %170 = sbr.rel (%p168) target = $region28
      $region27: #{tpu_custom_call.1} parent=23 // pred_region
        %p171 = scmp.lt.s32.totalorder %s16, 1
        %s172 = scalar_select %p171, %s16, 1
        %s173 = smul.addr %s172, 54
        %s174 = smul.addr %s173, 8
        %s175 = scalar_lea.vmem %s0, %s174
      $region28: #{tpu_custom_call.1} parent=23 // pred_fallthru
        _
    $region24: #{tpu_custom_call.1} parent=5 // pred_fallthru
      _
    %p176 = scmp.le.s32.totalorder 1, %s9
    %p177 = scmp.lt.s32.totalorder %s9, 3
    %p178 = pnand %p176, %p177
    %p179 = pneg %p178
    // Predicated region
    $region29: #{tpu_custom_call.1} parent=5 // pred_check
      _
    $region30: #{tpu_custom_call.1} parent=5 // pred_check_branch
      %181 = sbr.rel (%p178) target = $region32
    $region31: #{tpu_custom_call.1} parent=5 // pred_region
      %s182 = ssub.s32 %s9, 1
      %p183 = scmp.lt.s32.totalorder %s19, 1
      %s184 = scalar_select %p183, %s19, 1
      %s185 = smul.addr %s184, 54
      %s186 = smul.addr %s185, 8
      %s187 = scalar_lea.vmem %s0, %s186
      %p188 = pneg %p54
      %p189 = pneg %p51
      %p190 = scmp.lt.s32.totalorder %s20, 0
      %s191 = scalar_select %p190, %s20, 0
      %s192 = smul.addr %s191, 4
      %s193 = scalar_lea.vmem %s1, %s192
      %p194 = pneg %p80
      %p195 = pneg %p77
      %p196 = scmp.lt.s32.totalorder %s20, 0
      %s197 = scalar_select %p196, %s20, 0
      %s198 = scalar_lea.vmem %s2, %s197
      %p199 = pneg %p106
      %p200 = pneg %p103
      %p201 = pneg %p136
      %p202 = pneg %p133
      %s203 = smul.u32 32, %s21
      %p204 = scmp.lt.s32.totalorder %s19, 1
      %s205 = scalar_select %p204, %s19, 1
      %p206 = scmp.lt.s32.totalorder %s203, 31
      %s207 = scalar_select %p206, %s203, 31
      %p208 = scmp.lt.s32.totalorder %s20, 0
      %s209 = scalar_select %p208, %s20, 0
      %s210 = sadd.s32 %s209, %s207
      %s211 = smul.addr %s205, 32
      %s212 = sadd.s32 %s210, %s211
      %s213 = smul.addr %s212, 8
      %s214 = scalar_lea.vmem %s3, %s213
      %p215 = scmp.lt.s32.totalorder %s19, 1
      %s216 = scalar_select %p215, %s19, 1
      %s217 = smul.addr %s216, 54
      %s218 = smul.addr %s217, 8
      %s219 = scalar_lea.vmem %s0, %s218
      %p220 = scmp.lt.s32.totalorder %s20, 0
      %s221 = scalar_select %p220, %s20, 0
      %s222 = smul.addr %s221, 4
      %s223 = scalar_lea.vmem %s1, %s222
      %p224 = scmp.lt.s32.totalorder %s20, 0
      %s225 = scalar_select %p224, %s20, 0
      %s226 = scalar_lea.vmem %s2, %s225
      %s227 = smul.u32 32, %s21
      %p228 = scmp.lt.s32.totalorder %s19, 1
      %s229 = scalar_select %p228, %s19, 1
      %p230 = scmp.lt.s32.totalorder %s227, 31
      %s231 = scalar_select %p230, %s227, 31
      %p232 = scmp.lt.s32.totalorder %s20, 0
      %s233 = scalar_select %p232, %s20, 0
      %s234 = sadd.s32 %s233, %s231
      %s235 = smul.addr %s229, 32
      %s236 = sadd.s32 %s234, %s235
      %s237 = smul.addr %s236, 8
      %s238 = scalar_lea.vmem %s3, %s237
      %s239 = smul.u32 32, %s21
      %s240 = smul.u32 %s21, 16
      %s241 = smul.u32 %s240, 24
      %s242 = scalar_lea.vmem %s219, %s241
      %v243 = vld [vmem:[%s242] sm:$0xff]
      %v244 = vld [vmem:[%s242 + $0x8] sm:$0xff]
      %v245 = vld [vmem:[%s242 + $0x18] sm:$0xff]
      %v246 = vld [vmem:[%s242 + $0x20] sm:$0xff]
      %v247 = vld [vmem:[%s242 + $0x30] sm:$0xff]
      %v248 = vld [vmem:[%s242 + $0x38] sm:$0xff]
      %v249 = vld [vmem:[%s242 + $0x48] sm:$0xff]
      %v250 = vld [vmem:[%s242 + $0x50] sm:$0xff]
      %v251 = vld [vmem:[%s242 + $0x60] sm:$0xff]
      %v252 = vld [vmem:[%s242 + $0x68] sm:$0xff]
      %v253 = vld [vmem:[%s242 + $0x78] sm:$0xff]
      %v254 = vld [vmem:[%s242 + $0x80] sm:$0xff]
      %v255 = vld [vmem:[%s242 + $0x90] sm:$0xff]
      %v256 = vld [vmem:[%s242 + $0x98] sm:$0xff]
      %v257 = vld [vmem:[%s242 + $0xa8] sm:$0xff]
      %v258 = vld [vmem:[%s242 + $0xb0] sm:$0xff]
      %v259 = vld [vmem:[%s242 + $0xc0] sm:$0xff]
      %v260 = vld [vmem:[%s242 + $0xc8] sm:$0xff]
      %v261 = vld [vmem:[%s242 + $0xd8] sm:$0xff]
      %v262 = vld [vmem:[%s242 + $0xe0] sm:$0xff]
      %v263 = vld [vmem:[%s242 + $0xf0] sm:$0xff]
      %v264 = vld [vmem:[%s242 + $0xf8] sm:$0xff]
      %v265 = vld [vmem:[%s242 + $0x108] sm:$0xff]
      %v266 = vld [vmem:[%s242 + $0x110] sm:$0xff]
      %v267 = vld [vmem:[%s242 + $0x120] sm:$0xff]
      %v268 = vld [vmem:[%s242 + $0x128] sm:$0xff]
      %v269 = vld [vmem:[%s242 + $0x138] sm:$0xff]
      %v270 = vld [vmem:[%s242 + $0x140] sm:$0xff]
      %v271 = vld [vmem:[%s242 + $0x150] sm:$0xff]
      %v272 = vld [vmem:[%s242 + $0x158] sm:$0xff]
      %v273 = vld [vmem:[%s242 + $0x168] sm:$0xff]
      %v274 = vld [vmem:[%s242 + $0x170] sm:$0xff]
      %v275 = vld [vmem:[%s223] sm:$0xf]
      %v276 = vld [vmem:[%s242 + $0x1] sm:$0xff]
      %v277 = vld [vmem:[%s242 + $0x9] sm:$0xff]
      %v278 = vld [vmem:[%s242 + $0x19] sm:$0xff]
      %v279 = vld [vmem:[%s242 + $0x21] sm:$0xff]
      %v280 = vld [vmem:[%s242 + $0x31] sm:$0xff]
      %v281 = vld [vmem:[%s242 + $0x39] sm:$0xff]
      %v282 = vld [vmem:[%s242 + $0x49] sm:$0xff]
      %v283 = vld [vmem:[%s242 + $0x51] sm:$0xff]
      %v284 = vld [vmem:[%s242 + $0x61] sm:$0xff]
      %v285 = vld [vmem:[%s242 + $0x69] sm:$0xff]
      %v286 = vld [vmem:[%s242 + $0x79] sm:$0xff]
      %v287 = vld [vmem:[%s242 + $0x81] sm:$0xff]
      %v288 = vld [vmem:[%s242 + $0x91] sm:$0xff]
      %v289 = vld [vmem:[%s242 + $0x99] sm:$0xff]
      %v290 = vld [vmem:[%s242 + $0xa9] sm:$0xff]
      %v291 = vld [vmem:[%s242 + $0xb1] sm:$0xff]
      %v292 = vld [vmem:[%s242 + $0xc1] sm:$0xff]
      %v293 = vld [vmem:[%s242 + $0xc9] sm:$0xff]
      %v294 = vld [vmem:[%s242 + $0xd9] sm:$0xff]
      %v295 = vld [vmem:[%s242 + $0xe1] sm:$0xff]
      %v296 = vld [vmem:[%s242 + $0xf1] sm:$0xff]
      %v297 = vld [vmem:[%s242 + $0xf9] sm:$0xff]
      %v298 = vld [vmem:[%s242 + $0x109] sm:$0xff]
      %v299 = vld [vmem:[%s242 + $0x111] sm:$0xff]
      %v300 = vld [vmem:[%s242 + $0x121] sm:$0xff]
      %v301 = vld [vmem:[%s242 + $0x129] sm:$0xff]
      %v302 = vld [vmem:[%s242 + $0x139] sm:$0xff]
      %v303 = vld [vmem:[%s242 + $0x141] sm:$0xff]
      %v304 = vld [vmem:[%s242 + $0x151] sm:$0xff]
      %v305 = vld [vmem:[%s242 + $0x159] sm:$0xff]
      %v306 = vld [vmem:[%s242 + $0x169] sm:$0xff]
      %v307 = vld [vmem:[%s242 + $0x171] sm:$0xff]
      %s308 = scalar_lea.vmem %s223, 4
      %v309 = vld [vmem:[%s308] sm:$0xf]
      %vm310 = vcmask 31744
      %v312 = vsel %vm310, %v276, 0
      %v315 = vsel %vm310, %v277, 0
      %v318 = vsel %vm310, %v278, 0
      %v321 = vsel %vm310, %v279, 0
      %v324 = vsel %vm310, %v280, 0
      %v327 = vsel %vm310, %v281, 0
      %v330 = vsel %vm310, %v282, 0
      %v333 = vsel %vm310, %v283, 0
      %v336 = vsel %vm310, %v284, 0
      %v339 = vsel %vm310, %v285, 0
      %v342 = vsel %vm310, %v286, 0
      %v345 = vsel %vm310, %v287, 0
      %v348 = vsel %vm310, %v288, 0
      %v351 = vsel %vm310, %v289, 0
      %v354 = vsel %vm310, %v290, 0
      %v357 = vsel %vm310, %v291, 0
      %v360 = vsel %vm310, %v292, 0
      %v363 = vsel %vm310, %v293, 0
      %v366 = vsel %vm310, %v294, 0
      %v369 = vsel %vm310, %v295, 0
      %v372 = vsel %vm310, %v296, 0
      %v375 = vsel %vm310, %v297, 0
      %v378 = vsel %vm310, %v298, 0
      %v381 = vsel %vm310, %v299, 0
      %v384 = vsel %vm310, %v300, 0
      %v387 = vsel %vm310, %v301, 0
      %v390 = vsel %vm310, %v302, 0
      %v393 = vsel %vm310, %v303, 0
      %v396 = vsel %vm310, %v304, 0
      %v399 = vsel %vm310, %v305, 0
      %v402 = vsel %vm310, %v306, 0
      %v405 = vsel %vm310, %v307, 0
      %vm407 = vcmask 1043456
      %v409 = vsel %vm407, %v309, 0
      %411 = vmatprep.subr.mxu0 0.0
      %412 = vmatpush1.msra.mxu0 0.0
      %413 = vmatprep.subr.mxu0 0.0
      %414 = vmatpush1.msra.mxu0 0.0
      %415 = vmatprep.subr.mxu0 0.0
      %416 = vmatpush1.msra.mxu0 0.0
      %417 = vmatprep.subr.mxu0 0.0
      %418 = vmatpush1.msra.mxu0 0.0
      %419 = vmatprep.subr.mxu0 0.0
      %420 = vmatpush1.msra.mxu0 0.0
      %421 = vmatprep.subr.mxu0 0.0
      %422 = vmatpush1.msra.mxu0 0.0
      %423 = vmatprep.subr.mxu0 0.0
      %424 = vmatpush1.msra.mxu0 0.0
      %425 = vmatprep.subr.mxu0 0.0
      %426 = vmatpush1.msra.mxu0 0.0
      %427 = vmatprep.subr.mxu0 0.0
      %428 = vmatpush1.msra.mxu0 0.0
      %429 = vmatprep.subr.mxu0 0.0
      %430 = vmatpush1.msra.mxu0 0.0
      %431 = vmatprep.subr.mxu0 0.0
      %432 = vmatpush1.msra.mxu0 0.0
      %433 = vmatprep.subr.mxu0 0.0
      %434 = vmatpush1.msra.mxu0 0.0
      %435 = vmatprep.subr.mxu0 0.0
      %436 = vmatpush1.msra.mxu0 0.0
      %437 = vmatprep.subr.mxu0 0.0
      %438 = vmatpush1.msra.mxu0 0.0
      %439 = vmatprep.subr.mxu0 0.0
      %440 = vmatpush1.msra.mxu0 0.0
      %441 = vmatprep.subr.mxu0 0.0
      %442 = vmatpush1.msra.mxu0 %v409
      %443 = vmatprep.subr.mxu0 0.0
      %444 = vmatpush2.msra.mxu0 0.0
      %445 = vmatprep.subr.mxu0 0.0
      %446 = vmatpush2.msra.mxu0 0.0
      %447 = vmatprep.subr.mxu0 0.0
      %448 = vmatpush2.msra.mxu0 0.0
      %449 = vmatprep.subr.mxu0 0.0
      %450 = vmatpush2.msra.mxu0 0.0
      %451 = vmatprep.subr.mxu0 0.0
      %452 = vmatpush2.msra.mxu0 0.0
      %453 = vmatprep.subr.mxu0 0.0
      %454 = vmatpush2.msra.mxu0 0.0
      %455 = vmatprep.subr.mxu0 0.0
      %456 = vmatpush2.msra.mxu0 0.0
      %457 = vmatprep.subr.mxu0 0.0
      %458 = vmatpush2.msra.mxu0 0.0
      %459 = vmatprep.subr.mxu0 0.0
      %460 = vmatpush2.msra.mxu0 0.0
      %461 = vmatprep.subr.mxu0 0.0
      %462 = vmatpush2.msra.mxu0 0.0
      %463 = vmatprep.subr.mxu0 0.0
      %464 = vmatpush2.msra.mxu0 0.0
      %465 = vmatprep.subr.mxu0 0.0
      %466 = vmatpush2.msra.mxu0 0.0
      %467 = vmatprep.subr.mxu0 0.0
      %468 = vmatpush2.msra.mxu0 0.0
      %469 = vmatprep.subr.mxu0 0.0
      %470 = vmatpush2.msra.mxu0 0.0
      %471 = vmatprep.subr.mxu0 0.0
      %472 = vmatpush2.msra.mxu0 0.0
      %473 = vmatprep.subr.mxu0 0.0
      %474 = vmatpush2.msra.mxu0 0.0
      %475 = vmatprep.mubr.f32.mxu0 0.0
      %476 = vmatmul.mubr.f32.gmra.mxu0 %v312
      %v477 = vpop.f32.mrf.mxu0
      %v478 = vadd.f32 0.0, %v477
      %v479 = vpop.f32.mrf.mxu0
      %480 = vmatprep.mubr.f32.mxu0 0.0
      %481 = vmatmul.mubr.f32.gmra.mxu0 %v315
      %v482 = vpop.f32.mrf.mxu0
      %v483 = vadd.f32 0.0, %v482
      %v484 = vpop.f32.mrf.mxu0
      %485 = vmatprep.mubr.f32.mxu0 0.0
      %486 = vmatmul.mubr.f32.gmra.mxu0 %v318
      %v487 = vpop.f32.mrf.mxu0
      %v488 = vadd.f32 0.0, %v487
      %v489 = vpop.f32.mrf.mxu0
      %490 = vmatprep.mubr.f32.mxu0 0.0
      %491 = vmatmul.mubr.f32.gmra.mxu0 %v321
      %v492 = vpop.f32.mrf.mxu0
      %v493 = vadd.f32 0.0, %v492
      %v494 = vpop.f32.mrf.mxu0
      %495 = vmatprep.mubr.f32.mxu0 0.0
      %496 = vmatmul.mubr.f32.gmra.mxu0 %v324
      %v497 = vpop.f32.mrf.mxu0
      %v498 = vadd.f32 0.0, %v497
      %v499 = vpop.f32.mrf.mxu0
      %500 = vmatprep.mubr.f32.mxu0 0.0
      %501 = vmatmul.mubr.f32.gmra.mxu0 %v327
      %v502 = vpop.f32.mrf.mxu0
      %v503 = vadd.f32 0.0, %v502
      %v504 = vpop.f32.mrf.mxu0
      %505 = vmatprep.mubr.f32.mxu0 0.0
      %506 = vmatmul.mubr.f32.gmra.mxu0 %v330
      %v507 = vpop.f32.mrf.mxu0
      %v508 = vadd.f32 0.0, %v507
      %v509 = vpop.f32.mrf.mxu0
      %510 = vmatprep.mubr.f32.mxu0 0.0
      %511 = vmatmul.mubr.f32.gmra.mxu0 %v333
      %v512 = vpop.f32.mrf.mxu0
      %v513 = vadd.f32 0.0, %v512
      %v514 = vpop.f32.mrf.mxu0
      %515 = vmatprep.mubr.f32.mxu0 0.0
      %516 = vmatmul.mubr.f32.gmra.mxu0 %v336
      %v517 = vpop.f32.mrf.mxu0
      %v518 = vadd.f32 0.0, %v517
      %v519 = vpop.f32.mrf.mxu0
      %520 = vmatprep.mubr.f32.mxu0 0.0
      %521 = vmatmul.mubr.f32.gmra.mxu0 %v339
      %v522 = vpop.f32.mrf.mxu0
      %v523 = vadd.f32 0.0, %v522
      %v524 = vpop.f32.mrf.mxu0
      %525 = vmatprep.mubr.f32.mxu0 0.0
      %526 = vmatmul.mubr.f32.gmra.mxu0 %v342
      %v527 = vpop.f32.mrf.mxu0
      %v528 = vadd.f32 0.0, %v527
      %v529 = vpop.f32.mrf.mxu0
      %530 = vmatprep.mubr.f32.mxu0 0.0
      %531 = vmatmul.mubr.f32.gmra.mxu0 %v345
      %v532 = vpop.f32.mrf.mxu0
      %v533 = vadd.f32 0.0, %v532
      %v534 = vpop.f32.mrf.mxu0
      %535 = vmatprep.mubr.f32.mxu0 0.0
      %536 = vmatmul.mubr.f32.gmra.mxu0 %v348
      %v537 = vpop.f32.mrf.mxu0
      %v538 = vadd.f32 0.0, %v537
      %v539 = vpop.f32.mrf.mxu0
      %540 = vmatprep.mubr.f32.mxu0 0.0
      %541 = vmatmul.mubr.f32.gmra.mxu0 %v351
      %v542 = vpop.f32.mrf.mxu0
      %v543 = vadd.f32 0.0, %v542
      %v544 = vpop.f32.mrf.mxu0
      %545 = vmatprep.mubr.f32.mxu0 0.0
      %546 = vmatmul.mubr.f32.gmra.mxu0 %v354
      %v547 = vpop.f32.mrf.mxu0
      %v548 = vadd.f32 0.0, %v547
      %v549 = vpop.f32.mrf.mxu0
      %550 = vmatprep.mubr.f32.mxu0 0.0
      %551 = vmatmul.mubr.f32.gmra.mxu0 %v357
      %v552 = vpop.f32.mrf.mxu0
      %v553 = vadd.f32 0.0, %v552
      %v554 = vpop.f32.mrf.mxu0
      %555 = vmatprep.mubr.f32.mxu0 0.0
      %556 = vmatmul.mubr.f32.gmra.mxu0 %v360
      %v557 = vpop.f32.mrf.mxu0
      %v558 = vadd.f32 0.0, %v557
      %v559 = vpop.f32.mrf.mxu0
      %560 = vmatprep.mubr.f32.mxu0 0.0
      %561 = vmatmul.mubr.f32.gmra.mxu0 %v363
      %v562 = vpop.f32.mrf.mxu0
      %v563 = vadd.f32 0.0, %v562
      %v564 = vpop.f32.mrf.mxu0
      %565 = vmatprep.mubr.f32.mxu0 0.0
      %566 = vmatmul.mubr.f32.gmra.mxu0 %v366
      %v567 = vpop.f32.mrf.mxu0
      %v568 = vadd.f32 0.0, %v567
      %v569 = vpop.f32.mrf.mxu0
      %570 = vmatprep.mubr.f32.mxu0 0.0
      %571 = vmatmul.mubr.f32.gmra.mxu0 %v369
      %v572 = vpop.f32.mrf.mxu0
      %v573 = vadd.f32 0.0, %v572
      %v574 = vpop.f32.mrf.mxu0
      %575 = vmatprep.mubr.f32.mxu0 0.0
      %576 = vmatmul.mubr.f32.gmra.mxu0 %v372
      %v577 = vpop.f32.mrf.mxu0
      %v578 = vadd.f32 0.0, %v577
      %v579 = vpop.f32.mrf.mxu0
      %580 = vmatprep.mubr.f32.mxu0 0.0
      %581 = vmatmul.mubr.f32.gmra.mxu0 %v375
      %v582 = vpop.f32.mrf.mxu0
      %v583 = vadd.f32 0.0, %v582
      %v584 = vpop.f32.mrf.mxu0
      %585 = vmatprep.mubr.f32.mxu0 0.0
      %586 = vmatmul.mubr.f32.gmra.mxu0 %v378
      %v587 = vpop.f32.mrf.mxu0
      %v588 = vadd.f32 0.0, %v587
      %v589 = vpop.f32.mrf.mxu0
      %590 = vmatprep.mubr.f32.mxu0 0.0
      %591 = vmatmul.mubr.f32.gmra.mxu0 %v381
      %v592 = vpop.f32.mrf.mxu0
      %v593 = vadd.f32 0.0, %v592
      %v594 = vpop.f32.mrf.mxu0
      %595 = vmatprep.mubr.f32.mxu0 0.0
      %596 = vmatmul.mubr.f32.gmra.mxu0 %v384
      %v597 = vpop.f32.mrf.mxu0
      %v598 = vadd.f32 0.0, %v597
      %v599 = vpop.f32.mrf.mxu0
      %600 = vmatprep.mubr.f32.mxu0 0.0
      %601 = vmatmul.mubr.f32.gmra.mxu0 %v387
      %v602 = vpop.f32.mrf.mxu0
      %v603 = vadd.f32 0.0, %v602
      %v604 = vpop.f32.mrf.mxu0
      %605 = vmatprep.mubr.f32.mxu0 0.0
      %606 = vmatmul.mubr.f32.gmra.mxu0 %v390
      %v607 = vpop.f32.mrf.mxu0
      %v608 = vadd.f32 0.0, %v607
      %v609 = vpop.f32.mrf.mxu0
      %610 = vmatprep.mubr.f32.mxu0 0.0
      %611 = vmatmul.mubr.f32.gmra.mxu0 %v393
      %v612 = vpop.f32.mrf.mxu0
      %v613 = vadd.f32 0.0, %v612
      %v614 = vpop.f32.mrf.mxu0
      %615 = vmatprep.mubr.f32.mxu0 0.0
      %616 = vmatmul.mubr.f32.gmra.mxu0 %v396
      %v617 = vpop.f32.mrf.mxu0
      %v618 = vadd.f32 0.0, %v617
      %v619 = vpop.f32.mrf.mxu0
      %620 = vmatprep.mubr.f32.mxu0 0.0
      %621 = vmatmul.mubr.f32.gmra.mxu0 %v399
      %v622 = vpop.f32.mrf.mxu0
      %v623 = vadd.f32 0.0, %v622
      %v624 = vpop.f32.mrf.mxu0
      %625 = vmatprep.mubr.f32.mxu0 0.0
      %626 = vmatmul.mubr.f32.gmra.mxu0 %v402
      %v627 = vpop.f32.mrf.mxu0
      %v628 = vadd.f32 0.0, %v627
      %v629 = vpop.f32.mrf.mxu0
      %630 = vmatprep.mubr.f32.mxu0 0.0
      %631 = vmatmul.mubr.f32.gmra.mxu0 %v405
      %v632 = vpop.f32.mrf.mxu0
      %v633 = vadd.f32 0.0, %v632
      %v634 = vpop.f32.mrf.mxu0
      %635 = vdwg.mxu0
      %v637 = vsel %vm310, %v243, 0
      %v640 = vsel %vm310, %v244, 0
      %v643 = vsel %vm310, %v245, 0
      %v646 = vsel %vm310, %v246, 0
      %v649 = vsel %vm310, %v247, 0
      %v652 = vsel %vm310, %v248, 0
      %v655 = vsel %vm310, %v249, 0
      %v658 = vsel %vm310, %v250, 0
      %v661 = vsel %vm310, %v251, 0
      %v664 = vsel %vm310, %v252, 0
      %v667 = vsel %vm310, %v253, 0
      %v670 = vsel %vm310, %v254, 0
      %v673 = vsel %vm310, %v255, 0
      %v676 = vsel %vm310, %v256, 0
      %v679 = vsel %vm310, %v257, 0
      %v682 = vsel %vm310, %v258, 0
      %v685 = vsel %vm310, %v259, 0
      %v688 = vsel %vm310, %v260, 0
      %v691 = vsel %vm310, %v261, 0
      %v694 = vsel %vm310, %v262, 0
      %v697 = vsel %vm310, %v263, 0
      %v700 = vsel %vm310, %v264, 0
      %v703 = vsel %vm310, %v265, 0
      %v706 = vsel %vm310, %v266, 0
      %v709 = vsel %vm310, %v267, 0
      %v712 = vsel %vm310, %v268, 0
      %v715 = vsel %vm310, %v269, 0
      %v718 = vsel %vm310, %v270, 0
      %v721 = vsel %vm310, %v271, 0
      %v724 = vsel %vm310, %v272, 0
      %v727 = vsel %vm310, %v273, 0
      %v730 = vsel %vm310, %v274, 0
      %v733 = vsel %vm407, %v275, 0
      %735 = vmatprep.subr.mxu0 0.0
      %736 = vmatpush1.msra.mxu0 0.0
      %737 = vmatprep.subr.mxu0 0.0
      %738 = vmatpush1.msra.mxu0 0.0
      %739 = vmatprep.subr.mxu0 0.0
      %740 = vmatpush1.msra.mxu0 0.0
      %741 = vmatprep.subr.mxu0 0.0
      %742 = vmatpush1.msra.mxu0 0.0
      %743 = vmatprep.subr.mxu0 0.0
      %744 = vmatpush1.msra.mxu0 0.0
      %745 = vmatprep.subr.mxu0 0.0
      %746 = vmatpush1.msra.mxu0 0.0
      %747 = vmatprep.subr.mxu0 0.0
      %748 = vmatpush1.msra.mxu0 0.0
      %749 = vmatprep.subr.mxu0 0.0
      %750 = vmatpush1.msra.mxu0 0.0
      %751 = vmatprep.subr.mxu0 0.0
      %752 = vmatpush1.msra.mxu0 0.0
      %753 = vmatprep.subr.mxu0 0.0
      %754 = vmatpush1.msra.mxu0 0.0
      %755 = vmatprep.subr.mxu0 0.0
      %756 = vmatpush1.msra.mxu0 0.0
      %757 = vmatprep.subr.mxu0 0.0
      %758 = vmatpush1.msra.mxu0 0.0
      %759 = vmatprep.subr.mxu0 0.0
      %760 = vmatpush1.msra.mxu0 0.0
      %761 = vmatprep.subr.mxu0 0.0
      %762 = vmatpush1.msra.mxu0 0.0
      %763 = vmatprep.subr.mxu0 0.0
      %764 = vmatpush1.msra.mxu0 0.0
      %765 = vmatprep.subr.mxu0 0.0
      %766 = vmatpush1.msra.mxu0 %v733
      %767 = vmatprep.subr.mxu0 0.0
      %768 = vmatpush2.msra.mxu0 0.0
      %769 = vmatprep.subr.mxu0 0.0
      %770 = vmatpush2.msra.mxu0 0.0
      %771 = vmatprep.subr.mxu0 0.0
      %772 = vmatpush2.msra.mxu0 0.0
      %773 = vmatprep.subr.mxu0 0.0
      %774 = vmatpush2.msra.mxu0 0.0
      %775 = vmatprep.subr.mxu0 0.0
      %776 = vmatpush2.msra.mxu0 0.0
      %777 = vmatprep.subr.mxu0 0.0
      %778 = vmatpush2.msra.mxu0 0.0
      %779 = vmatprep.subr.mxu0 0.0
      %780 = vmatpush2.msra.mxu0 0.0
      %781 = vmatprep.subr.mxu0 0.0
      %782 = vmatpush2.msra.mxu0 0.0
      %783 = vmatprep.subr.mxu0 0.0
      %784 = vmatpush2.msra.mxu0 0.0
      %785 = vmatprep.subr.mxu0 0.0
      %786 = vmatpush2.msra.mxu0 0.0
      %787 = vmatprep.subr.mxu0 0.0
      %788 = vmatpush2.msra.mxu0 0.0
      %789 = vmatprep.subr.mxu0 0.0
      %790 = vmatpush2.msra.mxu0 0.0
      %791 = vmatprep.subr.mxu0 0.0
      %792 = vmatpush2.msra.mxu0 0.0
      %793 = vmatprep.subr.mxu0 0.0
      %794 = vmatpush2.msra.mxu0 0.0
      %795 = vmatprep.subr.mxu0 0.0
      %796 = vmatpush2.msra.mxu0 0.0
      %797 = vmatprep.subr.mxu0 0.0
      %798 = vmatpush2.msra.mxu0 0.0
      %799 = vmatprep.mubr.f32.mxu0 0.0
      %800 = vmatmul.mubr.f32.gmra.mxu0 %v637
      %v801 = vpop.f32.mrf.mxu0
      %v802 = vadd.f32 %v478, %v801
      %v803 = vpop.f32.mrf.mxu0
      %804 = vmatprep.mubr.f32.mxu0 0.0
      %805 = vmatmul.mubr.f32.gmra.mxu0 %v640
      %v806 = vpop.f32.mrf.mxu0
      %v807 = vadd.f32 %v483, %v806
      %v808 = vpop.f32.mrf.mxu0
      %809 = vmatprep.mubr.f32.mxu0 0.0
      %810 = vmatmul.mubr.f32.gmra.mxu0 %v643
      %v811 = vpop.f32.mrf.mxu0
      %v812 = vadd.f32 %v488, %v811
      %v813 = vpop.f32.mrf.mxu0
      %814 = vmatprep.mubr.f32.mxu0 0.0
      %815 = vmatmul.mubr.f32.gmra.mxu0 %v646
      %v816 = vpop.f32.mrf.mxu0
      %v817 = vadd.f32 %v493, %v816
      %v818 = vpop.f32.mrf.mxu0
      %819 = vmatprep.mubr.f32.mxu0 0.0
      %820 = vmatmul.mubr.f32.gmra.mxu0 %v649
      %v821 = vpop.f32.mrf.mxu0
      %v822 = vadd.f32 %v498, %v821
      %v823 = vpop.f32.mrf.mxu0
      %824 = vmatprep.mubr.f32.mxu0 0.0
      %825 = vmatmul.mubr.f32.gmra.mxu0 %v652
      %v826 = vpop.f32.mrf.mxu0
      %v827 = vadd.f32 %v503, %v826
      %v828 = vpop.f32.mrf.mxu0
      %829 = vmatprep.mubr.f32.mxu0 0.0
      %830 = vmatmul.mubr.f32.gmra.mxu0 %v655
      %v831 = vpop.f32.mrf.mxu0
      %v832 = vadd.f32 %v508, %v831
      %v833 = vpop.f32.mrf.mxu0
      %834 = vmatprep.mubr.f32.mxu0 0.0
      %835 = vmatmul.mubr.f32.gmra.mxu0 %v658
      %v836 = vpop.f32.mrf.mxu0
      %v837 = vadd.f32 %v513, %v836
      %v838 = vpop.f32.mrf.mxu0
      %839 = vmatprep.mubr.f32.mxu0 0.0
      %840 = vmatmul.mubr.f32.gmra.mxu0 %v661
      %v841 = vpop.f32.mrf.mxu0
      %v842 = vadd.f32 %v518, %v841
      %v843 = vpop.f32.mrf.mxu0
      %844 = vmatprep.mubr.f32.mxu0 0.0
      %845 = vmatmul.mubr.f32.gmra.mxu0 %v664
      %v846 = vpop.f32.mrf.mxu0
      %v847 = vadd.f32 %v523, %v846
      %v848 = vpop.f32.mrf.mxu0
      %849 = vmatprep.mubr.f32.mxu0 0.0
      %850 = vmatmul.mubr.f32.gmra.mxu0 %v667
      %v851 = vpop.f32.mrf.mxu0
      %v852 = vadd.f32 %v528, %v851
      %v853 = vpop.f32.mrf.mxu0
      %854 = vmatprep.mubr.f32.mxu0 0.0
      %855 = vmatmul.mubr.f32.gmra.mxu0 %v670
      %v856 = vpop.f32.mrf.mxu0
      %v857 = vadd.f32 %v533, %v856
      %v858 = vpop.f32.mrf.mxu0
      %859 = vmatprep.mubr.f32.mxu0 0.0
      %860 = vmatmul.mubr.f32.gmra.mxu0 %v673
      %v861 = vpop.f32.mrf.mxu0
      %v862 = vadd.f32 %v538, %v861
      %v863 = vpop.f32.mrf.mxu0
      %864 = vmatprep.mubr.f32.mxu0 0.0
      %865 = vmatmul.mubr.f32.gmra.mxu0 %v676
      %v866 = vpop.f32.mrf.mxu0
      %v867 = vadd.f32 %v543, %v866
      %v868 = vpop.f32.mrf.mxu0
      %869 = vmatprep.mubr.f32.mxu0 0.0
      %870 = vmatmul.mubr.f32.gmra.mxu0 %v679
      %v871 = vpop.f32.mrf.mxu0
      %v872 = vadd.f32 %v548, %v871
      %v873 = vpop.f32.mrf.mxu0
      %874 = vmatprep.mubr.f32.mxu0 0.0
      %875 = vmatmul.mubr.f32.gmra.mxu0 %v682
      %v876 = vpop.f32.mrf.mxu0
      %v877 = vadd.f32 %v553, %v876
      %v878 = vpop.f32.mrf.mxu0
      %879 = vmatprep.mubr.f32.mxu0 0.0
      %880 = vmatmul.mubr.f32.gmra.mxu0 %v685
      %v881 = vpop.f32.mrf.mxu0
      %v882 = vadd.f32 %v558, %v881
      %v883 = vpop.f32.mrf.mxu0
      %884 = vmatprep.mubr.f32.mxu0 0.0
      %885 = vmatmul.mubr.f32.gmra.mxu0 %v688
      %v886 = vpop.f32.mrf.mxu0
      %v887 = vadd.f32 %v563, %v886
      %v888 = vpop.f32.mrf.mxu0
      %889 = vmatprep.mubr.f32.mxu0 0.0
      %890 = vmatmul.mubr.f32.gmra.mxu0 %v691
      %v891 = vpop.f32.mrf.mxu0
      %v892 = vadd.f32 %v568, %v891
      %v893 = vpop.f32.mrf.mxu0
      %894 = vmatprep.mubr.f32.mxu0 0.0
      %895 = vmatmul.mubr.f32.gmra.mxu0 %v694
      %v896 = vpop.f32.mrf.mxu0
      %v897 = vadd.f32 %v573, %v896
      %v898 = vpop.f32.mrf.mxu0
      %899 = vmatprep.mubr.f32.mxu0 0.0
      %900 = vmatmul.mubr.f32.gmra.mxu0 %v697
      %v901 = vpop.f32.mrf.mxu0
      %v902 = vadd.f32 %v578, %v901
      %v903 = vpop.f32.mrf.mxu0
      %904 = vmatprep.mubr.f32.mxu0 0.0
      %905 = vmatmul.mubr.f32.gmra.mxu0 %v700
      %v906 = vpop.f32.mrf.mxu0
      %v907 = vadd.f32 %v583, %v906
      %v908 = vpop.f32.mrf.mxu0
      %909 = vmatprep.mubr.f32.mxu0 0.0
      %910 = vmatmul.mubr.f32.gmra.mxu0 %v703
      %v911 = vpop.f32.mrf.mxu0
      %v912 = vadd.f32 %v588, %v911
      %v913 = vpop.f32.mrf.mxu0
      %914 = vmatprep.mubr.f32.mxu0 0.0
      %915 = vmatmul.mubr.f32.gmra.mxu0 %v706
      %v916 = vpop.f32.mrf.mxu0
      %v917 = vadd.f32 %v593, %v916
      %v918 = vpop.f32.mrf.mxu0
      %919 = vmatprep.mubr.f32.mxu0 0.0
      %920 = vmatmul.mubr.f32.gmra.mxu0 %v709
      %v921 = vpop.f32.mrf.mxu0
      %v922 = vadd.f32 %v598, %v921
      %v923 = vpop.f32.mrf.mxu0
      %924 = vmatprep.mubr.f32.mxu0 0.0
      %925 = vmatmul.mubr.f32.gmra.mxu0 %v712
      %v926 = vpop.f32.mrf.mxu0
      %v927 = vadd.f32 %v603, %v926
      %v928 = vpop.f32.mrf.mxu0
      %929 = vmatprep.mubr.f32.mxu0 0.0
      %930 = vmatmul.mubr.f32.gmra.mxu0 %v715
      %v931 = vpop.f32.mrf.mxu0
      %v932 = vadd.f32 %v608, %v931
      %v933 = vpop.f32.mrf.mxu0
      %934 = vmatprep.mubr.f32.mxu0 0.0
      %935 = vmatmul.mubr.f32.gmra.mxu0 %v718
      %v936 = vpop.f32.mrf.mxu0
      %v937 = vadd.f32 %v613, %v936
      %v938 = vpop.f32.mrf.mxu0
      %939 = vmatprep.mubr.f32.mxu0 0.0
      %940 = vmatmul.mubr.f32.gmra.mxu0 %v721
      %v941 = vpop.f32.mrf.mxu0
      %v942 = vadd.f32 %v618, %v941
      %v943 = vpop.f32.mrf.mxu0
      %944 = vmatprep.mubr.f32.mxu0 0.0
      %945 = vmatmul.mubr.f32.gmra.mxu0 %v724
      %v946 = vpop.f32.mrf.mxu0
      %v947 = vadd.f32 %v623, %v946
      %v948 = vpop.f32.mrf.mxu0
      %949 = vmatprep.mubr.f32.mxu0 0.0
      %950 = vmatmul.mubr.f32.gmra.mxu0 %v727
      %v951 = vpop.f32.mrf.mxu0
      %v952 = vadd.f32 %v628, %v951
      %v953 = vpop.f32.mrf.mxu0
      %954 = vmatprep.mubr.f32.mxu0 0.0
      %955 = vmatmul.mubr.f32.gmra.mxu0 %v730
      %v956 = vpop.f32.mrf.mxu0
      %v957 = vadd.f32 %v633, %v956
      %v958 = vpop.f32.mrf.mxu0
      %959 = vdwg.mxu0
      %v960 = vld [vmem:[%s242 + $0x2] sm:$0xff]
      %v961 = vld [vmem:[%s242 + $0xa] sm:$0xff]
      %v962 = vld [vmem:[%s242 + $0x1a] sm:$0xff]
      %v963 = vld [vmem:[%s242 + $0x22] sm:$0xff]
      %v964 = vld [vmem:[%s242 + $0x32] sm:$0xff]
      %v965 = vld [vmem:[%s242 + $0x3a] sm:$0xff]
      %v966 = vld [vmem:[%s242 + $0x4a] sm:$0xff]
      %v967 = vld [vmem:[%s242 + $0x52] sm:$0xff]
      %v968 = vld [vmem:[%s242 + $0x62] sm:$0xff]
      %v969 = vld [vmem:[%s242 + $0x6a] sm:$0xff]
      %v970 = vld [vmem:[%s242 + $0x7a] sm:$0xff]
      %v971 = vld [vmem:[%s242 + $0x82] sm:$0xff]
      %v972 = vld [vmem:[%s242 + $0x92] sm:$0xff]
      %v973 = vld [vmem:[%s242 + $0x9a] sm:$0xff]
      %v974 = vld [vmem:[%s242 + $0xaa] sm:$0xff]
      %v975 = vld [vmem:[%s242 + $0xb2] sm:$0xff]
      %v976 = vld [vmem:[%s242 + $0xc2] sm:$0xff]
      %v977 = vld [vmem:[%s242 + $0xca] sm:$0xff]
      %v978 = vld [vmem:[%s242 + $0xda] sm:$0xff]
      %v979 = vld [vmem:[%s242 + $0xe2] sm:$0xff]
      %v980 = vld [vmem:[%s242 + $0xf2] sm:$0xff]
      %v981 = vld [vmem:[%s242 + $0xfa] sm:$0xff]
      %v982 = vld [vmem:[%s242 + $0x10a] sm:$0xff]
      %v983 = vld [vmem:[%s242 + $0x112] sm:$0xff]
      %v984 = vld [vmem:[%s242 + $0x122] sm:$0xff]
      %v985 = vld [vmem:[%s242 + $0x12a] sm:$0xff]
      %v986 = vld [vmem:[%s242 + $0x13a] sm:$0xff]
      %v987 = vld [vmem:[%s242 + $0x142] sm:$0xff]
      %v988 = vld [vmem:[%s242 + $0x152] sm:$0xff]
      %v989 = vld [vmem:[%s242 + $0x15a] sm:$0xff]
      %v990 = vld [vmem:[%s242 + $0x16a] sm:$0xff]
      %v991 = vld [vmem:[%s242 + $0x172] sm:$0xff]
      %s992 = scalar_lea.vmem %s223, 8
      %v993 = vld [vmem:[%s992] sm:$0xf]
      %v995 = vsel %vm310, %v960, 0
      %v998 = vsel %vm310, %v961, 0
      %v1001 = vsel %vm310, %v962, 0
      %v1004 = vsel %vm310, %v963, 0
      %v1007 = vsel %vm310, %v964, 0
      %v1010 = vsel %vm310, %v965, 0
      %v1013 = vsel %vm310, %v966, 0
      %v1016 = vsel %vm310, %v967, 0
      %v1019 = vsel %vm310, %v968, 0
      %v1022 = vsel %vm310, %v969, 0
      %v1025 = vsel %vm310, %v970, 0
      %v1028 = vsel %vm310, %v971, 0
      %v1031 = vsel %vm310, %v972, 0
      %v1034 = vsel %vm310, %v973, 0
      %v1037 = vsel %vm310, %v974, 0
      %v1040 = vsel %vm310, %v975, 0
      %v1043 = vsel %vm310, %v976, 0
      %v1046 = vsel %vm310, %v977, 0
      %v1049 = vsel %vm310, %v978, 0
      %v1052 = vsel %vm310, %v979, 0
      %v1055 = vsel %vm310, %v980, 0
      %v1058 = vsel %vm310, %v981, 0
      %v1061 = vsel %vm310, %v982, 0
      %v1064 = vsel %vm310, %v983, 0
      %v1067 = vsel %vm310, %v984, 0
      %v1070 = vsel %vm310, %v985, 0
      %v1073 = vsel %vm310, %v986, 0
      %v1076 = vsel %vm310, %v987, 0
      %v1079 = vsel %vm310, %v988, 0
      %v1082 = vsel %vm310, %v989, 0
      %v1085 = vsel %vm310, %v990, 0
      %v1088 = vsel %vm310, %v991, 0
      %v1091 = vsel %vm407, %v993, 0
      %1093 = vmatprep.subr.mxu0 0.0
      %1094 = vmatpush1.msra.mxu0 0.0
      %1095 = vmatprep.subr.mxu0 0.0
      %1096 = vmatpush1.msra.mxu0 0.0
      %1097 = vmatprep.subr.mxu0 0.0
      %1098 = vmatpush1.msra.mxu0 0.0
      %1099 = vmatprep.subr.mxu0 0.0
      %1100 = vmatpush1.msra.mxu0 0.0
      %1101 = vmatprep.subr.mxu0 0.0
      %1102 = vmatpush1.msra.mxu0 0.0
      %1103 = vmatprep.subr.mxu0 0.0
      %1104 = vmatpush1.msra.mxu0 0.0
      %1105 = vmatprep.subr.mxu0 0.0
      %1106 = vmatpush1.msra.mxu0 0.0
      %1107 = vmatprep.subr.mxu0 0.0
      %1108 = vmatpush1.msra.mxu0 0.0
      %1109 = vmatprep.subr.mxu0 0.0
      %1110 = vmatpush1.msra.mxu0 0.0
      %1111 = vmatprep.subr.mxu0 0.0
      %1112 = vmatpush1.msra.mxu0 0.0
      %1113 = vmatprep.subr.mxu0 0.0
      %1114 = vmatpush1.msra.mxu0 0.0
      %1115 = vmatprep.subr.mxu0 0.0
      %1116 = vmatpush1.msra.mxu0 0.0
      %1117 = vmatprep.subr.mxu0 0.0
      %1118 = vmatpush1.msra.mxu0 0.0
      %1119 = vmatprep.subr.mxu0 0.0
      %1120 = vmatpush1.msra.mxu0 0.0
      %1121 = vmatprep.subr.mxu0 0.0
      %1122 = vmatpush1.msra.mxu0 0.0
      %1123 = vmatprep.subr.mxu0 0.0
      %1124 = vmatpush1.msra.mxu0 %v1091
      %1125 = vmatprep.subr.mxu0 0.0
      %1126 = vmatpush2.msra.mxu0 0.0
      %1127 = vmatprep.subr.mxu0 0.0
      %1128 = vmatpush2.msra.mxu0 0.0
      %1129 = vmatprep.subr.mxu0 0.0
      %1130 = vmatpush2.msra.mxu0 0.0
      %1131 = vmatprep.subr.mxu0 0.0
      %1132 = vmatpush2.msra.mxu0 0.0
      %1133 = vmatprep.subr.mxu0 0.0
      %1134 = vmatpush2.msra.mxu0 0.0
      %1135 = vmatprep.subr.mxu0 0.0
      %1136 = vmatpush2.msra.mxu0 0.0
      %1137 = vmatprep.subr.mxu0 0.0
      %1138 = vmatpush2.msra.mxu0 0.0
      %1139 = vmatprep.subr.mxu0 0.0
      %1140 = vmatpush2.msra.mxu0 0.0
      %1141 = vmatprep.subr.mxu0 0.0
      %1142 = vmatpush2.msra.mxu0 0.0
      %1143 = vmatprep.subr.mxu0 0.0
      %1144 = vmatpush2.msra.mxu0 0.0
      %1145 = vmatprep.subr.mxu0 0.0
      %1146 = vmatpush2.msra.mxu0 0.0
      %1147 = vmatprep.subr.mxu0 0.0
      %1148 = vmatpush2.msra.mxu0 0.0
      %1149 = vmatprep.subr.mxu0 0.0
      %1150 = vmatpush2.msra.mxu0 0.0
      %1151 = vmatprep.subr.mxu0 0.0
      %1152 = vmatpush2.msra.mxu0 0.0
      %1153 = vmatprep.subr.mxu0 0.0
      %1154 = vmatpush2.msra.mxu0 0.0
      %1155 = vmatprep.subr.mxu0 0.0
      %1156 = vmatpush2.msra.mxu0 0.0
      %1157 = vmatprep.mubr.f32.mxu0 0.0
      %1158 = vmatmul.mubr.f32.gmra.mxu0 %v995
      %v1159 = vpop.f32.mrf.mxu0
      %v1160 = vadd.f32 0.0, %v1159
      %v1161 = vpop.f32.mrf.mxu0
      %1162 = vmatprep.mubr.f32.mxu0 0.0
      %1163 = vmatmul.mubr.f32.gmra.mxu0 %v998
      %v1164 = vpop.f32.mrf.mxu0
      %v1165 = vadd.f32 0.0, %v1164
      %v1166 = vpop.f32.mrf.mxu0
      %1167 = vmatprep.mubr.f32.mxu0 0.0
      %1168 = vmatmul.mubr.f32.gmra.mxu0 %v1001
      %v1169 = vpop.f32.mrf.mxu0
      %v1170 = vadd.f32 0.0, %v1169
      %v1171 = vpop.f32.mrf.mxu0
      %1172 = vmatprep.mubr.f32.mxu0 0.0
      %1173 = vmatmul.mubr.f32.gmra.mxu0 %v1004
      %v1174 = vpop.f32.mrf.mxu0
      %v1175 = vadd.f32 0.0, %v1174
      %v1176 = vpop.f32.mrf.mxu0
      %1177 = vmatprep.mubr.f32.mxu0 0.0
      %1178 = vmatmul.mubr.f32.gmra.mxu0 %v1007
      %v1179 = vpop.f32.mrf.mxu0
      %v1180 = vadd.f32 0.0, %v1179
      %v1181 = vpop.f32.mrf.mxu0
      %1182 = vmatprep.mubr.f32.mxu0 0.0
      %1183 = vmatmul.mubr.f32.gmra.mxu0 %v1010
      %v1184 = vpop.f32.mrf.mxu0
      %v1185 = vadd.f32 0.0, %v1184
      %v1186 = vpop.f32.mrf.mxu0
      %1187 = vmatprep.mubr.f32.mxu0 0.0
      %1188 = vmatmul.mubr.f32.gmra.mxu0 %v1013
      %v1189 = vpop.f32.mrf.mxu0
      %v1190 = vadd.f32 0.0, %v1189
      %v1191 = vpop.f32.mrf.mxu0
      %1192 = vmatprep.mubr.f32.mxu0 0.0
      %1193 = vmatmul.mubr.f32.gmra.mxu0 %v1016
      %v1194 = vpop.f32.mrf.mxu0
      %v1195 = vadd.f32 0.0, %v1194
      %v1196 = vpop.f32.mrf.mxu0
      %1197 = vmatprep.mubr.f32.mxu0 0.0
      %1198 = vmatmul.mubr.f32.gmra.mxu0 %v1019
      %v1199 = vpop.f32.mrf.mxu0
      %v1200 = vadd.f32 0.0, %v1199
      %v1201 = vpop.f32.mrf.mxu0
      %1202 = vmatprep.mubr.f32.mxu0 0.0
      %1203 = vmatmul.mubr.f32.gmra.mxu0 %v1022
      %v1204 = vpop.f32.mrf.mxu0
      %v1205 = vadd.f32 0.0, %v1204
      %v1206 = vpop.f32.mrf.mxu0
      %1207 = vmatprep.mubr.f32.mxu0 0.0
      %1208 = vmatmul.mubr.f32.gmra.mxu0 %v1025
      %v1209 = vpop.f32.mrf.mxu0
      %v1210 = vadd.f32 0.0, %v1209
      %v1211 = vpop.f32.mrf.mxu0
      %1212 = vmatprep.mubr.f32.mxu0 0.0
      %1213 = vmatmul.mubr.f32.gmra.mxu0 %v1028
      %v1214 = vpop.f32.mrf.mxu0
      %v1215 = vadd.f32 0.0, %v1214
      %v1216 = vpop.f32.mrf.mxu0
      %1217 = vmatprep.mubr.f32.mxu0 0.0
      %1218 = vmatmul.mubr.f32.gmra.mxu0 %v1031
      %v1219 = vpop.f32.mrf.mxu0
      %v1220 = vadd.f32 0.0, %v1219
      %v1221 = vpop.f32.mrf.mxu0
      %1222 = vmatprep.mubr.f32.mxu0 0.0
      %1223 = vmatmul.mubr.f32.gmra.mxu0 %v1034
      %v1224 = vpop.f32.mrf.mxu0
      %v1225 = vadd.f32 0.0, %v1224
      %v1226 = vpop.f32.mrf.mxu0
      %1227 = vmatprep.mubr.f32.mxu0 0.0
      %1228 = vmatmul.mubr.f32.gmra.mxu0 %v1037
      %v1229 = vpop.f32.mrf.mxu0
      %v1230 = vadd.f32 0.0, %v1229
      %v1231 = vpop.f32.mrf.mxu0
      %1232 = vmatprep.mubr.f32.mxu0 0.0
      %1233 = vmatmul.mubr.f32.gmra.mxu0 %v1040
      %v1234 = vpop.f32.mrf.mxu0
      %v1235 = vadd.f32 0.0, %v1234
      %v1236 = vpop.f32.mrf.mxu0
      %1237 = vmatprep.mubr.f32.mxu0 0.0
      %1238 = vmatmul.mubr.f32.gmra.mxu0 %v1043
      %v1239 = vpop.f32.mrf.mxu0
      %v1240 = vadd.f32 0.0, %v1239
      %v1241 = vpop.f32.mrf.mxu0
      %1242 = vmatprep.mubr.f32.mxu0 0.0
      %1243 = vmatmul.mubr.f32.gmra.mxu0 %v1046
      %v1244 = vpop.f32.mrf.mxu0
      %v1245 = vadd.f32 0.0, %v1244
      %v1246 = vpop.f32.mrf.mxu0
      %1247 = vmatprep.mubr.f32.mxu0 0.0
      %1248 = vmatmul.mubr.f32.gmra.mxu0 %v1049
      %v1249 = vpop.f32.mrf.mxu0
      %v1250 = vadd.f32 0.0, %v1249
      %v1251 = vpop.f32.mrf.mxu0
      %1252 = vmatprep.mubr.f32.mxu0 0.0
      %1253 = vmatmul.mubr.f32.gmra.mxu0 %v1052
      %v1254 = vpop.f32.mrf.mxu0
      %v1255 = vadd.f32 0.0, %v1254
      %v1256 = vpop.f32.mrf.mxu0
      %1257 = vmatprep.mubr.f32.mxu0 0.0
      %1258 = vmatmul.mubr.f32.gmra.mxu0 %v1055
      %v1259 = vpop.f32.mrf.mxu0
      %v1260 = vadd.f32 0.0, %v1259
      %v1261 = vpop.f32.mrf.mxu0
      %1262 = vmatprep.mubr.f32.mxu0 0.0
      %1263 = vmatmul.mubr.f32.gmra.mxu0 %v1058
      %v1264 = vpop.f32.mrf.mxu0
      %v1265 = vadd.f32 0.0, %v1264
      %v1266 = vpop.f32.mrf.mxu0
      %1267 = vmatprep.mubr.f32.mxu0 0.0
      %1268 = vmatmul.mubr.f32.gmra.mxu0 %v1061
      %v1269 = vpop.f32.mrf.mxu0
      %v1270 = vadd.f32 0.0, %v1269
      %v1271 = vpop.f32.mrf.mxu0
      %1272 = vmatprep.mubr.f32.mxu0 0.0
      %1273 = vmatmul.mubr.f32.gmra.mxu0 %v1064
      %v1274 = vpop.f32.mrf.mxu0
      %v1275 = vadd.f32 0.0, %v1274
      %v1276 = vpop.f32.mrf.mxu0
      %1277 = vmatprep.mubr.f32.mxu0 0.0
      %1278 = vmatmul.mubr.f32.gmra.mxu0 %v1067
      %v1279 = vpop.f32.mrf.mxu0
      %v1280 = vadd.f32 0.0, %v1279
      %v1281 = vpop.f32.mrf.mxu0
      %1282 = vmatprep.mubr.f32.mxu0 0.0
      %1283 = vmatmul.mubr.f32.gmra.mxu0 %v1070
      %v1284 = vpop.f32.mrf.mxu0
      %v1285 = vadd.f32 0.0, %v1284
      %v1286 = vpop.f32.mrf.mxu0
      %1287 = vmatprep.mubr.f32.mxu0 0.0
      %1288 = vmatmul.mubr.f32.gmra.mxu0 %v1073
      %v1289 = vpop.f32.mrf.mxu0
      %v1290 = vadd.f32 0.0, %v1289
      %v1291 = vpop.f32.mrf.mxu0
      %1292 = vmatprep.mubr.f32.mxu0 0.0
      %1293 = vmatmul.mubr.f32.gmra.mxu0 %v1076
      %v1294 = vpop.f32.mrf.mxu0
      %v1295 = vadd.f32 0.0, %v1294
      %v1296 = vpop.f32.mrf.mxu0
      %1297 = vmatprep.mubr.f32.mxu0 0.0
      %1298 = vmatmul.mubr.f32.gmra.mxu0 %v1079
      %v1299 = vpop.f32.mrf.mxu0
      %v1300 = vadd.f32 0.0, %v1299
      %v1301 = vpop.f32.mrf.mxu0
      %1302 = vmatprep.mubr.f32.mxu0 0.0
      %1303 = vmatmul.mubr.f32.gmra.mxu0 %v1082
      %v1304 = vpop.f32.mrf.mxu0
      %v1305 = vadd.f32 0.0, %v1304
      %v1306 = vpop.f32.mrf.mxu0
      %1307 = vmatprep.mubr.f32.mxu0 0.0
      %1308 = vmatmul.mubr.f32.gmra.mxu0 %v1085
      %v1309 = vpop.f32.mrf.mxu0
      %v1310 = vadd.f32 0.0, %v1309
      %v1311 = vpop.f32.mrf.mxu0
      %1312 = vmatprep.mubr.f32.mxu0 0.0
      %1313 = vmatmul.mubr.f32.gmra.mxu0 %v1088
      %v1314 = vpop.f32.mrf.mxu0
      %v1315 = vadd.f32 0.0, %v1314
      %v1316 = vpop.f32.mrf.mxu0
      %1317 = vdwg.mxu0
      %v1318 = vadd.f32 %v802, %v1160
      %v1319 = vadd.f32 %v807, %v1165
      %v1320 = vadd.f32 %v812, %v1170
      %v1321 = vadd.f32 %v817, %v1175
      %v1322 = vadd.f32 %v822, %v1180
      %v1323 = vadd.f32 %v827, %v1185
      %v1324 = vadd.f32 %v832, %v1190
      %v1325 = vadd.f32 %v837, %v1195
      %v1326 = vadd.f32 %v842, %v1200
      %v1327 = vadd.f32 %v847, %v1205
      %v1328 = vadd.f32 %v852, %v1210
      %v1329 = vadd.f32 %v857, %v1215
      %v1330 = vadd.f32 %v862, %v1220
      %v1331 = vadd.f32 %v867, %v1225
      %v1332 = vadd.f32 %v872, %v1230
      %v1333 = vadd.f32 %v877, %v1235
      %v1334 = vadd.f32 %v882, %v1240
      %v1335 = vadd.f32 %v887, %v1245
      %v1336 = vadd.f32 %v892, %v1250
      %v1337 = vadd.f32 %v897, %v1255
      %v1338 = vadd.f32 %v902, %v1260
      %v1339 = vadd.f32 %v907, %v1265
      %v1340 = vadd.f32 %v912, %v1270
      %v1341 = vadd.f32 %v917, %v1275
      %v1342 = vadd.f32 %v922, %v1280
      %v1343 = vadd.f32 %v927, %v1285
      %v1344 = vadd.f32 %v932, %v1290
      %v1345 = vadd.f32 %v937, %v1295
      %v1346 = vadd.f32 %v942, %v1300
      %v1347 = vadd.f32 %v947, %v1305
      %v1348 = vadd.f32 %v952, %v1310
      %v1349 = vadd.f32 %v957, %v1315
      %s1350 = sadd.s32 %s240, 1
      %s1351 = smul.u32 %s1350, 24
      %s1352 = scalar_lea.vmem %s219, %s1351
      %v1353 = vld [vmem:[%s1352] sm:$0xff]
      %v1354 = vld [vmem:[%s1352 + $0x8] sm:$0xff]
      %v1355 = vld [vmem:[%s1352 + $0x18] sm:$0xff]
      %v1356 = vld [vmem:[%s1352 + $0x20] sm:$0xff]
      %v1357 = vld [vmem:[%s1352 + $0x30] sm:$0xff]
      %v1358 = vld [vmem:[%s1352 + $0x38] sm:$0xff]
      %v1359 = vld [vmem:[%s1352 + $0x48] sm:$0xff]
      %v1360 = vld [vmem:[%s1352 + $0x50] sm:$0xff]
      %v1361 = vld [vmem:[%s1352 + $0x60] sm:$0xff]
      %v1362 = vld [vmem:[%s1352 + $0x68] sm:$0xff]
      %v1363 = vld [vmem:[%s1352 + $0x78] sm:$0xff]
      %v1364 = vld [vmem:[%s1352 + $0x80] sm:$0xff]
      %v1365 = vld [vmem:[%s1352 + $0x90] sm:$0xff]
      %v1366 = vld [vmem:[%s1352 + $0x98] sm:$0xff]
      %v1367 = vld [vmem:[%s1352 + $0xa8] sm:$0xff]
      %v1368 = vld [vmem:[%s1352 + $0xb0] sm:$0xff]
      %v1369 = vld [vmem:[%s1352 + $0xc0] sm:$0xff]
      %v1370 = vld [vmem:[%s1352 + $0xc8] sm:$0xff]
      %v1371 = vld [vmem:[%s1352 + $0xd8] sm:$0xff]
      %v1372 = vld [vmem:[%s1352 + $0xe0] sm:$0xff]
      %v1373 = vld [vmem:[%s1352 + $0xf0] sm:$0xff]
      %v1374 = vld [vmem:[%s1352 + $0xf8] sm:$0xff]
      %v1375 = vld [vmem:[%s1352 + $0x108] sm:$0xff]
      %v1376 = vld [vmem:[%s1352 + $0x110] sm:$0xff]
      %v1377 = vld [vmem:[%s1352 + $0x120] sm:$0xff]
      %v1378 = vld [vmem:[%s1352 + $0x128] sm:$0xff]
      %v1379 = vld [vmem:[%s1352 + $0x138] sm:$0xff]
      %v1380 = vld [vmem:[%s1352 + $0x140] sm:$0xff]
      %v1381 = vld [vmem:[%s1352 + $0x150] sm:$0xff]
      %v1382 = vld [vmem:[%s1352 + $0x158] sm:$0xff]
      %v1383 = vld [vmem:[%s1352 + $0x168] sm:$0xff]
      %v1384 = vld [vmem:[%s1352 + $0x170] sm:$0xff]
      %s1385 = scalar_lea.vmem %s223, 12
      %v1386 = vld [vmem:[%s1385] sm:$0xf]
      %v1388 = vsel %vm310, %v1353, 0
      %v1391 = vsel %vm310, %v1354, 0
      %v1394 = vsel %vm310, %v1355, 0
      %v1397 = vsel %vm310, %v1356, 0
      %v1400 = vsel %vm310, %v1357, 0
      %v1403 = vsel %vm310, %v1358, 0
      %v1406 = vsel %vm310, %v1359, 0
      %v1409 = vsel %vm310, %v1360, 0
      %v1412 = vsel %vm310, %v1361, 0
      %v1415 = vsel %vm310, %v1362, 0
      %v1418 = vsel %vm310, %v1363, 0
      %v1421 = vsel %vm310, %v1364, 0
      %v1424 = vsel %vm310, %v1365, 0
      %v1427 = vsel %vm310, %v1366, 0
      %v1430 = vsel %vm310, %v1367, 0
      %v1433 = vsel %vm310, %v1368, 0
      %v1436 = vsel %vm310, %v1369, 0
      %v1439 = vsel %vm310, %v1370, 0
      %v1442 = vsel %vm310, %v1371, 0
      %v1445 = vsel %vm310, %v1372, 0
      %v1448 = vsel %vm310, %v1373, 0
      %v1451 = vsel %vm310, %v1374, 0
      %v1454 = vsel %vm310, %v1375, 0
      %v1457 = vsel %vm310, %v1376, 0
      %v1460 = vsel %vm310, %v1377, 0
      %v1463 = vsel %vm310, %v1378, 0
      %v1466 = vsel %vm310, %v1379, 0
      %v1469 = vsel %vm310, %v1380, 0
      %v1472 = vsel %vm310, %v1381, 0
      %v1475 = vsel %vm310, %v1382, 0
      %v1478 = vsel %vm310, %v1383, 0
      %v1481 = vsel %vm310, %v1384, 0
      %v1484 = vsel %vm407, %v1386, 0
      %1486 = vmatprep.subr.mxu0 0.0
      %1487 = vmatpush1.msra.mxu0 0.0
      %1488 = vmatprep.subr.mxu0 0.0
      %1489 = vmatpush1.msra.mxu0 0.0
      %1490 = vmatprep.subr.mxu0 0.0
      %1491 = vmatpush1.msra.mxu0 0.0
      %1492 = vmatprep.subr.mxu0 0.0
      %1493 = vmatpush1.msra.mxu0 0.0
      %1494 = vmatprep.subr.mxu0 0.0
      %1495 = vmatpush1.msra.mxu0 0.0
      %1496 = vmatprep.subr.mxu0 0.0
      %1497 = vmatpush1.msra.mxu0 0.0
      %1498 = vmatprep.subr.mxu0 0.0
      %1499 = vmatpush1.msra.mxu0 0.0
      %1500 = vmatprep.subr.mxu0 0.0
      %1501 = vmatpush1.msra.mxu0 0.0
      %1502 = vmatprep.subr.mxu0 0.0
      %1503 = vmatpush1.msra.mxu0 0.0
      %1504 = vmatprep.subr.mxu0 0.0
      %1505 = vmatpush1.msra.mxu0 0.0
      %1506 = vmatprep.subr.mxu0 0.0
      %1507 = vmatpush1.msra.mxu0 0.0
      %1508 = vmatprep.subr.mxu0 0.0
      %1509 = vmatpush1.msra.mxu0 0.0
      %1510 = vmatprep.subr.mxu0 0.0
      %1511 = vmatpush1.msra.mxu0 0.0
      %1512 = vmatprep.subr.mxu0 0.0
      %1513 = vmatpush1.msra.mxu0 0.0
      %1514 = vmatprep.subr.mxu0 0.0
      %1515 = vmatpush1.msra.mxu0 0.0
      %1516 = vmatprep.subr.mxu0 0.0
      %1517 = vmatpush1.msra.mxu0 %v1484
      %1518 = vmatprep.subr.mxu0 0.0
      %1519 = vmatpush2.msra.mxu0 0.0
      %1520 = vmatprep.subr.mxu0 0.0
      %1521 = vmatpush2.msra.mxu0 0.0
      %1522 = vmatprep.subr.mxu0 0.0
      %1523 = vmatpush2.msra.mxu0 0.0
      %1524 = vmatprep.subr.mxu0 0.0
      %1525 = vmatpush2.msra.mxu0 0.0
      %1526 = vmatprep.subr.mxu0 0.0
      %1527 = vmatpush2.msra.mxu0 0.0
      %1528 = vmatprep.subr.mxu0 0.0
      %1529 = vmatpush2.msra.mxu0 0.0
      %1530 = vmatprep.subr.mxu0 0.0
      %1531 = vmatpush2.msra.mxu0 0.0
      %1532 = vmatprep.subr.mxu0 0.0
      %1533 = vmatpush2.msra.mxu0 0.0
      %1534 = vmatprep.subr.mxu0 0.0
      %1535 = vmatpush2.msra.mxu0 0.0
      %1536 = vmatprep.subr.mxu0 0.0
      %1537 = vmatpush2.msra.mxu0 0.0
      %1538 = vmatprep.subr.mxu0 0.0
      %1539 = vmatpush2.msra.mxu0 0.0
      %1540 = vmatprep.subr.mxu0 0.0
      %1541 = vmatpush2.msra.mxu0 0.0
      %1542 = vmatprep.subr.mxu0 0.0
      %1543 = vmatpush2.msra.mxu0 0.0
      %1544 = vmatprep.subr.mxu0 0.0
      %1545 = vmatpush2.msra.mxu0 0.0
      %1546 = vmatprep.subr.mxu0 0.0
      %1547 = vmatpush2.msra.mxu0 0.0
      %1548 = vmatprep.subr.mxu0 0.0
      %1549 = vmatpush2.msra.mxu0 0.0
      %1550 = vmatprep.mubr.f32.mxu0 0.0
      %1551 = vmatmul.mubr.f32.gmra.mxu0 %v1388
      %v1552 = vpop.f32.mrf.mxu0
      %v1553 = vadd.f32 0.0, %v1552
      %v1554 = vpop.f32.mrf.mxu0
      %1555 = vmatprep.mubr.f32.mxu0 0.0
      %1556 = vmatmul.mubr.f32.gmra.mxu0 %v1391
      %v1557 = vpop.f32.mrf.mxu0
      %v1558 = vadd.f32 0.0, %v1557
      %v1559 = vpop.f32.mrf.mxu0
      %1560 = vmatprep.mubr.f32.mxu0 0.0
      %1561 = vmatmul.mubr.f32.gmra.mxu0 %v1394
      %v1562 = vpop.f32.mrf.mxu0
      %v1563 = vadd.f32 0.0, %v1562
      %v1564 = vpop.f32.mrf.mxu0
      %1565 = vmatprep.mubr.f32.mxu0 0.0
      %1566 = vmatmul.mubr.f32.gmra.mxu0 %v1397
      %v1567 = vpop.f32.mrf.mxu0
      %v1568 = vadd.f32 0.0, %v1567
      %v1569 = vpop.f32.mrf.mxu0
      %1570 = vmatprep.mubr.f32.mxu0 0.0
      %1571 = vmatmul.mubr.f32.gmra.mxu0 %v1400
      %v1572 = vpop.f32.mrf.mxu0
      %v1573 = vadd.f32 0.0, %v1572
      %v1574 = vpop.f32.mrf.mxu0
      %1575 = vmatprep.mubr.f32.mxu0 0.0
      %1576 = vmatmul.mubr.f32.gmra.mxu0 %v1403
      %v1577 = vpop.f32.mrf.mxu0
      %v1578 = vadd.f32 0.0, %v1577
      %v1579 = vpop.f32.mrf.mxu0
      %1580 = vmatprep.mubr.f32.mxu0 0.0
      %1581 = vmatmul.mubr.f32.gmra.mxu0 %v1406
      %v1582 = vpop.f32.mrf.mxu0
      %v1583 = vadd.f32 0.0, %v1582
      %v1584 = vpop.f32.mrf.mxu0
      %1585 = vmatprep.mubr.f32.mxu0 0.0
      %1586 = vmatmul.mubr.f32.gmra.mxu0 %v1409
      %v1587 = vpop.f32.mrf.mxu0
      %v1588 = vadd.f32 0.0, %v1587
      %v1589 = vpop.f32.mrf.mxu0
      %1590 = vmatprep.mubr.f32.mxu0 0.0
      %1591 = vmatmul.mubr.f32.gmra.mxu0 %v1412
      %v1592 = vpop.f32.mrf.mxu0
      %v1593 = vadd.f32 0.0, %v1592
      %v1594 = vpop.f32.mrf.mxu0
      %1595 = vmatprep.mubr.f32.mxu0 0.0
      %1596 = vmatmul.mubr.f32.gmra.mxu0 %v1415
      %v1597 = vpop.f32.mrf.mxu0
      %v1598 = vadd.f32 0.0, %v1597
      %v1599 = vpop.f32.mrf.mxu0
      %1600 = vmatprep.mubr.f32.mxu0 0.0
      %1601 = vmatmul.mubr.f32.gmra.mxu0 %v1418
      %v1602 = vpop.f32.mrf.mxu0
      %v1603 = vadd.f32 0.0, %v1602
      %v1604 = vpop.f32.mrf.mxu0
      %1605 = vmatprep.mubr.f32.mxu0 0.0
      %1606 = vmatmul.mubr.f32.gmra.mxu0 %v1421
      %v1607 = vpop.f32.mrf.mxu0
      %v1608 = vadd.f32 0.0, %v1607
      %v1609 = vpop.f32.mrf.mxu0
      %1610 = vmatprep.mubr.f32.mxu0 0.0
      %1611 = vmatmul.mubr.f32.gmra.mxu0 %v1424
      %v1612 = vpop.f32.mrf.mxu0
      %v1613 = vadd.f32 0.0, %v1612
      %v1614 = vpop.f32.mrf.mxu0
      %1615 = vmatprep.mubr.f32.mxu0 0.0
      %1616 = vmatmul.mubr.f32.gmra.mxu0 %v1427
      %v1617 = vpop.f32.mrf.mxu0
      %v1618 = vadd.f32 0.0, %v1617
      %v1619 = vpop.f32.mrf.mxu0
      %1620 = vmatprep.mubr.f32.mxu0 0.0
      %1621 = vmatmul.mubr.f32.gmra.mxu0 %v1430
      %v1622 = vpop.f32.mrf.mxu0
      %v1623 = vadd.f32 0.0, %v1622
      %v1624 = vpop.f32.mrf.mxu0
      %1625 = vmatprep.mubr.f32.mxu0 0.0
      %1626 = vmatmul.mubr.f32.gmra.mxu0 %v1433
      %v1627 = vpop.f32.mrf.mxu0
      %v1628 = vadd.f32 0.0, %v1627
      %v1629 = vpop.f32.mrf.mxu0
      %1630 = vmatprep.mubr.f32.mxu0 0.0
      %1631 = vmatmul.mubr.f32.gmra.mxu0 %v1436
      %v1632 = vpop.f32.mrf.mxu0
      %v1633 = vadd.f32 0.0, %v1632
      %v1634 = vpop.f32.mrf.mxu0
      %1635 = vmatprep.mubr.f32.mxu0 0.0
      %1636 = vmatmul.mubr.f32.gmra.mxu0 %v1439
      %v1637 = vpop.f32.mrf.mxu0
      %v1638 = vadd.f32 0.0, %v1637
      %v1639 = vpop.f32.mrf.mxu0
      %1640 = vmatprep.mubr.f32.mxu0 0.0
      %1641 = vmatmul.mubr.f32.gmra.mxu0 %v1442
      %v1642 = vpop.f32.mrf.mxu0
      %v1643 = vadd.f32 0.0, %v1642
      %v1644 = vpop.f32.mrf.mxu0
      %1645 = vmatprep.mubr.f32.mxu0 0.0
      %1646 = vmatmul.mubr.f32.gmra.mxu0 %v1445
      %v1647 = vpop.f32.mrf.mxu0
      %v1648 = vadd.f32 0.0, %v1647
      %v1649 = vpop.f32.mrf.mxu0
      %1650 = vmatprep.mubr.f32.mxu0 0.0
      %1651 = vmatmul.mubr.f32.gmra.mxu0 %v1448
      %v1652 = vpop.f32.mrf.mxu0
      %v1653 = vadd.f32 0.0, %v1652
      %v1654 = vpop.f32.mrf.mxu0
      %1655 = vmatprep.mubr.f32.mxu0 0.0
      %1656 = vmatmul.mubr.f32.gmra.mxu0 %v1451
      %v1657 = vpop.f32.mrf.mxu0
      %v1658 = vadd.f32 0.0, %v1657
      %v1659 = vpop.f32.mrf.mxu0
      %1660 = vmatprep.mubr.f32.mxu0 0.0
      %1661 = vmatmul.mubr.f32.gmra.mxu0 %v1454
      %v1662 = vpop.f32.mrf.mxu0
      %v1663 = vadd.f32 0.0, %v1662
      %v1664 = vpop.f32.mrf.mxu0
      %1665 = vmatprep.mubr.f32.mxu0 0.0
      %1666 = vmatmul.mubr.f32.gmra.mxu0 %v1457
      %v1667 = vpop.f32.mrf.mxu0
      %v1668 = vadd.f32 0.0, %v1667
      %v1669 = vpop.f32.mrf.mxu0
      %1670 = vmatprep.mubr.f32.mxu0 0.0
      %1671 = vmatmul.mubr.f32.gmra.mxu0 %v1460
      %v1672 = vpop.f32.mrf.mxu0
      %v1673 = vadd.f32 0.0, %v1672
      %v1674 = vpop.f32.mrf.mxu0
      %1675 = vmatprep.mubr.f32.mxu0 0.0
      %1676 = vmatmul.mubr.f32.gmra.mxu0 %v1463
      %v1677 = vpop.f32.mrf.mxu0
      %v1678 = vadd.f32 0.0, %v1677
      %v1679 = vpop.f32.mrf.mxu0
      %1680 = vmatprep.mubr.f32.mxu0 0.0
      %1681 = vmatmul.mubr.f32.gmra.mxu0 %v1466
      %v1682 = vpop.f32.mrf.mxu0
      %v1683 = vadd.f32 0.0, %v1682
      %v1684 = vpop.f32.mrf.mxu0
      %1685 = vmatprep.mubr.f32.mxu0 0.0
      %1686 = vmatmul.mubr.f32.gmra.mxu0 %v1469
      %v1687 = vpop.f32.mrf.mxu0
      %v1688 = vadd.f32 0.0, %v1687
      %v1689 = vpop.f32.mrf.mxu0
      %1690 = vmatprep.mubr.f32.mxu0 0.0
      %1691 = vmatmul.mubr.f32.gmra.mxu0 %v1472
      %v1692 = vpop.f32.mrf.mxu0
      %v1693 = vadd.f32 0.0, %v1692
      %v1694 = vpop.f32.mrf.mxu0
      %1695 = vmatprep.mubr.f32.mxu0 0.0
      %1696 = vmatmul.mubr.f32.gmra.mxu0 %v1475
      %v1697 = vpop.f32.mrf.mxu0
      %v1698 = vadd.f32 0.0, %v1697
      %v1699 = vpop.f32.mrf.mxu0
      %1700 = vmatprep.mubr.f32.mxu0 0.0
      %1701 = vmatmul.mubr.f32.gmra.mxu0 %v1478
      %v1702 = vpop.f32.mrf.mxu0
      %v1703 = vadd.f32 0.0, %v1702
      %v1704 = vpop.f32.mrf.mxu0
      %1705 = vmatprep.mubr.f32.mxu0 0.0
      %1706 = vmatmul.mubr.f32.gmra.mxu0 %v1481
      %v1707 = vpop.f32.mrf.mxu0
      %v1708 = vadd.f32 0.0, %v1707
      %v1709 = vpop.f32.mrf.mxu0
      %1710 = vdwg.mxu0
      %v1711 = vadd.f32 %v1318, %v1553
      %v1712 = vadd.f32 %v1319, %v1558
      %v1713 = vadd.f32 %v1320, %v1563
      %v1714 = vadd.f32 %v1321, %v1568
      %v1715 = vadd.f32 %v1322, %v1573
      %v1716 = vadd.f32 %v1323, %v1578
      %v1717 = vadd.f32 %v1324, %v1583
      %v1718 = vadd.f32 %v1325, %v1588
      %v1719 = vadd.f32 %v1326, %v1593
      %v1720 = vadd.f32 %v1327, %v1598
      %v1721 = vadd.f32 %v1328, %v1603
      %v1722 = vadd.f32 %v1329, %v1608
      %v1723 = vadd.f32 %v1330, %v1613
      %v1724 = vadd.f32 %v1331, %v1618
      %v1725 = vadd.f32 %v1332, %v1623
      %v1726 = vadd.f32 %v1333, %v1628
      %v1727 = vadd.f32 %v1334, %v1633
      %v1728 = vadd.f32 %v1335, %v1638
      %v1729 = vadd.f32 %v1336, %v1643
      %v1730 = vadd.f32 %v1337, %v1648
      %v1731 = vadd.f32 %v1338, %v1653
      %v1732 = vadd.f32 %v1339, %v1658
      %v1733 = vadd.f32 %v1340, %v1663
      %v1734 = vadd.f32 %v1341, %v1668
      %v1735 = vadd.f32 %v1342, %v1673
      %v1736 = vadd.f32 %v1343, %v1678
      %v1737 = vadd.f32 %v1344, %v1683
      %v1738 = vadd.f32 %v1345, %v1688
      %v1739 = vadd.f32 %v1346, %v1693
      %v1740 = vadd.f32 %v1347, %v1698
      %v1741 = vadd.f32 %v1348, %v1703
      %v1742 = vadd.f32 %v1349, %v1708
      %v1743 = vld [vmem:[%s1352 + $0x1] sm:$0xff]
      %v1744 = vld [vmem:[%s1352 + $0x9] sm:$0xff]
      %v1745 = vld [vmem:[%s1352 + $0x19] sm:$0xff]
      %v1746 = vld [vmem:[%s1352 + $0x21] sm:$0xff]
      %v1747 = vld [vmem:[%s1352 + $0x31] sm:$0xff]
      %v1748 = vld [vmem:[%s1352 + $0x39] sm:$0xff]
      %v1749 = vld [vmem:[%s1352 + $0x49] sm:$0xff]
      %v1750 = vld [vmem:[%s1352 + $0x51] sm:$0xff]
      %v1751 = vld [vmem:[%s1352 + $0x61] sm:$0xff]
      %v1752 = vld [vmem:[%s1352 + $0x69] sm:$0xff]
      %v1753 = vld [vmem:[%s1352 + $0x79] sm:$0xff]
      %v1754 = vld [vmem:[%s1352 + $0x81] sm:$0xff]
      %v1755 = vld [vmem:[%s1352 + $0x91] sm:$0xff]
      %v1756 = vld [vmem:[%s1352 + $0x99] sm:$0xff]
      %v1757 = vld [vmem:[%s1352 + $0xa9] sm:$0xff]
      %v1758 = vld [vmem:[%s1352 + $0xb1] sm:$0xff]
      %v1759 = vld [vmem:[%s1352 + $0xc1] sm:$0xff]
      %v1760 = vld [vmem:[%s1352 + $0xc9] sm:$0xff]
      %v1761 = vld [vmem:[%s1352 + $0xd9] sm:$0xff]
      %v1762 = vld [vmem:[%s1352 + $0xe1] sm:$0xff]
      %v1763 = vld [vmem:[%s1352 + $0xf1] sm:$0xff]
      %v1764 = vld [vmem:[%s1352 + $0xf9] sm:$0xff]
      %v1765 = vld [vmem:[%s1352 + $0x109] sm:$0xff]
      %v1766 = vld [vmem:[%s1352 + $0x111] sm:$0xff]
      %v1767 = vld [vmem:[%s1352 + $0x121] sm:$0xff]
      %v1768 = vld [vmem:[%s1352 + $0x129] sm:$0xff]
      %v1769 = vld [vmem:[%s1352 + $0x139] sm:$0xff]
      %v1770 = vld [vmem:[%s1352 + $0x141] sm:$0xff]
      %v1771 = vld [vmem:[%s1352 + $0x151] sm:$0xff]
      %v1772 = vld [vmem:[%s1352 + $0x159] sm:$0xff]
      %v1773 = vld [vmem:[%s1352 + $0x169] sm:$0xff]
      %v1774 = vld [vmem:[%s1352 + $0x171] sm:$0xff]
      %s1775 = scalar_lea.vmem %s223, 16
      %v1776 = vld [vmem:[%s1775] sm:$0xf]
      %v1778 = vsel %vm310, %v1743, 0
      %v1781 = vsel %vm310, %v1744, 0
      %v1784 = vsel %vm310, %v1745, 0
      %v1787 = vsel %vm310, %v1746, 0
      %v1790 = vsel %vm310, %v1747, 0
      %v1793 = vsel %vm310, %v1748, 0
      %v1796 = vsel %vm310, %v1749, 0
      %v1799 = vsel %vm310, %v1750, 0
      %v1802 = vsel %vm310, %v1751, 0
      %v1805 = vsel %vm310, %v1752, 0
      %v1808 = vsel %vm310, %v1753, 0
      %v1811 = vsel %vm310, %v1754, 0
      %v1814 = vsel %vm310, %v1755, 0
      %v1817 = vsel %vm310, %v1756, 0
      %v1820 = vsel %vm310, %v1757, 0
      %v1823 = vsel %vm310, %v1758, 0
      %v1826 = vsel %vm310, %v1759, 0
      %v1829 = vsel %vm310, %v1760, 0
      %v1832 = vsel %vm310, %v1761, 0
      %v1835 = vsel %vm310, %v1762, 0
      %v1838 = vsel %vm310, %v1763, 0
      %v1841 = vsel %vm310, %v1764, 0
      %v1844 = vsel %vm310, %v1765, 0
      %v1847 = vsel %vm310, %v1766, 0
      %v1850 = vsel %vm310, %v1767, 0
      %v1853 = vsel %vm310, %v1768, 0
      %v1856 = vsel %vm310, %v1769, 0
      %v1859 = vsel %vm310, %v1770, 0
      %v1862 = vsel %vm310, %v1771, 0
      %v1865 = vsel %vm310, %v1772, 0
      %v1868 = vsel %vm310, %v1773, 0
      %v1871 = vsel %vm310, %v1774, 0
      %v1874 = vsel %vm407, %v1776, 0
      %1876 = vmatprep.subr.mxu0 0.0
      %1877 = vmatpush1.msra.mxu0 0.0
      %1878 = vmatprep.subr.mxu0 0.0
      %1879 = vmatpush1.msra.mxu0 0.0
      %1880 = vmatprep.subr.mxu0 0.0
      %1881 = vmatpush1.msra.mxu0 0.0
      %1882 = vmatprep.subr.mxu0 0.0
      %1883 = vmatpush1.msra.mxu0 0.0
      %1884 = vmatprep.subr.mxu0 0.0
      %1885 = vmatpush1.msra.mxu0 0.0
      %1886 = vmatprep.subr.mxu0 0.0
      %1887 = vmatpush1.msra.mxu0 0.0
      %1888 = vmatprep.subr.mxu0 0.0
      %1889 = vmatpush1.msra.mxu0 0.0
      %1890 = vmatprep.subr.mxu0 0.0
      %1891 = vmatpush1.msra.mxu0 0.0
      %1892 = vmatprep.subr.mxu0 0.0
      %1893 = vmatpush1.msra.mxu0 0.0
      %1894 = vmatprep.subr.mxu0 0.0
      %1895 = vmatpush1.msra.mxu0 0.0
      %1896 = vmatprep.subr.mxu0 0.0
      %1897 = vmatpush1.msra.mxu0 0.0
      %1898 = vmatprep.subr.mxu0 0.0
      %1899 = vmatpush1.msra.mxu0 0.0
      %1900 = vmatprep.subr.mxu0 0.0
      %1901 = vmatpush1.msra.mxu0 0.0
      %1902 = vmatprep.subr.mxu0 0.0
      %1903 = vmatpush1.msra.mxu0 0.0
      %1904 = vmatprep.subr.mxu0 0.0
      %1905 = vmatpush1.msra.mxu0 0.0
      %1906 = vmatprep.subr.mxu0 0.0
      %1907 = vmatpush1.msra.mxu0 %v1874
      %1908 = vmatprep.subr.mxu0 0.0
      %1909 = vmatpush2.msra.mxu0 0.0
      %1910 = vmatprep.subr.mxu0 0.0
      %1911 = vmatpush2.msra.mxu0 0.0
      %1912 = vmatprep.subr.mxu0 0.0
      %1913 = vmatpush2.msra.mxu0 0.0
      %1914 = vmatprep.subr.mxu0 0.0
      %1915 = vmatpush2.msra.mxu0 0.0
      %1916 = vmatprep.subr.mxu0 0.0
      %1917 = vmatpush2.msra.mxu0 0.0
      %1918 = vmatprep.subr.mxu0 0.0
      %1919 = vmatpush2.msra.mxu0 0.0
      %1920 = vmatprep.subr.mxu0 0.0
      %1921 = vmatpush2.msra.mxu0 0.0
      %1922 = vmatprep.subr.mxu0 0.0
      %1923 = vmatpush2.msra.mxu0 0.0
      %1924 = vmatprep.subr.mxu0 0.0
      %1925 = vmatpush2.msra.mxu0 0.0
      %1926 = vmatprep.subr.mxu0 0.0
      %1927 = vmatpush2.msra.mxu0 0.0
      %1928 = vmatprep.subr.mxu0 0.0
      %1929 = vmatpush2.msra.mxu0 0.0
      %1930 = vmatprep.subr.mxu0 0.0
      %1931 = vmatpush2.msra.mxu0 0.0
      %1932 = vmatprep.subr.mxu0 0.0
      %1933 = vmatpush2.msra.mxu0 0.0
      %1934 = vmatprep.subr.mxu0 0.0
      %1935 = vmatpush2.msra.mxu0 0.0
      %1936 = vmatprep.subr.mxu0 0.0
      %1937 = vmatpush2.msra.mxu0 0.0
      %1938 = vmatprep.subr.mxu0 0.0
      %1939 = vmatpush2.msra.mxu0 0.0
      %1940 = vmatprep.mubr.f32.mxu0 0.0
      %1941 = vmatmul.mubr.f32.gmra.mxu0 %v1778
      %v1942 = vpop.f32.mrf.mxu0
      %v1943 = vadd.f32 0.0, %v1942
      %v1944 = vpop.f32.mrf.mxu0
      %1945 = vmatprep.mubr.f32.mxu0 0.0
      %1946 = vmatmul.mubr.f32.gmra.mxu0 %v1781
      %v1947 = vpop.f32.mrf.mxu0
      %v1948 = vadd.f32 0.0, %v1947
      %v1949 = vpop.f32.mrf.mxu0
      %1950 = vmatprep.mubr.f32.mxu0 0.0
      %1951 = vmatmul.mubr.f32.gmra.mxu0 %v1784
      %v1952 = vpop.f32.mrf.mxu0
      %v1953 = vadd.f32 0.0, %v1952
      %v1954 = vpop.f32.mrf.mxu0
      %1955 = vmatprep.mubr.f32.mxu0 0.0
      %1956 = vmatmul.mubr.f32.gmra.mxu0 %v1787
      %v1957 = vpop.f32.mrf.mxu0
      %v1958 = vadd.f32 0.0, %v1957
      %v1959 = vpop.f32.mrf.mxu0
      %1960 = vmatprep.mubr.f32.mxu0 0.0
      %1961 = vmatmul.mubr.f32.gmra.mxu0 %v1790
      %v1962 = vpop.f32.mrf.mxu0
      %v1963 = vadd.f32 0.0, %v1962
      %v1964 = vpop.f32.mrf.mxu0
      %1965 = vmatprep.mubr.f32.mxu0 0.0
      %1966 = vmatmul.mubr.f32.gmra.mxu0 %v1793
      %v1967 = vpop.f32.mrf.mxu0
      %v1968 = vadd.f32 0.0, %v1967
      %v1969 = vpop.f32.mrf.mxu0
      %1970 = vmatprep.mubr.f32.mxu0 0.0
      %1971 = vmatmul.mubr.f32.gmra.mxu0 %v1796
      %v1972 = vpop.f32.mrf.mxu0
      %v1973 = vadd.f32 0.0, %v1972
      %v1974 = vpop.f32.mrf.mxu0
      %1975 = vmatprep.mubr.f32.mxu0 0.0
      %1976 = vmatmul.mubr.f32.gmra.mxu0 %v1799
      %v1977 = vpop.f32.mrf.mxu0
      %v1978 = vadd.f32 0.0, %v1977
      %v1979 = vpop.f32.mrf.mxu0
      %1980 = vmatprep.mubr.f32.mxu0 0.0
      %1981 = vmatmul.mubr.f32.gmra.mxu0 %v1802
      %v1982 = vpop.f32.mrf.mxu0
      %v1983 = vadd.f32 0.0, %v1982
      %v1984 = vpop.f32.mrf.mxu0
      %1985 = vmatprep.mubr.f32.mxu0 0.0
      %1986 = vmatmul.mubr.f32.gmra.mxu0 %v1805
      %v1987 = vpop.f32.mrf.mxu0
      %v1988 = vadd.f32 0.0, %v1987
      %v1989 = vpop.f32.mrf.mxu0
      %1990 = vmatprep.mubr.f32.mxu0 0.0
      %1991 = vmatmul.mubr.f32.gmra.mxu0 %v1808
      %v1992 = vpop.f32.mrf.mxu0
      %v1993 = vadd.f32 0.0, %v1992
      %v1994 = vpop.f32.mrf.mxu0
      %1995 = vmatprep.mubr.f32.mxu0 0.0
      %1996 = vmatmul.mubr.f32.gmra.mxu0 %v1811
      %v1997 = vpop.f32.mrf.mxu0
      %v1998 = vadd.f32 0.0, %v1997
      %v1999 = vpop.f32.mrf.mxu0
      %2000 = vmatprep.mubr.f32.mxu0 0.0
      %2001 = vmatmul.mubr.f32.gmra.mxu0 %v1814
      %v2002 = vpop.f32.mrf.mxu0
      %v2003 = vadd.f32 0.0, %v2002
      %v2004 = vpop.f32.mrf.mxu0
      %2005 = vmatprep.mubr.f32.mxu0 0.0
      %2006 = vmatmul.mubr.f32.gmra.mxu0 %v1817
      %v2007 = vpop.f32.mrf.mxu0
      %v2008 = vadd.f32 0.0, %v2007
      %v2009 = vpop.f32.mrf.mxu0
      %2010 = vmatprep.mubr.f32.mxu0 0.0
      %2011 = vmatmul.mubr.f32.gmra.mxu0 %v1820
      %v2012 = vpop.f32.mrf.mxu0
      %v2013 = vadd.f32 0.0, %v2012
      %v2014 = vpop.f32.mrf.mxu0
      %2015 = vmatprep.mubr.f32.mxu0 0.0
      %2016 = vmatmul.mubr.f32.gmra.mxu0 %v1823
      %v2017 = vpop.f32.mrf.mxu0
      %v2018 = vadd.f32 0.0, %v2017
      %v2019 = vpop.f32.mrf.mxu0
      %2020 = vmatprep.mubr.f32.mxu0 0.0
      %2021 = vmatmul.mubr.f32.gmra.mxu0 %v1826
      %v2022 = vpop.f32.mrf.mxu0
      %v2023 = vadd.f32 0.0, %v2022
      %v2024 = vpop.f32.mrf.mxu0
      %2025 = vmatprep.mubr.f32.mxu0 0.0
      %2026 = vmatmul.mubr.f32.gmra.mxu0 %v1829
      %v2027 = vpop.f32.mrf.mxu0
      %v2028 = vadd.f32 0.0, %v2027
      %v2029 = vpop.f32.mrf.mxu0
      %2030 = vmatprep.mubr.f32.mxu0 0.0
      %2031 = vmatmul.mubr.f32.gmra.mxu0 %v1832
      %v2032 = vpop.f32.mrf.mxu0
      %v2033 = vadd.f32 0.0, %v2032
      %v2034 = vpop.f32.mrf.mxu0
      %2035 = vmatprep.mubr.f32.mxu0 0.0
      %2036 = vmatmul.mubr.f32.gmra.mxu0 %v1835
      %v2037 = vpop.f32.mrf.mxu0
      %v2038 = vadd.f32 0.0, %v2037
      %v2039 = vpop.f32.mrf.mxu0
      %2040 = vmatprep.mubr.f32.mxu0 0.0
      %2041 = vmatmul.mubr.f32.gmra.mxu0 %v1838
      %v2042 = vpop.f32.mrf.mxu0
      %v2043 = vadd.f32 0.0, %v2042
      %v2044 = vpop.f32.mrf.mxu0
      %2045 = vmatprep.mubr.f32.mxu0 0.0
      %2046 = vmatmul.mubr.f32.gmra.mxu0 %v1841
      %v2047 = vpop.f32.mrf.mxu0
      %v2048 = vadd.f32 0.0, %v2047
      %v2049 = vpop.f32.mrf.mxu0
      %2050 = vmatprep.mubr.f32.mxu0 0.0
      %2051 = vmatmul.mubr.f32.gmra.mxu0 %v1844
      %v2052 = vpop.f32.mrf.mxu0
      %v2053 = vadd.f32 0.0, %v2052
      %v2054 = vpop.f32.mrf.mxu0
      %2055 = vmatprep.mubr.f32.mxu0 0.0
      %2056 = vmatmul.mubr.f32.gmra.mxu0 %v1847
      %v2057 = vpop.f32.mrf.mxu0
      %v2058 = vadd.f32 0.0, %v2057
      %v2059 = vpop.f32.mrf.mxu0
      %2060 = vmatprep.mubr.f32.mxu0 0.0
      %2061 = vmatmul.mubr.f32.gmra.mxu0 %v1850
      %v2062 = vpop.f32.mrf.mxu0
      %v2063 = vadd.f32 0.0, %v2062
      %v2064 = vpop.f32.mrf.mxu0
      %2065 = vmatprep.mubr.f32.mxu0 0.0
      %2066 = vmatmul.mubr.f32.gmra.mxu0 %v1853
      %v2067 = vpop.f32.mrf.mxu0
      %v2068 = vadd.f32 0.0, %v2067
      %v2069 = vpop.f32.mrf.mxu0
      %2070 = vmatprep.mubr.f32.mxu0 0.0
      %2071 = vmatmul.mubr.f32.gmra.mxu0 %v1856
      %v2072 = vpop.f32.mrf.mxu0
      %v2073 = vadd.f32 0.0, %v2072
      %v2074 = vpop.f32.mrf.mxu0
      %2075 = vmatprep.mubr.f32.mxu0 0.0
      %2076 = vmatmul.mubr.f32.gmra.mxu0 %v1859
      %v2077 = vpop.f32.mrf.mxu0
      %v2078 = vadd.f32 0.0, %v2077
      %v2079 = vpop.f32.mrf.mxu0
      %2080 = vmatprep.mubr.f32.mxu0 0.0
      %2081 = vmatmul.mubr.f32.gmra.mxu0 %v1862
      %v2082 = vpop.f32.mrf.mxu0
      %v2083 = vadd.f32 0.0, %v2082
      %v2084 = vpop.f32.mrf.mxu0
      %2085 = vmatprep.mubr.f32.mxu0 0.0
      %2086 = vmatmul.mubr.f32.gmra.mxu0 %v1865
      %v2087 = vpop.f32.mrf.mxu0
      %v2088 = vadd.f32 0.0, %v2087
      %v2089 = vpop.f32.mrf.mxu0
      %2090 = vmatprep.mubr.f32.mxu0 0.0
      %2091 = vmatmul.mubr.f32.gmra.mxu0 %v1868
      %v2092 = vpop.f32.mrf.mxu0
      %v2093 = vadd.f32 0.0, %v2092
      %v2094 = vpop.f32.mrf.mxu0
      %2095 = vmatprep.mubr.f32.mxu0 0.0
      %2096 = vmatmul.mubr.f32.gmra.mxu0 %v1871
      %v2097 = vpop.f32.mrf.mxu0
      %v2098 = vadd.f32 0.0, %v2097
      %v2099 = vpop.f32.mrf.mxu0
      %2100 = vdwg.mxu0
      %v2101 = vadd.f32 %v1711, %v1943
      %v2102 = vadd.f32 %v1712, %v1948
      %v2103 = vadd.f32 %v1713, %v1953
      %v2104 = vadd.f32 %v1714, %v1958
      %v2105 = vadd.f32 %v1715, %v1963
      %v2106 = vadd.f32 %v1716, %v1968
      %v2107 = vadd.f32 %v1717, %v1973
      %v2108 = vadd.f32 %v1718, %v1978
      %v2109 = vadd.f32 %v1719, %v1983
      %v2110 = vadd.f32 %v1720, %v1988
      %v2111 = vadd.f32 %v1721, %v1993
      %v2112 = vadd.f32 %v1722, %v1998
      %v2113 = vadd.f32 %v1723, %v2003
      %v2114 = vadd.f32 %v1724, %v2008
      %v2115 = vadd.f32 %v1725, %v2013
      %v2116 = vadd.f32 %v1726, %v2018
      %v2117 = vadd.f32 %v1727, %v2023
      %v2118 = vadd.f32 %v1728, %v2028
      %v2119 = vadd.f32 %v1729, %v2033
      %v2120 = vadd.f32 %v1730, %v2038
      %v2121 = vadd.f32 %v1731, %v2043
      %v2122 = vadd.f32 %v1732, %v2048
      %v2123 = vadd.f32 %v1733, %v2053
      %v2124 = vadd.f32 %v1734, %v2058
      %v2125 = vadd.f32 %v1735, %v2063
      %v2126 = vadd.f32 %v1736, %v2068
      %v2127 = vadd.f32 %v1737, %v2073
      %v2128 = vadd.f32 %v1738, %v2078
      %v2129 = vadd.f32 %v1739, %v2083
      %v2130 = vadd.f32 %v1740, %v2088
      %v2131 = vadd.f32 %v1741, %v2093
      %v2132 = vadd.f32 %v1742, %v2098
      %v2133 = vld [vmem:[%s1352 + $0x2] sm:$0xff]
      %v2134 = vld [vmem:[%s1352 + $0xa] sm:$0xff]
      %v2135 = vld [vmem:[%s1352 + $0x1a] sm:$0xff]
      %v2136 = vld [vmem:[%s1352 + $0x22] sm:$0xff]
      %v2137 = vld [vmem:[%s1352 + $0x32] sm:$0xff]
      %v2138 = vld [vmem:[%s1352 + $0x3a] sm:$0xff]
      %v2139 = vld [vmem:[%s1352 + $0x4a] sm:$0xff]
      %v2140 = vld [vmem:[%s1352 + $0x52] sm:$0xff]
      %v2141 = vld [vmem:[%s1352 + $0x62] sm:$0xff]
      %v2142 = vld [vmem:[%s1352 + $0x6a] sm:$0xff]
      %v2143 = vld [vmem:[%s1352 + $0x7a] sm:$0xff]
      %v2144 = vld [vmem:[%s1352 + $0x82] sm:$0xff]
      %v2145 = vld [vmem:[%s1352 + $0x92] sm:$0xff]
      %v2146 = vld [vmem:[%s1352 + $0x9a] sm:$0xff]
      %v2147 = vld [vmem:[%s1352 + $0xaa] sm:$0xff]
      %v2148 = vld [vmem:[%s1352 + $0xb2] sm:$0xff]
      %v2149 = vld [vmem:[%s1352 + $0xc2] sm:$0xff]
      %v2150 = vld [vmem:[%s1352 + $0xca] sm:$0xff]
      %v2151 = vld [vmem:[%s1352 + $0xda] sm:$0xff]
      %v2152 = vld [vmem:[%s1352 + $0xe2] sm:$0xff]
      %v2153 = vld [vmem:[%s1352 + $0xf2] sm:$0xff]
      %v2154 = vld [vmem:[%s1352 + $0xfa] sm:$0xff]
      %v2155 = vld [vmem:[%s1352 + $0x10a] sm:$0xff]
      %v2156 = vld [vmem:[%s1352 + $0x112] sm:$0xff]
      %v2157 = vld [vmem:[%s1352 + $0x122] sm:$0xff]
      %v2158 = vld [vmem:[%s1352 + $0x12a] sm:$0xff]
      %v2159 = vld [vmem:[%s1352 + $0x13a] sm:$0xff]
      %v2160 = vld [vmem:[%s1352 + $0x142] sm:$0xff]
      %v2161 = vld [vmem:[%s1352 + $0x152] sm:$0xff]
      %v2162 = vld [vmem:[%s1352 + $0x15a] sm:$0xff]
      %v2163 = vld [vmem:[%s1352 + $0x16a] sm:$0xff]
      %v2164 = vld [vmem:[%s1352 + $0x172] sm:$0xff]
      %s2165 = scalar_lea.vmem %s223, 20
      %v2166 = vld [vmem:[%s2165] sm:$0xf]
      %v2168 = vsel %vm310, %v2133, 0
      %v2171 = vsel %vm310, %v2134, 0
      %v2174 = vsel %vm310, %v2135, 0
      %v2177 = vsel %vm310, %v2136, 0
      %v2180 = vsel %vm310, %v2137, 0
      %v2183 = vsel %vm310, %v2138, 0
      %v2186 = vsel %vm310, %v2139, 0
      %v2189 = vsel %vm310, %v2140, 0
      %v2192 = vsel %vm310, %v2141, 0
      %v2195 = vsel %vm310, %v2142, 0
      %v2198 = vsel %vm310, %v2143, 0
      %v2201 = vsel %vm310, %v2144, 0
      %v2204 = vsel %vm310, %v2145, 0
      %v2207 = vsel %vm310, %v2146, 0
      %v2210 = vsel %vm310, %v2147, 0
      %v2213 = vsel %vm310, %v2148, 0
      %v2216 = vsel %vm310, %v2149, 0
      %v2219 = vsel %vm310, %v2150, 0
      %v2222 = vsel %vm310, %v2151, 0
      %v2225 = vsel %vm310, %v2152, 0
      %v2228 = vsel %vm310, %v2153, 0
      %v2231 = vsel %vm310, %v2154, 0
      %v2234 = vsel %vm310, %v2155, 0
      %v2237 = vsel %vm310, %v2156, 0
      %v2240 = vsel %vm310, %v2157, 0
      %v2243 = vsel %vm310, %v2158, 0
      %v2246 = vsel %vm310, %v2159, 0
      %v2249 = vsel %vm310, %v2160, 0
      %v2252 = vsel %vm310, %v2161, 0
      %v2255 = vsel %vm310, %v2162, 0
      %v2258 = vsel %vm310, %v2163, 0
      %v2261 = vsel %vm310, %v2164, 0
      %v2264 = vsel %vm407, %v2166, 0
      %2266 = vmatprep.subr.mxu0 0.0
      %2267 = vmatpush1.msra.mxu0 0.0
      %2268 = vmatprep.subr.mxu0 0.0
      %2269 = vmatpush1.msra.mxu0 0.0
      %2270 = vmatprep.subr.mxu0 0.0
      %2271 = vmatpush1.msra.mxu0 0.0
      %2272 = vmatprep.subr.mxu0 0.0
      %2273 = vmatpush1.msra.mxu0 0.0
      %2274 = vmatprep.subr.mxu0 0.0
      %2275 = vmatpush1.msra.mxu0 0.0
      %2276 = vmatprep.subr.mxu0 0.0
      %2277 = vmatpush1.msra.mxu0 0.0
      %2278 = vmatprep.subr.mxu0 0.0
      %2279 = vmatpush1.msra.mxu0 0.0
      %2280 = vmatprep.subr.mxu0 0.0
      %2281 = vmatpush1.msra.mxu0 0.0
      %2282 = vmatprep.subr.mxu0 0.0
      %2283 = vmatpush1.msra.mxu0 0.0
      %2284 = vmatprep.subr.mxu0 0.0
      %2285 = vmatpush1.msra.mxu0 0.0
      %2286 = vmatprep.subr.mxu0 0.0
      %2287 = vmatpush1.msra.mxu0 0.0
      %2288 = vmatprep.subr.mxu0 0.0
      %2289 = vmatpush1.msra.mxu0 0.0
      %2290 = vmatprep.subr.mxu0 0.0
      %2291 = vmatpush1.msra.mxu0 0.0
      %2292 = vmatprep.subr.mxu0 0.0
      %2293 = vmatpush1.msra.mxu0 0.0
      %2294 = vmatprep.subr.mxu0 0.0
      %2295 = vmatpush1.msra.mxu0 0.0
      %2296 = vmatprep.subr.mxu0 0.0
      %2297 = vmatpush1.msra.mxu0 %v2264
      %2298 = vmatprep.subr.mxu0 0.0
      %2299 = vmatpush2.msra.mxu0 0.0
      %2300 = vmatprep.subr.mxu0 0.0
      %2301 = vmatpush2.msra.mxu0 0.0
      %2302 = vmatprep.subr.mxu0 0.0
      %2303 = vmatpush2.msra.mxu0 0.0
      %2304 = vmatprep.subr.mxu0 0.0
      %2305 = vmatpush2.msra.mxu0 0.0
      %2306 = vmatprep.subr.mxu0 0.0
      %2307 = vmatpush2.msra.mxu0 0.0
      %2308 = vmatprep.subr.mxu0 0.0
      %2309 = vmatpush2.msra.mxu0 0.0
      %2310 = vmatprep.subr.mxu0 0.0
      %2311 = vmatpush2.msra.mxu0 0.0
      %2312 = vmatprep.subr.mxu0 0.0
      %2313 = vmatpush2.msra.mxu0 0.0
      %2314 = vmatprep.subr.mxu0 0.0
      %2315 = vmatpush2.msra.mxu0 0.0
      %2316 = vmatprep.subr.mxu0 0.0
      %2317 = vmatpush2.msra.mxu0 0.0
      %2318 = vmatprep.subr.mxu0 0.0
      %2319 = vmatpush2.msra.mxu0 0.0
      %2320 = vmatprep.subr.mxu0 0.0
      %2321 = vmatpush2.msra.mxu0 0.0
      %2322 = vmatprep.subr.mxu0 0.0
      %2323 = vmatpush2.msra.mxu0 0.0
      %2324 = vmatprep.subr.mxu0 0.0
      %2325 = vmatpush2.msra.mxu0 0.0
      %2326 = vmatprep.subr.mxu0 0.0
      %2327 = vmatpush2.msra.mxu0 0.0
      %2328 = vmatprep.subr.mxu0 0.0
      %2329 = vmatpush2.msra.mxu0 0.0
      %2330 = vmatprep.mubr.f32.mxu0 0.0
      %2331 = vmatmul.mubr.f32.gmra.mxu0 %v2168
      %v2332 = vpop.f32.mrf.mxu0
      %v2333 = vadd.f32 0.0, %v2332
      %v2334 = vpop.f32.mrf.mxu0
      %2335 = vmatprep.mubr.f32.mxu0 0.0
      %2336 = vmatmul.mubr.f32.gmra.mxu0 %v2171
      %v2337 = vpop.f32.mrf.mxu0
      %v2338 = vadd.f32 0.0, %v2337
      %v2339 = vpop.f32.mrf.mxu0
      %2340 = vmatprep.mubr.f32.mxu0 0.0
      %2341 = vmatmul.mubr.f32.gmra.mxu0 %v2174
      %v2342 = vpop.f32.mrf.mxu0
      %v2343 = vadd.f32 0.0, %v2342
      %v2344 = vpop.f32.mrf.mxu0
      %2345 = vmatprep.mubr.f32.mxu0 0.0
      %2346 = vmatmul.mubr.f32.gmra.mxu0 %v2177
      %v2347 = vpop.f32.mrf.mxu0
      %v2348 = vadd.f32 0.0, %v2347
      %v2349 = vpop.f32.mrf.mxu0
      %2350 = vmatprep.mubr.f32.mxu0 0.0
      %2351 = vmatmul.mubr.f32.gmra.mxu0 %v2180
      %v2352 = vpop.f32.mrf.mxu0
      %v2353 = vadd.f32 0.0, %v2352
      %v2354 = vpop.f32.mrf.mxu0
      %2355 = vmatprep.mubr.f32.mxu0 0.0
      %2356 = vmatmul.mubr.f32.gmra.mxu0 %v2183
      %v2357 = vpop.f32.mrf.mxu0
      %v2358 = vadd.f32 0.0, %v2357
      %v2359 = vpop.f32.mrf.mxu0
      %2360 = vmatprep.mubr.f32.mxu0 0.0
      %2361 = vmatmul.mubr.f32.gmra.mxu0 %v2186
      %v2362 = vpop.f32.mrf.mxu0
      %v2363 = vadd.f32 0.0, %v2362
      %v2364 = vpop.f32.mrf.mxu0
      %2365 = vmatprep.mubr.f32.mxu0 0.0
      %2366 = vmatmul.mubr.f32.gmra.mxu0 %v2189
      %v2367 = vpop.f32.mrf.mxu0
      %v2368 = vadd.f32 0.0, %v2367
      %v2369 = vpop.f32.mrf.mxu0
      %2370 = vmatprep.mubr.f32.mxu0 0.0
      %2371 = vmatmul.mubr.f32.gmra.mxu0 %v2192
      %v2372 = vpop.f32.mrf.mxu0
      %v2373 = vadd.f32 0.0, %v2372
      %v2374 = vpop.f32.mrf.mxu0
      %2375 = vmatprep.mubr.f32.mxu0 0.0
      %2376 = vmatmul.mubr.f32.gmra.mxu0 %v2195
      %v2377 = vpop.f32.mrf.mxu0
      %v2378 = vadd.f32 0.0, %v2377
      %v2379 = vpop.f32.mrf.mxu0
      %2380 = vmatprep.mubr.f32.mxu0 0.0
      %2381 = vmatmul.mubr.f32.gmra.mxu0 %v2198
      %v2382 = vpop.f32.mrf.mxu0
      %v2383 = vadd.f32 0.0, %v2382
      %v2384 = vpop.f32.mrf.mxu0
      %2385 = vmatprep.mubr.f32.mxu0 0.0
      %2386 = vmatmul.mubr.f32.gmra.mxu0 %v2201
      %v2387 = vpop.f32.mrf.mxu0
      %v2388 = vadd.f32 0.0, %v2387
      %v2389 = vpop.f32.mrf.mxu0
      %2390 = vmatprep.mubr.f32.mxu0 0.0
      %2391 = vmatmul.mubr.f32.gmra.mxu0 %v2204
      %v2392 = vpop.f32.mrf.mxu0
      %v2393 = vadd.f32 0.0, %v2392
      %v2394 = vpop.f32.mrf.mxu0
      %2395 = vmatprep.mubr.f32.mxu0 0.0
      %2396 = vmatmul.mubr.f32.gmra.mxu0 %v2207
      %v2397 = vpop.f32.mrf.mxu0
      %v2398 = vadd.f32 0.0, %v2397
      %v2399 = vpop.f32.mrf.mxu0
      %2400 = vmatprep.mubr.f32.mxu0 0.0
      %2401 = vmatmul.mubr.f32.gmra.mxu0 %v2210
      %v2402 = vpop.f32.mrf.mxu0
      %v2403 = vadd.f32 0.0, %v2402
      %v2404 = vpop.f32.mrf.mxu0
      %2405 = vmatprep.mubr.f32.mxu0 0.0
      %2406 = vmatmul.mubr.f32.gmra.mxu0 %v2213
      %v2407 = vpop.f32.mrf.mxu0
      %v2408 = vadd.f32 0.0, %v2407
      %v2409 = vpop.f32.mrf.mxu0
      %2410 = vmatprep.mubr.f32.mxu0 0.0
      %2411 = vmatmul.mubr.f32.gmra.mxu0 %v2216
      %v2412 = vpop.f32.mrf.mxu0
      %v2413 = vadd.f32 0.0, %v2412
      %v2414 = vpop.f32.mrf.mxu0
      %2415 = vmatprep.mubr.f32.mxu0 0.0
      %2416 = vmatmul.mubr.f32.gmra.mxu0 %v2219
      %v2417 = vpop.f32.mrf.mxu0
      %v2418 = vadd.f32 0.0, %v2417
      %v2419 = vpop.f32.mrf.mxu0
      %2420 = vmatprep.mubr.f32.mxu0 0.0
      %2421 = vmatmul.mubr.f32.gmra.mxu0 %v2222
      %v2422 = vpop.f32.mrf.mxu0
      %v2423 = vadd.f32 0.0, %v2422
      %v2424 = vpop.f32.mrf.mxu0
      %2425 = vmatprep.mubr.f32.mxu0 0.0
      %2426 = vmatmul.mubr.f32.gmra.mxu0 %v2225
      %v2427 = vpop.f32.mrf.mxu0
      %v2428 = vadd.f32 0.0, %v2427
      %v2429 = vpop.f32.mrf.mxu0
      %2430 = vmatprep.mubr.f32.mxu0 0.0
      %2431 = vmatmul.mubr.f32.gmra.mxu0 %v2228
      %v2432 = vpop.f32.mrf.mxu0
      %v2433 = vadd.f32 0.0, %v2432
      %v2434 = vpop.f32.mrf.mxu0
      %2435 = vmatprep.mubr.f32.mxu0 0.0
      %2436 = vmatmul.mubr.f32.gmra.mxu0 %v2231
      %v2437 = vpop.f32.mrf.mxu0
      %v2438 = vadd.f32 0.0, %v2437
      %v2439 = vpop.f32.mrf.mxu0
      %2440 = vmatprep.mubr.f32.mxu0 0.0
      %2441 = vmatmul.mubr.f32.gmra.mxu0 %v2234
      %v2442 = vpop.f32.mrf.mxu0
      %v2443 = vadd.f32 0.0, %v2442
      %v2444 = vpop.f32.mrf.mxu0
      %2445 = vmatprep.mubr.f32.mxu0 0.0
      %2446 = vmatmul.mubr.f32.gmra.mxu0 %v2237
      %v2447 = vpop.f32.mrf.mxu0
      %v2448 = vadd.f32 0.0, %v2447
      %v2449 = vpop.f32.mrf.mxu0
      %2450 = vmatprep.mubr.f32.mxu0 0.0
      %2451 = vmatmul.mubr.f32.gmra.mxu0 %v2240
      %v2452 = vpop.f32.mrf.mxu0
      %v2453 = vadd.f32 0.0, %v2452
      %v2454 = vpop.f32.mrf.mxu0
      %2455 = vmatprep.mubr.f32.mxu0 0.0
      %2456 = vmatmul.mubr.f32.gmra.mxu0 %v2243
      %v2457 = vpop.f32.mrf.mxu0
      %v2458 = vadd.f32 0.0, %v2457
      %v2459 = vpop.f32.mrf.mxu0
      %2460 = vmatprep.mubr.f32.mxu0 0.0
      %2461 = vmatmul.mubr.f32.gmra.mxu0 %v2246
      %v2462 = vpop.f32.mrf.mxu0
      %v2463 = vadd.f32 0.0, %v2462
      %v2464 = vpop.f32.mrf.mxu0
      %2465 = vmatprep.mubr.f32.mxu0 0.0
      %2466 = vmatmul.mubr.f32.gmra.mxu0 %v2249
      %v2467 = vpop.f32.mrf.mxu0
      %v2468 = vadd.f32 0.0, %v2467
      %v2469 = vpop.f32.mrf.mxu0
      %2470 = vmatprep.mubr.f32.mxu0 0.0
      %2471 = vmatmul.mubr.f32.gmra.mxu0 %v2252
      %v2472 = vpop.f32.mrf.mxu0
      %v2473 = vadd.f32 0.0, %v2472
      %v2474 = vpop.f32.mrf.mxu0
      %2475 = vmatprep.mubr.f32.mxu0 0.0
      %2476 = vmatmul.mubr.f32.gmra.mxu0 %v2255
      %v2477 = vpop.f32.mrf.mxu0
      %v2478 = vadd.f32 0.0, %v2477
      %v2479 = vpop.f32.mrf.mxu0
      %2480 = vmatprep.mubr.f32.mxu0 0.0
      %2481 = vmatmul.mubr.f32.gmra.mxu0 %v2258
      %v2482 = vpop.f32.mrf.mxu0
      %v2483 = vadd.f32 0.0, %v2482
      %v2484 = vpop.f32.mrf.mxu0
      %2485 = vmatprep.mubr.f32.mxu0 0.0
      %2486 = vmatmul.mubr.f32.gmra.mxu0 %v2261
      %v2487 = vpop.f32.mrf.mxu0
      %v2488 = vadd.f32 0.0, %v2487
      %v2489 = vpop.f32.mrf.mxu0
      %2490 = vdwg.mxu0
      %v2491 = vadd.f32 %v2101, %v2333
      %v2492 = vadd.f32 %v2102, %v2338
      %v2493 = vadd.f32 %v2103, %v2343
      %v2494 = vadd.f32 %v2104, %v2348
      %v2495 = vadd.f32 %v2105, %v2353
      %v2496 = vadd.f32 %v2106, %v2358
      %v2497 = vadd.f32 %v2107, %v2363
      %v2498 = vadd.f32 %v2108, %v2368
      %v2499 = vadd.f32 %v2109, %v2373
      %v2500 = vadd.f32 %v2110, %v2378
      %v2501 = vadd.f32 %v2111, %v2383
      %v2502 = vadd.f32 %v2112, %v2388
      %v2503 = vadd.f32 %v2113, %v2393
      %v2504 = vadd.f32 %v2114, %v2398
      %v2505 = vadd.f32 %v2115, %v2403
      %v2506 = vadd.f32 %v2116, %v2408
      %v2507 = vadd.f32 %v2117, %v2413
      %v2508 = vadd.f32 %v2118, %v2418
      %v2509 = vadd.f32 %v2119, %v2423
      %v2510 = vadd.f32 %v2120, %v2428
      %v2511 = vadd.f32 %v2121, %v2433
      %v2512 = vadd.f32 %v2122, %v2438
      %v2513 = vadd.f32 %v2123, %v2443
      %v2514 = vadd.f32 %v2124, %v2448
      %v2515 = vadd.f32 %v2125, %v2453
      %v2516 = vadd.f32 %v2126, %v2458
      %v2517 = vadd.f32 %v2127, %v2463
      %v2518 = vadd.f32 %v2128, %v2468
      %v2519 = vadd.f32 %v2129, %v2473
      %v2520 = vadd.f32 %v2130, %v2478
      %v2521 = vadd.f32 %v2131, %v2483
      %v2522 = vadd.f32 %v2132, %v2488
      %s2523 = sadd.s32 %s240, 2
      %s2524 = smul.u32 %s2523, 24
      %s2525 = scalar_lea.vmem %s219, %s2524
      %v2526 = vld [vmem:[%s2525] sm:$0xff]
      %v2527 = vld [vmem:[%s2525 + $0x8] sm:$0xff]
      %v2528 = vld [vmem:[%s2525 + $0x18] sm:$0xff]
      %v2529 = vld [vmem:[%s2525 + $0x20] sm:$0xff]
      %v2530 = vld [vmem:[%s2525 + $0x30] sm:$0xff]
      %v2531 = vld [vmem:[%s2525 + $0x38] sm:$0xff]
      %v2532 = vld [vmem:[%s2525 + $0x48] sm:$0xff]
      %v2533 = vld [vmem:[%s2525 + $0x50] sm:$0xff]
      %v2534 = vld [vmem:[%s2525 + $0x60] sm:$0xff]
      %v2535 = vld [vmem:[%s2525 + $0x68] sm:$0xff]
      %v2536 = vld [vmem:[%s2525 + $0x78] sm:$0xff]
      %v2537 = vld [vmem:[%s2525 + $0x80] sm:$0xff]
      %v2538 = vld [vmem:[%s2525 + $0x90] sm:$0xff]
      %v2539 = vld [vmem:[%s2525 + $0x98] sm:$0xff]
      %v2540 = vld [vmem:[%s2525 + $0xa8] sm:$0xff]
      %v2541 = vld [vmem:[%s2525 + $0xb0] sm:$0xff]
      %v2542 = vld [vmem:[%s2525 + $0xc0] sm:$0xff]
      %v2543 = vld [vmem:[%s2525 + $0xc8] sm:$0xff]
      %v2544 = vld [vmem:[%s2525 + $0xd8] sm:$0xff]
      %v2545 = vld [vmem:[%s2525 + $0xe0] sm:$0xff]
      %v2546 = vld [vmem:[%s2525 + $0xf0] sm:$0xff]
      %v2547 = vld [vmem:[%s2525 + $0xf8] sm:$0xff]
      %v2548 = vld [vmem:[%s2525 + $0x108] sm:$0xff]
      %v2549 = vld [vmem:[%s2525 + $0x110] sm:$0xff]
      %v2550 = vld [vmem:[%s2525 + $0x120] sm:$0xff]
      %v2551 = vld [vmem:[%s2525 + $0x128] sm:$0xff]
      %v2552 = vld [vmem:[%s2525 + $0x138] sm:$0xff]
      %v2553 = vld [vmem:[%s2525 + $0x140] sm:$0xff]
      %v2554 = vld [vmem:[%s2525 + $0x150] sm:$0xff]
      %v2555 = vld [vmem:[%s2525 + $0x158] sm:$0xff]
      %v2556 = vld [vmem:[%s2525 + $0x168] sm:$0xff]
      %v2557 = vld [vmem:[%s2525 + $0x170] sm:$0xff]
      %s2558 = scalar_lea.vmem %s223, 24
      %v2559 = vld [vmem:[%s2558] sm:$0xf]
      %v2561 = vsel %vm310, %v2526, 0
      %v2564 = vsel %vm310, %v2527, 0
      %v2567 = vsel %vm310, %v2528, 0
      %v2570 = vsel %vm310, %v2529, 0
      %v2573 = vsel %vm310, %v2530, 0
      %v2576 = vsel %vm310, %v2531, 0
      %v2579 = vsel %vm310, %v2532, 0
      %v2582 = vsel %vm310, %v2533, 0
      %v2585 = vsel %vm310, %v2534, 0
      %v2588 = vsel %vm310, %v2535, 0
      %v2591 = vsel %vm310, %v2536, 0
      %v2594 = vsel %vm310, %v2537, 0
      %v2597 = vsel %vm310, %v2538, 0
      %v2600 = vsel %vm310, %v2539, 0
      %v2603 = vsel %vm310, %v2540, 0
      %v2606 = vsel %vm310, %v2541, 0
      %v2609 = vsel %vm310, %v2542, 0
      %v2612 = vsel %vm310, %v2543, 0
      %v2615 = vsel %vm310, %v2544, 0
      %v2618 = vsel %vm310, %v2545, 0
      %v2621 = vsel %vm310, %v2546, 0
      %v2624 = vsel %vm310, %v2547, 0
      %v2627 = vsel %vm310, %v2548, 0
      %v2630 = vsel %vm310, %v2549, 0
      %v2633 = vsel %vm310, %v2550, 0
      %v2636 = vsel %vm310, %v2551, 0
      %v2639 = vsel %vm310, %v2552, 0
      %v2642 = vsel %vm310, %v2553, 0
      %v2645 = vsel %vm310, %v2554, 0
      %v2648 = vsel %vm310, %v2555, 0
      %v2651 = vsel %vm310, %v2556, 0
      %v2654 = vsel %vm310, %v2557, 0
      %v2657 = vsel %vm407, %v2559, 0
      %2659 = vmatprep.subr.mxu0 0.0
      %2660 = vmatpush1.msra.mxu0 0.0
      %2661 = vmatprep.subr.mxu0 0.0
      %2662 = vmatpush1.msra.mxu0 0.0
      %2663 = vmatprep.subr.mxu0 0.0
      %2664 = vmatpush1.msra.mxu0 0.0
      %2665 = vmatprep.subr.mxu0 0.0
      %2666 = vmatpush1.msra.mxu0 0.0
      %2667 = vmatprep.subr.mxu0 0.0
      %2668 = vmatpush1.msra.mxu0 0.0
      %2669 = vmatprep.subr.mxu0 0.0
      %2670 = vmatpush1.msra.mxu0 0.0
      %2671 = vmatprep.subr.mxu0 0.0
      %2672 = vmatpush1.msra.mxu0 0.0
      %2673 = vmatprep.subr.mxu0 0.0
      %2674 = vmatpush1.msra.mxu0 0.0
      %2675 = vmatprep.subr.mxu0 0.0
      %2676 = vmatpush1.msra.mxu0 0.0
      %2677 = vmatprep.subr.mxu0 0.0
      %2678 = vmatpush1.msra.mxu0 0.0
      %2679 = vmatprep.subr.mxu0 0.0
      %2680 = vmatpush1.msra.mxu0 0.0
      %2681 = vmatprep.subr.mxu0 0.0
      %2682 = vmatpush1.msra.mxu0 0.0
      %2683 = vmatprep.subr.mxu0 0.0
      %2684 = vmatpush1.msra.mxu0 0.0
      %2685 = vmatprep.subr.mxu0 0.0
      %2686 = vmatpush1.msra.mxu0 0.0
      %2687 = vmatprep.subr.mxu0 0.0
      %2688 = vmatpush1.msra.mxu0 0.0
      %2689 = vmatprep.subr.mxu0 0.0
      %2690 = vmatpush1.msra.mxu0 %v2657
      %2691 = vmatprep.subr.mxu0 0.0
      %2692 = vmatpush2.msra.mxu0 0.0
      %2693 = vmatprep.subr.mxu0 0.0
      %2694 = vmatpush2.msra.mxu0 0.0
      %2695 = vmatprep.subr.mxu0 0.0
      %2696 = vmatpush2.msra.mxu0 0.0
      %2697 = vmatprep.subr.mxu0 0.0
      %2698 = vmatpush2.msra.mxu0 0.0
      %2699 = vmatprep.subr.mxu0 0.0
      %2700 = vmatpush2.msra.mxu0 0.0
      %2701 = vmatprep.subr.mxu0 0.0
      %2702 = vmatpush2.msra.mxu0 0.0
      %2703 = vmatprep.subr.mxu0 0.0
      %2704 = vmatpush2.msra.mxu0 0.0
      %2705 = vmatprep.subr.mxu0 0.0
      %2706 = vmatpush2.msra.mxu0 0.0
      %2707 = vmatprep.subr.mxu0 0.0
      %2708 = vmatpush2.msra.mxu0 0.0
      %2709 = vmatprep.subr.mxu0 0.0
      %2710 = vmatpush2.msra.mxu0 0.0
      %2711 = vmatprep.subr.mxu0 0.0
      %2712 = vmatpush2.msra.mxu0 0.0
      %2713 = vmatprep.subr.mxu0 0.0
      %2714 = vmatpush2.msra.mxu0 0.0
      %2715 = vmatprep.subr.mxu0 0.0
      %2716 = vmatpush2.msra.mxu0 0.0
      %2717 = vmatprep.subr.mxu0 0.0
      %2718 = vmatpush2.msra.mxu0 0.0
      %2719 = vmatprep.subr.mxu0 0.0
      %2720 = vmatpush2.msra.mxu0 0.0
      %2721 = vmatprep.subr.mxu0 0.0
      %2722 = vmatpush2.msra.mxu0 0.0
      %2723 = vmatprep.mubr.f32.mxu0 0.0
      %2724 = vmatmul.mubr.f32.gmra.mxu0 %v2561
      %v2725 = vpop.f32.mrf.mxu0
      %v2726 = vadd.f32 0.0, %v2725
      %v2727 = vpop.f32.mrf.mxu0
      %2728 = vmatprep.mubr.f32.mxu0 0.0
      %2729 = vmatmul.mubr.f32.gmra.mxu0 %v2564
      %v2730 = vpop.f32.mrf.mxu0
      %v2731 = vadd.f32 0.0, %v2730
      %v2732 = vpop.f32.mrf.mxu0
      %2733 = vmatprep.mubr.f32.mxu0 0.0
      %2734 = vmatmul.mubr.f32.gmra.mxu0 %v2567
      %v2735 = vpop.f32.mrf.mxu0
      %v2736 = vadd.f32 0.0, %v2735
      %v2737 = vpop.f32.mrf.mxu0
      %2738 = vmatprep.mubr.f32.mxu0 0.0
      %2739 = vmatmul.mubr.f32.gmra.mxu0 %v2570
      %v2740 = vpop.f32.mrf.mxu0
      %v2741 = vadd.f32 0.0, %v2740
      %v2742 = vpop.f32.mrf.mxu0
      %2743 = vmatprep.mubr.f32.mxu0 0.0
      %2744 = vmatmul.mubr.f32.gmra.mxu0 %v2573
      %v2745 = vpop.f32.mrf.mxu0
      %v2746 = vadd.f32 0.0, %v2745
      %v2747 = vpop.f32.mrf.mxu0
      %2748 = vmatprep.mubr.f32.mxu0 0.0
      %2749 = vmatmul.mubr.f32.gmra.mxu0 %v2576
      %v2750 = vpop.f32.mrf.mxu0
      %v2751 = vadd.f32 0.0, %v2750
      %v2752 = vpop.f32.mrf.mxu0
      %2753 = vmatprep.mubr.f32.mxu0 0.0
      %2754 = vmatmul.mubr.f32.gmra.mxu0 %v2579
      %v2755 = vpop.f32.mrf.mxu0
      %v2756 = vadd.f32 0.0, %v2755
      %v2757 = vpop.f32.mrf.mxu0
      %2758 = vmatprep.mubr.f32.mxu0 0.0
      %2759 = vmatmul.mubr.f32.gmra.mxu0 %v2582
      %v2760 = vpop.f32.mrf.mxu0
      %v2761 = vadd.f32 0.0, %v2760
      %v2762 = vpop.f32.mrf.mxu0
      %2763 = vmatprep.mubr.f32.mxu0 0.0
      %2764 = vmatmul.mubr.f32.gmra.mxu0 %v2585
      %v2765 = vpop.f32.mrf.mxu0
      %v2766 = vadd.f32 0.0, %v2765
      %v2767 = vpop.f32.mrf.mxu0
      %2768 = vmatprep.mubr.f32.mxu0 0.0
      %2769 = vmatmul.mubr.f32.gmra.mxu0 %v2588
      %v2770 = vpop.f32.mrf.mxu0
      %v2771 = vadd.f32 0.0, %v2770
      %v2772 = vpop.f32.mrf.mxu0
      %2773 = vmatprep.mubr.f32.mxu0 0.0
      %2774 = vmatmul.mubr.f32.gmra.mxu0 %v2591
      %v2775 = vpop.f32.mrf.mxu0
      %v2776 = vadd.f32 0.0, %v2775
      %v2777 = vpop.f32.mrf.mxu0
      %2778 = vmatprep.mubr.f32.mxu0 0.0
      %2779 = vmatmul.mubr.f32.gmra.mxu0 %v2594
      %v2780 = vpop.f32.mrf.mxu0
      %v2781 = vadd.f32 0.0, %v2780
      %v2782 = vpop.f32.mrf.mxu0
      %2783 = vmatprep.mubr.f32.mxu0 0.0
      %2784 = vmatmul.mubr.f32.gmra.mxu0 %v2597
      %v2785 = vpop.f32.mrf.mxu0
      %v2786 = vadd.f32 0.0, %v2785
      %v2787 = vpop.f32.mrf.mxu0
      %2788 = vmatprep.mubr.f32.mxu0 0.0
      %2789 = vmatmul.mubr.f32.gmra.mxu0 %v2600
      %v2790 = vpop.f32.mrf.mxu0
      %v2791 = vadd.f32 0.0, %v2790
      %v2792 = vpop.f32.mrf.mxu0
      %2793 = vmatprep.mubr.f32.mxu0 0.0
      %2794 = vmatmul.mubr.f32.gmra.mxu0 %v2603
      %v2795 = vpop.f32.mrf.mxu0
      %v2796 = vadd.f32 0.0, %v2795
      %v2797 = vpop.f32.mrf.mxu0
      %2798 = vmatprep.mubr.f32.mxu0 0.0
      %2799 = vmatmul.mubr.f32.gmra.mxu0 %v2606
      %v2800 = vpop.f32.mrf.mxu0
      %v2801 = vadd.f32 0.0, %v2800
      %v2802 = vpop.f32.mrf.mxu0
      %2803 = vmatprep.mubr.f32.mxu0 0.0
      %2804 = vmatmul.mubr.f32.gmra.mxu0 %v2609
      %v2805 = vpop.f32.mrf.mxu0
      %v2806 = vadd.f32 0.0, %v2805
      %v2807 = vpop.f32.mrf.mxu0
      %2808 = vmatprep.mubr.f32.mxu0 0.0
      %2809 = vmatmul.mubr.f32.gmra.mxu0 %v2612
      %v2810 = vpop.f32.mrf.mxu0
      %v2811 = vadd.f32 0.0, %v2810
      %v2812 = vpop.f32.mrf.mxu0
      %2813 = vmatprep.mubr.f32.mxu0 0.0
      %2814 = vmatmul.mubr.f32.gmra.mxu0 %v2615
      %v2815 = vpop.f32.mrf.mxu0
      %v2816 = vadd.f32 0.0, %v2815
      %v2817 = vpop.f32.mrf.mxu0
      %2818 = vmatprep.mubr.f32.mxu0 0.0
      %2819 = vmatmul.mubr.f32.gmra.mxu0 %v2618
      %v2820 = vpop.f32.mrf.mxu0
      %v2821 = vadd.f32 0.0, %v2820
      %v2822 = vpop.f32.mrf.mxu0
      %2823 = vmatprep.mubr.f32.mxu0 0.0
      %2824 = vmatmul.mubr.f32.gmra.mxu0 %v2621
      %v2825 = vpop.f32.mrf.mxu0
      %v2826 = vadd.f32 0.0, %v2825
      %v2827 = vpop.f32.mrf.mxu0
      %2828 = vmatprep.mubr.f32.mxu0 0.0
      %2829 = vmatmul.mubr.f32.gmra.mxu0 %v2624
      %v2830 = vpop.f32.mrf.mxu0
      %v2831 = vadd.f32 0.0, %v2830
      %v2832 = vpop.f32.mrf.mxu0
      %2833 = vmatprep.mubr.f32.mxu0 0.0
      %2834 = vmatmul.mubr.f32.gmra.mxu0 %v2627
      %v2835 = vpop.f32.mrf.mxu0
      %v2836 = vadd.f32 0.0, %v2835
      %v2837 = vpop.f32.mrf.mxu0
      %2838 = vmatprep.mubr.f32.mxu0 0.0
      %2839 = vmatmul.mubr.f32.gmra.mxu0 %v2630
      %v2840 = vpop.f32.mrf.mxu0
      %v2841 = vadd.f32 0.0, %v2840
      %v2842 = vpop.f32.mrf.mxu0
      %2843 = vmatprep.mubr.f32.mxu0 0.0
      %2844 = vmatmul.mubr.f32.gmra.mxu0 %v2633
      %v2845 = vpop.f32.mrf.mxu0
      %v2846 = vadd.f32 0.0, %v2845
      %v2847 = vpop.f32.mrf.mxu0
      %2848 = vmatprep.mubr.f32.mxu0 0.0
      %2849 = vmatmul.mubr.f32.gmra.mxu0 %v2636
      %v2850 = vpop.f32.mrf.mxu0
      %v2851 = vadd.f32 0.0, %v2850
      %v2852 = vpop.f32.mrf.mxu0
      %2853 = vmatprep.mubr.f32.mxu0 0.0
      %2854 = vmatmul.mubr.f32.gmra.mxu0 %v2639
      %v2855 = vpop.f32.mrf.mxu0
      %v2856 = vadd.f32 0.0, %v2855
      %v2857 = vpop.f32.mrf.mxu0
      %2858 = vmatprep.mubr.f32.mxu0 0.0
      %2859 = vmatmul.mubr.f32.gmra.mxu0 %v2642
      %v2860 = vpop.f32.mrf.mxu0
      %v2861 = vadd.f32 0.0, %v2860
      %v2862 = vpop.f32.mrf.mxu0
      %2863 = vmatprep.mubr.f32.mxu0 0.0
      %2864 = vmatmul.mubr.f32.gmra.mxu0 %v2645
      %v2865 = vpop.f32.mrf.mxu0
      %v2866 = vadd.f32 0.0, %v2865
      %v2867 = vpop.f32.mrf.mxu0
      %2868 = vmatprep.mubr.f32.mxu0 0.0
      %2869 = vmatmul.mubr.f32.gmra.mxu0 %v2648
      %v2870 = vpop.f32.mrf.mxu0
      %v2871 = vadd.f32 0.0, %v2870
      %v2872 = vpop.f32.mrf.mxu0
      %2873 = vmatprep.mubr.f32.mxu0 0.0
      %2874 = vmatmul.mubr.f32.gmra.mxu0 %v2651
      %v2875 = vpop.f32.mrf.mxu0
      %v2876 = vadd.f32 0.0, %v2875
      %v2877 = vpop.f32.mrf.mxu0
      %2878 = vmatprep.mubr.f32.mxu0 0.0
      %2879 = vmatmul.mubr.f32.gmra.mxu0 %v2654
      %v2880 = vpop.f32.mrf.mxu0
      %v2881 = vadd.f32 0.0, %v2880
      %v2882 = vpop.f32.mrf.mxu0
      %2883 = vdwg.mxu0
      %v2884 = vadd.f32 %v2491, %v2726
      %v2885 = vadd.f32 %v2492, %v2731
      %v2886 = vadd.f32 %v2493, %v2736
      %v2887 = vadd.f32 %v2494, %v2741
      %v2888 = vadd.f32 %v2495, %v2746
      %v2889 = vadd.f32 %v2496, %v2751
      %v2890 = vadd.f32 %v2497, %v2756
      %v2891 = vadd.f32 %v2498, %v2761
      %v2892 = vadd.f32 %v2499, %v2766
      %v2893 = vadd.f32 %v2500, %v2771
      %v2894 = vadd.f32 %v2501, %v2776
      %v2895 = vadd.f32 %v2502, %v2781
      %v2896 = vadd.f32 %v2503, %v2786
      %v2897 = vadd.f32 %v2504, %v2791
      %v2898 = vadd.f32 %v2505, %v2796
      %v2899 = vadd.f32 %v2506, %v2801
      %v2900 = vadd.f32 %v2507, %v2806
      %v2901 = vadd.f32 %v2508, %v2811
      %v2902 = vadd.f32 %v2509, %v2816
      %v2903 = vadd.f32 %v2510, %v2821
      %v2904 = vadd.f32 %v2511, %v2826
      %v2905 = vadd.f32 %v2512, %v2831
      %v2906 = vadd.f32 %v2513, %v2836
      %v2907 = vadd.f32 %v2514, %v2841
      %v2908 = vadd.f32 %v2515, %v2846
      %v2909 = vadd.f32 %v2516, %v2851
      %v2910 = vadd.f32 %v2517, %v2856
      %v2911 = vadd.f32 %v2518, %v2861
      %v2912 = vadd.f32 %v2519, %v2866
      %v2913 = vadd.f32 %v2520, %v2871
      %v2914 = vadd.f32 %v2521, %v2876
      %v2915 = vadd.f32 %v2522, %v2881
      %v2916 = vld [vmem:[%s2525 + $0x1] sm:$0xff]
      %v2917 = vld [vmem:[%s2525 + $0x9] sm:$0xff]
      %v2918 = vld [vmem:[%s2525 + $0x19] sm:$0xff]
      %v2919 = vld [vmem:[%s2525 + $0x21] sm:$0xff]
      %v2920 = vld [vmem:[%s2525 + $0x31] sm:$0xff]
      %v2921 = vld [vmem:[%s2525 + $0x39] sm:$0xff]
      %v2922 = vld [vmem:[%s2525 + $0x49] sm:$0xff]
      %v2923 = vld [vmem:[%s2525 + $0x51] sm:$0xff]
      %v2924 = vld [vmem:[%s2525 + $0x61] sm:$0xff]
      %v2925 = vld [vmem:[%s2525 + $0x69] sm:$0xff]
      %v2926 = vld [vmem:[%s2525 + $0x79] sm:$0xff]
      %v2927 = vld [vmem:[%s2525 + $0x81] sm:$0xff]
      %v2928 = vld [vmem:[%s2525 + $0x91] sm:$0xff]
      %v2929 = vld [vmem:[%s2525 + $0x99] sm:$0xff]
      %v2930 = vld [vmem:[%s2525 + $0xa9] sm:$0xff]
      %v2931 = vld [vmem:[%s2525 + $0xb1] sm:$0xff]
      %v2932 = vld [vmem:[%s2525 + $0xc1] sm:$0xff]
      %v2933 = vld [vmem:[%s2525 + $0xc9] sm:$0xff]
      %v2934 = vld [vmem:[%s2525 + $0xd9] sm:$0xff]
      %v2935 = vld [vmem:[%s2525 + $0xe1] sm:$0xff]
      %v2936 = vld [vmem:[%s2525 + $0xf1] sm:$0xff]
      %v2937 = vld [vmem:[%s2525 + $0xf9] sm:$0xff]
      %v2938 = vld [vmem:[%s2525 + $0x109] sm:$0xff]
      %v2939 = vld [vmem:[%s2525 + $0x111] sm:$0xff]
      %v2940 = vld [vmem:[%s2525 + $0x121] sm:$0xff]
      %v2941 = vld [vmem:[%s2525 + $0x129] sm:$0xff]
      %v2942 = vld [vmem:[%s2525 + $0x139] sm:$0xff]
      %v2943 = vld [vmem:[%s2525 + $0x141] sm:$0xff]
      %v2944 = vld [vmem:[%s2525 + $0x151] sm:$0xff]
      %v2945 = vld [vmem:[%s2525 + $0x159] sm:$0xff]
      %v2946 = vld [vmem:[%s2525 + $0x169] sm:$0xff]
      %v2947 = vld [vmem:[%s2525 + $0x171] sm:$0xff]
      %s2948 = scalar_lea.vmem %s223, 28
      %v2949 = vld [vmem:[%s2948] sm:$0xf]
      %v2951 = vsel %vm310, %v2916, 0
      %v2954 = vsel %vm310, %v2917, 0
      %v2957 = vsel %vm310, %v2918, 0
      %v2960 = vsel %vm310, %v2919, 0
      %v2963 = vsel %vm310, %v2920, 0
      %v2966 = vsel %vm310, %v2921, 0
      %v2969 = vsel %vm310, %v2922, 0
      %v2972 = vsel %vm310, %v2923, 0
      %v2975 = vsel %vm310, %v2924, 0
      %v2978 = vsel %vm310, %v2925, 0
      %v2981 = vsel %vm310, %v2926, 0
      %v2984 = vsel %vm310, %v2927, 0
      %v2987 = vsel %vm310, %v2928, 0
      %v2990 = vsel %vm310, %v2929, 0
      %v2993 = vsel %vm310, %v2930, 0
      %v2996 = vsel %vm310, %v2931, 0
      %v2999 = vsel %vm310, %v2932, 0
      %v3002 = vsel %vm310, %v2933, 0
      %v3005 = vsel %vm310, %v2934, 0
      %v3008 = vsel %vm310, %v2935, 0
      %v3011 = vsel %vm310, %v2936, 0
      %v3014 = vsel %vm310, %v2937, 0
      %v3017 = vsel %vm310, %v2938, 0
      %v3020 = vsel %vm310, %v2939, 0
      %v3023 = vsel %vm310, %v2940, 0
      %v3026 = vsel %vm310, %v2941, 0
      %v3029 = vsel %vm310, %v2942, 0
      %v3032 = vsel %vm310, %v2943, 0
      %v3035 = vsel %vm310, %v2944, 0
      %v3038 = vsel %vm310, %v2945, 0
      %v3041 = vsel %vm310, %v2946, 0
      %v3044 = vsel %vm310, %v2947, 0
      %v3047 = vsel %vm407, %v2949, 0
      %3049 = vmatprep.subr.mxu0 0.0
      %3050 = vmatpush1.msra.mxu0 0.0
      %3051 = vmatprep.subr.mxu0 0.0
      %3052 = vmatpush1.msra.mxu0 0.0
      %3053 = vmatprep.subr.mxu0 0.0
      %3054 = vmatpush1.msra.mxu0 0.0
      %3055 = vmatprep.subr.mxu0 0.0
      %3056 = vmatpush1.msra.mxu0 0.0
      %3057 = vmatprep.subr.mxu0 0.0
      %3058 = vmatpush1.msra.mxu0 0.0
      %3059 = vmatprep.subr.mxu0 0.0
      %3060 = vmatpush1.msra.mxu0 0.0
      %3061 = vmatprep.subr.mxu0 0.0
      %3062 = vmatpush1.msra.mxu0 0.0
      %3063 = vmatprep.subr.mxu0 0.0
      %3064 = vmatpush1.msra.mxu0 0.0
      %3065 = vmatprep.subr.mxu0 0.0
      %3066 = vmatpush1.msra.mxu0 0.0
      %3067 = vmatprep.subr.mxu0 0.0
      %3068 = vmatpush1.msra.mxu0 0.0
      %3069 = vmatprep.subr.mxu0 0.0
      %3070 = vmatpush1.msra.mxu0 0.0
      %3071 = vmatprep.subr.mxu0 0.0
      %3072 = vmatpush1.msra.mxu0 0.0
      %3073 = vmatprep.subr.mxu0 0.0
      %3074 = vmatpush1.msra.mxu0 0.0
      %3075 = vmatprep.subr.mxu0 0.0
      %3076 = vmatpush1.msra.mxu0 0.0
      %3077 = vmatprep.subr.mxu0 0.0
      %3078 = vmatpush1.msra.mxu0 0.0
      %3079 = vmatprep.subr.mxu0 0.0
      %3080 = vmatpush1.msra.mxu0 %v3047
      %3081 = vmatprep.subr.mxu0 0.0
      %3082 = vmatpush2.msra.mxu0 0.0
      %3083 = vmatprep.subr.mxu0 0.0
      %3084 = vmatpush2.msra.mxu0 0.0
      %3085 = vmatprep.subr.mxu0 0.0
      %3086 = vmatpush2.msra.mxu0 0.0
      %3087 = vmatprep.subr.mxu0 0.0
      %3088 = vmatpush2.msra.mxu0 0.0
      %3089 = vmatprep.subr.mxu0 0.0
      %3090 = vmatpush2.msra.mxu0 0.0
      %3091 = vmatprep.subr.mxu0 0.0
      %3092 = vmatpush2.msra.mxu0 0.0
      %3093 = vmatprep.subr.mxu0 0.0
      %3094 = vmatpush2.msra.mxu0 0.0
      %3095 = vmatprep.subr.mxu0 0.0
      %3096 = vmatpush2.msra.mxu0 0.0
      %3097 = vmatprep.subr.mxu0 0.0
      %3098 = vmatpush2.msra.mxu0 0.0
      %3099 = vmatprep.subr.mxu0 0.0
      %3100 = vmatpush2.msra.mxu0 0.0
      %3101 = vmatprep.subr.mxu0 0.0
      %3102 = vmatpush2.msra.mxu0 0.0
      %3103 = vmatprep.subr.mxu0 0.0
      %3104 = vmatpush2.msra.mxu0 0.0
      %3105 = vmatprep.subr.mxu0 0.0
      %3106 = vmatpush2.msra.mxu0 0.0
      %3107 = vmatprep.subr.mxu0 0.0
      %3108 = vmatpush2.msra.mxu0 0.0
      %3109 = vmatprep.subr.mxu0 0.0
      %3110 = vmatpush2.msra.mxu0 0.0
      %3111 = vmatprep.subr.mxu0 0.0
      %3112 = vmatpush2.msra.mxu0 0.0
      %3113 = vmatprep.mubr.f32.mxu0 0.0
      %3114 = vmatmul.mubr.f32.gmra.mxu0 %v2951
      %v3115 = vpop.f32.mrf.mxu0
      %v3116 = vadd.f32 0.0, %v3115
      %v3117 = vpop.f32.mrf.mxu0
      %3118 = vmatprep.mubr.f32.mxu0 0.0
      %3119 = vmatmul.mubr.f32.gmra.mxu0 %v2954
      %v3120 = vpop.f32.mrf.mxu0
      %v3121 = vadd.f32 0.0, %v3120
      %v3122 = vpop.f32.mrf.mxu0
      %3123 = vmatprep.mubr.f32.mxu0 0.0
      %3124 = vmatmul.mubr.f32.gmra.mxu0 %v2957
      %v3125 = vpop.f32.mrf.mxu0
      %v3126 = vadd.f32 0.0, %v3125
      %v3127 = vpop.f32.mrf.mxu0
      %3128 = vmatprep.mubr.f32.mxu0 0.0
      %3129 = vmatmul.mubr.f32.gmra.mxu0 %v2960
      %v3130 = vpop.f32.mrf.mxu0
      %v3131 = vadd.f32 0.0, %v3130
      %v3132 = vpop.f32.mrf.mxu0
      %3133 = vmatprep.mubr.f32.mxu0 0.0
      %3134 = vmatmul.mubr.f32.gmra.mxu0 %v2963
      %v3135 = vpop.f32.mrf.mxu0
      %v3136 = vadd.f32 0.0, %v3135
      %v3137 = vpop.f32.mrf.mxu0
      %3138 = vmatprep.mubr.f32.mxu0 0.0
      %3139 = vmatmul.mubr.f32.gmra.mxu0 %v2966
      %v3140 = vpop.f32.mrf.mxu0
      %v3141 = vadd.f32 0.0, %v3140
      %v3142 = vpop.f32.mrf.mxu0
      %3143 = vmatprep.mubr.f32.mxu0 0.0
      %3144 = vmatmul.mubr.f32.gmra.mxu0 %v2969
      %v3145 = vpop.f32.mrf.mxu0
      %v3146 = vadd.f32 0.0, %v3145
      %v3147 = vpop.f32.mrf.mxu0
      %3148 = vmatprep.mubr.f32.mxu0 0.0
      %3149 = vmatmul.mubr.f32.gmra.mxu0 %v2972
      %v3150 = vpop.f32.mrf.mxu0
      %v3151 = vadd.f32 0.0, %v3150
      %v3152 = vpop.f32.mrf.mxu0
      %3153 = vmatprep.mubr.f32.mxu0 0.0
      %3154 = vmatmul.mubr.f32.gmra.mxu0 %v2975
      %v3155 = vpop.f32.mrf.mxu0
      %v3156 = vadd.f32 0.0, %v3155
      %v3157 = vpop.f32.mrf.mxu0
      %3158 = vmatprep.mubr.f32.mxu0 0.0
      %3159 = vmatmul.mubr.f32.gmra.mxu0 %v2978
      %v3160 = vpop.f32.mrf.mxu0
      %v3161 = vadd.f32 0.0, %v3160
      %v3162 = vpop.f32.mrf.mxu0
      %3163 = vmatprep.mubr.f32.mxu0 0.0
      %3164 = vmatmul.mubr.f32.gmra.mxu0 %v2981
      %v3165 = vpop.f32.mrf.mxu0
      %v3166 = vadd.f32 0.0, %v3165
      %v3167 = vpop.f32.mrf.mxu0
      %3168 = vmatprep.mubr.f32.mxu0 0.0
      %3169 = vmatmul.mubr.f32.gmra.mxu0 %v2984
      %v3170 = vpop.f32.mrf.mxu0
      %v3171 = vadd.f32 0.0, %v3170
      %v3172 = vpop.f32.mrf.mxu0
      %3173 = vmatprep.mubr.f32.mxu0 0.0
      %3174 = vmatmul.mubr.f32.gmra.mxu0 %v2987
      %v3175 = vpop.f32.mrf.mxu0
      %v3176 = vadd.f32 0.0, %v3175
      %v3177 = vpop.f32.mrf.mxu0
      %3178 = vmatprep.mubr.f32.mxu0 0.0
      %3179 = vmatmul.mubr.f32.gmra.mxu0 %v2990
      %v3180 = vpop.f32.mrf.mxu0
      %v3181 = vadd.f32 0.0, %v3180
      %v3182 = vpop.f32.mrf.mxu0
      %3183 = vmatprep.mubr.f32.mxu0 0.0
      %3184 = vmatmul.mubr.f32.gmra.mxu0 %v2993
      %v3185 = vpop.f32.mrf.mxu0
      %v3186 = vadd.f32 0.0, %v3185
      %v3187 = vpop.f32.mrf.mxu0
      %3188 = vmatprep.mubr.f32.mxu0 0.0
      %3189 = vmatmul.mubr.f32.gmra.mxu0 %v2996
      %v3190 = vpop.f32.mrf.mxu0
      %v3191 = vadd.f32 0.0, %v3190
      %v3192 = vpop.f32.mrf.mxu0
      %3193 = vmatprep.mubr.f32.mxu0 0.0
      %3194 = vmatmul.mubr.f32.gmra.mxu0 %v2999
      %v3195 = vpop.f32.mrf.mxu0
      %v3196 = vadd.f32 0.0, %v3195
      %v3197 = vpop.f32.mrf.mxu0
      %3198 = vmatprep.mubr.f32.mxu0 0.0
      %3199 = vmatmul.mubr.f32.gmra.mxu0 %v3002
      %v3200 = vpop.f32.mrf.mxu0
      %v3201 = vadd.f32 0.0, %v3200
      %v3202 = vpop.f32.mrf.mxu0
      %3203 = vmatprep.mubr.f32.mxu0 0.0
      %3204 = vmatmul.mubr.f32.gmra.mxu0 %v3005
      %v3205 = vpop.f32.mrf.mxu0
      %v3206 = vadd.f32 0.0, %v3205
      %v3207 = vpop.f32.mrf.mxu0
      %3208 = vmatprep.mubr.f32.mxu0 0.0
      %3209 = vmatmul.mubr.f32.gmra.mxu0 %v3008
      %v3210 = vpop.f32.mrf.mxu0
      %v3211 = vadd.f32 0.0, %v3210
      %v3212 = vpop.f32.mrf.mxu0
      %3213 = vmatprep.mubr.f32.mxu0 0.0
      %3214 = vmatmul.mubr.f32.gmra.mxu0 %v3011
      %v3215 = vpop.f32.mrf.mxu0
      %v3216 = vadd.f32 0.0, %v3215
      %v3217 = vpop.f32.mrf.mxu0
      %3218 = vmatprep.mubr.f32.mxu0 0.0
      %3219 = vmatmul.mubr.f32.gmra.mxu0 %v3014
      %v3220 = vpop.f32.mrf.mxu0
      %v3221 = vadd.f32 0.0, %v3220
      %v3222 = vpop.f32.mrf.mxu0
      %3223 = vmatprep.mubr.f32.mxu0 0.0
      %3224 = vmatmul.mubr.f32.gmra.mxu0 %v3017
      %v3225 = vpop.f32.mrf.mxu0
      %v3226 = vadd.f32 0.0, %v3225
      %v3227 = vpop.f32.mrf.mxu0
      %3228 = vmatprep.mubr.f32.mxu0 0.0
      %3229 = vmatmul.mubr.f32.gmra.mxu0 %v3020
      %v3230 = vpop.f32.mrf.mxu0
      %v3231 = vadd.f32 0.0, %v3230
      %v3232 = vpop.f32.mrf.mxu0
      %3233 = vmatprep.mubr.f32.mxu0 0.0
      %3234 = vmatmul.mubr.f32.gmra.mxu0 %v3023
      %v3235 = vpop.f32.mrf.mxu0
      %v3236 = vadd.f32 0.0, %v3235
      %v3237 = vpop.f32.mrf.mxu0
      %3238 = vmatprep.mubr.f32.mxu0 0.0
      %3239 = vmatmul.mubr.f32.gmra.mxu0 %v3026
      %v3240 = vpop.f32.mrf.mxu0
      %v3241 = vadd.f32 0.0, %v3240
      %v3242 = vpop.f32.mrf.mxu0
      %3243 = vmatprep.mubr.f32.mxu0 0.0
      %3244 = vmatmul.mubr.f32.gmra.mxu0 %v3029
      %v3245 = vpop.f32.mrf.mxu0
      %v3246 = vadd.f32 0.0, %v3245
      %v3247 = vpop.f32.mrf.mxu0
      %3248 = vmatprep.mubr.f32.mxu0 0.0
      %3249 = vmatmul.mubr.f32.gmra.mxu0 %v3032
      %v3250 = vpop.f32.mrf.mxu0
      %v3251 = vadd.f32 0.0, %v3250
      %v3252 = vpop.f32.mrf.mxu0
      %3253 = vmatprep.mubr.f32.mxu0 0.0
      %3254 = vmatmul.mubr.f32.gmra.mxu0 %v3035
      %v3255 = vpop.f32.mrf.mxu0
      %v3256 = vadd.f32 0.0, %v3255
      %v3257 = vpop.f32.mrf.mxu0
      %3258 = vmatprep.mubr.f32.mxu0 0.0
      %3259 = vmatmul.mubr.f32.gmra.mxu0 %v3038
      %v3260 = vpop.f32.mrf.mxu0
      %v3261 = vadd.f32 0.0, %v3260
      %v3262 = vpop.f32.mrf.mxu0
      %3263 = vmatprep.mubr.f32.mxu0 0.0
      %3264 = vmatmul.mubr.f32.gmra.mxu0 %v3041
      %v3265 = vpop.f32.mrf.mxu0
      %v3266 = vadd.f32 0.0, %v3265
      %v3267 = vpop.f32.mrf.mxu0
      %3268 = vmatprep.mubr.f32.mxu0 0.0
      %3269 = vmatmul.mubr.f32.gmra.mxu0 %v3044
      %v3270 = vpop.f32.mrf.mxu0
      %v3271 = vadd.f32 0.0, %v3270
      %v3272 = vpop.f32.mrf.mxu0
      %3273 = vdwg.mxu0
      %v3274 = vadd.f32 %v2884, %v3116
      %v3275 = vadd.f32 %v2885, %v3121
      %v3276 = vadd.f32 %v2886, %v3126
      %v3277 = vadd.f32 %v2887, %v3131
      %v3278 = vadd.f32 %v2888, %v3136
      %v3279 = vadd.f32 %v2889, %v3141
      %v3280 = vadd.f32 %v2890, %v3146
      %v3281 = vadd.f32 %v2891, %v3151
      %v3282 = vadd.f32 %v2892, %v3156
      %v3283 = vadd.f32 %v2893, %v3161
      %v3284 = vadd.f32 %v2894, %v3166
      %v3285 = vadd.f32 %v2895, %v3171
      %v3286 = vadd.f32 %v2896, %v3176
      %v3287 = vadd.f32 %v2897, %v3181
      %v3288 = vadd.f32 %v2898, %v3186
      %v3289 = vadd.f32 %v2899, %v3191
      %v3290 = vadd.f32 %v2900, %v3196
      %v3291 = vadd.f32 %v2901, %v3201
      %v3292 = vadd.f32 %v2902, %v3206
      %v3293 = vadd.f32 %v2903, %v3211
      %v3294 = vadd.f32 %v2904, %v3216
      %v3295 = vadd.f32 %v2905, %v3221
      %v3296 = vadd.f32 %v2906, %v3226
      %v3297 = vadd.f32 %v2907, %v3231
      %v3298 = vadd.f32 %v2908, %v3236
      %v3299 = vadd.f32 %v2909, %v3241
      %v3300 = vadd.f32 %v2910, %v3246
      %v3301 = vadd.f32 %v2911, %v3251
      %v3302 = vadd.f32 %v2912, %v3256
      %v3303 = vadd.f32 %v2913, %v3261
      %v3304 = vadd.f32 %v2914, %v3266
      %v3305 = vadd.f32 %v2915, %v3271
      %v3306 = vld [vmem:[%s2525 + $0x2] sm:$0xff]
      %v3307 = vld [vmem:[%s2525 + $0xa] sm:$0xff]
      %v3308 = vld [vmem:[%s2525 + $0x1a] sm:$0xff]
      %v3309 = vld [vmem:[%s2525 + $0x22] sm:$0xff]
      %v3310 = vld [vmem:[%s2525 + $0x32] sm:$0xff]
      %v3311 = vld [vmem:[%s2525 + $0x3a] sm:$0xff]
      %v3312 = vld [vmem:[%s2525 + $0x4a] sm:$0xff]
      %v3313 = vld [vmem:[%s2525 + $0x52] sm:$0xff]
      %v3314 = vld [vmem:[%s2525 + $0x62] sm:$0xff]
      %v3315 = vld [vmem:[%s2525 + $0x6a] sm:$0xff]
      %v3316 = vld [vmem:[%s2525 + $0x7a] sm:$0xff]
      %v3317 = vld [vmem:[%s2525 + $0x82] sm:$0xff]
      %v3318 = vld [vmem:[%s2525 + $0x92] sm:$0xff]
      %v3319 = vld [vmem:[%s2525 + $0x9a] sm:$0xff]
      %v3320 = vld [vmem:[%s2525 + $0xaa] sm:$0xff]
      %v3321 = vld [vmem:[%s2525 + $0xb2] sm:$0xff]
      %v3322 = vld [vmem:[%s2525 + $0xc2] sm:$0xff]
      %v3323 = vld [vmem:[%s2525 + $0xca] sm:$0xff]
      %v3324 = vld [vmem:[%s2525 + $0xda] sm:$0xff]
      %v3325 = vld [vmem:[%s2525 + $0xe2] sm:$0xff]
      %v3326 = vld [vmem:[%s2525 + $0xf2] sm:$0xff]
      %v3327 = vld [vmem:[%s2525 + $0xfa] sm:$0xff]
      %v3328 = vld [vmem:[%s2525 + $0x10a] sm:$0xff]
      %v3329 = vld [vmem:[%s2525 + $0x112] sm:$0xff]
      %v3330 = vld [vmem:[%s2525 + $0x122] sm:$0xff]
      %v3331 = vld [vmem:[%s2525 + $0x12a] sm:$0xff]
      %v3332 = vld [vmem:[%s2525 + $0x13a] sm:$0xff]
      %v3333 = vld [vmem:[%s2525 + $0x142] sm:$0xff]
      %v3334 = vld [vmem:[%s2525 + $0x152] sm:$0xff]
      %v3335 = vld [vmem:[%s2525 + $0x15a] sm:$0xff]
      %v3336 = vld [vmem:[%s2525 + $0x16a] sm:$0xff]
      %v3337 = vld [vmem:[%s2525 + $0x172] sm:$0xff]
      %s3338 = scalar_lea.vmem %s223, 32
      %v3339 = vld [vmem:[%s3338] sm:$0xf]
      %v3341 = vsel %vm310, %v3306, 0
      %v3344 = vsel %vm310, %v3307, 0
      %v3347 = vsel %vm310, %v3308, 0
      %v3350 = vsel %vm310, %v3309, 0
      %v3353 = vsel %vm310, %v3310, 0
      %v3356 = vsel %vm310, %v3311, 0
      %v3359 = vsel %vm310, %v3312, 0
      %v3362 = vsel %vm310, %v3313, 0
      %v3365 = vsel %vm310, %v3314, 0
      %v3368 = vsel %vm310, %v3315, 0
      %v3371 = vsel %vm310, %v3316, 0
      %v3374 = vsel %vm310, %v3317, 0
      %v3377 = vsel %vm310, %v3318, 0
      %v3380 = vsel %vm310, %v3319, 0
      %v3383 = vsel %vm310, %v3320, 0
      %v3386 = vsel %vm310, %v3321, 0
      %v3389 = vsel %vm310, %v3322, 0
      %v3392 = vsel %vm310, %v3323, 0
      %v3395 = vsel %vm310, %v3324, 0
      %v3398 = vsel %vm310, %v3325, 0
      %v3401 = vsel %vm310, %v3326, 0
      %v3404 = vsel %vm310, %v3327, 0
      %v3407 = vsel %vm310, %v3328, 0
      %v3410 = vsel %vm310, %v3329, 0
      %v3413 = vsel %vm310, %v3330, 0
      %v3416 = vsel %vm310, %v3331, 0
      %v3419 = vsel %vm310, %v3332, 0
      %v3422 = vsel %vm310, %v3333, 0
      %v3425 = vsel %vm310, %v3334, 0
      %v3428 = vsel %vm310, %v3335, 0
      %v3431 = vsel %vm310, %v3336, 0
      %v3434 = vsel %vm310, %v3337, 0
      %v3437 = vsel %vm407, %v3339, 0
      %3439 = vmatprep.subr.mxu0 0.0
      %3440 = vmatpush1.msra.mxu0 0.0
      %3441 = vmatprep.subr.mxu0 0.0
      %3442 = vmatpush1.msra.mxu0 0.0
      %3443 = vmatprep.subr.mxu0 0.0
      %3444 = vmatpush1.msra.mxu0 0.0
      %3445 = vmatprep.subr.mxu0 0.0
      %3446 = vmatpush1.msra.mxu0 0.0
      %3447 = vmatprep.subr.mxu0 0.0
      %3448 = vmatpush1.msra.mxu0 0.0
      %3449 = vmatprep.subr.mxu0 0.0
      %3450 = vmatpush1.msra.mxu0 0.0
      %3451 = vmatprep.subr.mxu0 0.0
      %3452 = vmatpush1.msra.mxu0 0.0
      %3453 = vmatprep.subr.mxu0 0.0
      %3454 = vmatpush1.msra.mxu0 0.0
      %3455 = vmatprep.subr.mxu0 0.0
      %3456 = vmatpush1.msra.mxu0 0.0
      %3457 = vmatprep.subr.mxu0 0.0
      %3458 = vmatpush1.msra.mxu0 0.0
      %3459 = vmatprep.subr.mxu0 0.0
      %3460 = vmatpush1.msra.mxu0 0.0
      %3461 = vmatprep.subr.mxu0 0.0
      %3462 = vmatpush1.msra.mxu0 0.0
      %3463 = vmatprep.subr.mxu0 0.0
      %3464 = vmatpush1.msra.mxu0 0.0
      %3465 = vmatprep.subr.mxu0 0.0
      %3466 = vmatpush1.msra.mxu0 0.0
      %3467 = vmatprep.subr.mxu0 0.0
      %3468 = vmatpush1.msra.mxu0 0.0
      %3469 = vmatprep.subr.mxu0 0.0
      %3470 = vmatpush1.msra.mxu0 %v3437
      %3471 = vmatprep.subr.mxu0 0.0
      %3472 = vmatpush2.msra.mxu0 0.0
      %3473 = vmatprep.subr.mxu0 0.0
      %3474 = vmatpush2.msra.mxu0 0.0
      %3475 = vmatprep.subr.mxu0 0.0
      %3476 = vmatpush2.msra.mxu0 0.0
      %3477 = vmatprep.subr.mxu0 0.0
      %3478 = vmatpush2.msra.mxu0 0.0
      %3479 = vmatprep.subr.mxu0 0.0
      %3480 = vmatpush2.msra.mxu0 0.0
      %3481 = vmatprep.subr.mxu0 0.0
      %3482 = vmatpush2.msra.mxu0 0.0
      %3483 = vmatprep.subr.mxu0 0.0
      %3484 = vmatpush2.msra.mxu0 0.0
      %3485 = vmatprep.subr.mxu0 0.0
      %3486 = vmatpush2.msra.mxu0 0.0
      %3487 = vmatprep.subr.mxu0 0.0
      %3488 = vmatpush2.msra.mxu0 0.0
      %3489 = vmatprep.subr.mxu0 0.0
      %3490 = vmatpush2.msra.mxu0 0.0
      %3491 = vmatprep.subr.mxu0 0.0
      %3492 = vmatpush2.msra.mxu0 0.0
      %3493 = vmatprep.subr.mxu0 0.0
      %3494 = vmatpush2.msra.mxu0 0.0
      %3495 = vmatprep.subr.mxu0 0.0
      %3496 = vmatpush2.msra.mxu0 0.0
      %3497 = vmatprep.subr.mxu0 0.0
      %3498 = vmatpush2.msra.mxu0 0.0
      %3499 = vmatprep.subr.mxu0 0.0
      %3500 = vmatpush2.msra.mxu0 0.0
      %3501 = vmatprep.subr.mxu0 0.0
      %3502 = vmatpush2.msra.mxu0 0.0
      %3503 = vmatprep.mubr.f32.mxu0 0.0
      %3504 = vmatmul.mubr.f32.gmra.mxu0 %v3341
      %v3505 = vpop.f32.mrf.mxu0
      %v3506 = vadd.f32 0.0, %v3505
      %v3507 = vpop.f32.mrf.mxu0
      %3508 = vmatprep.mubr.f32.mxu0 0.0
      %3509 = vmatmul.mubr.f32.gmra.mxu0 %v3344
      %v3510 = vpop.f32.mrf.mxu0
      %v3511 = vadd.f32 0.0, %v3510
      %v3512 = vpop.f32.mrf.mxu0
      %3513 = vmatprep.mubr.f32.mxu0 0.0
      %3514 = vmatmul.mubr.f32.gmra.mxu0 %v3347
      %v3515 = vpop.f32.mrf.mxu0
      %v3516 = vadd.f32 0.0, %v3515
      %v3517 = vpop.f32.mrf.mxu0
      %3518 = vmatprep.mubr.f32.mxu0 0.0
      %3519 = vmatmul.mubr.f32.gmra.mxu0 %v3350
      %v3520 = vpop.f32.mrf.mxu0
      %v3521 = vadd.f32 0.0, %v3520
      %v3522 = vpop.f32.mrf.mxu0
      %3523 = vmatprep.mubr.f32.mxu0 0.0
      %3524 = vmatmul.mubr.f32.gmra.mxu0 %v3353
      %v3525 = vpop.f32.mrf.mxu0
      %v3526 = vadd.f32 0.0, %v3525
      %v3527 = vpop.f32.mrf.mxu0
      %3528 = vmatprep.mubr.f32.mxu0 0.0
      %3529 = vmatmul.mubr.f32.gmra.mxu0 %v3356
      %v3530 = vpop.f32.mrf.mxu0
      %v3531 = vadd.f32 0.0, %v3530
      %v3532 = vpop.f32.mrf.mxu0
      %3533 = vmatprep.mubr.f32.mxu0 0.0
      %3534 = vmatmul.mubr.f32.gmra.mxu0 %v3359
      %v3535 = vpop.f32.mrf.mxu0
      %v3536 = vadd.f32 0.0, %v3535
      %v3537 = vpop.f32.mrf.mxu0
      %3538 = vmatprep.mubr.f32.mxu0 0.0
      %3539 = vmatmul.mubr.f32.gmra.mxu0 %v3362
      %v3540 = vpop.f32.mrf.mxu0
      %v3541 = vadd.f32 0.0, %v3540
      %v3542 = vpop.f32.mrf.mxu0
      %3543 = vmatprep.mubr.f32.mxu0 0.0
      %3544 = vmatmul.mubr.f32.gmra.mxu0 %v3365
      %v3545 = vpop.f32.mrf.mxu0
      %v3546 = vadd.f32 0.0, %v3545
      %v3547 = vpop.f32.mrf.mxu0
      %3548 = vmatprep.mubr.f32.mxu0 0.0
      %3549 = vmatmul.mubr.f32.gmra.mxu0 %v3368
      %v3550 = vpop.f32.mrf.mxu0
      %v3551 = vadd.f32 0.0, %v3550
      %v3552 = vpop.f32.mrf.mxu0
      %3553 = vmatprep.mubr.f32.mxu0 0.0
      %3554 = vmatmul.mubr.f32.gmra.mxu0 %v3371
      %v3555 = vpop.f32.mrf.mxu0
      %v3556 = vadd.f32 0.0, %v3555
      %v3557 = vpop.f32.mrf.mxu0
      %3558 = vmatprep.mubr.f32.mxu0 0.0
      %3559 = vmatmul.mubr.f32.gmra.mxu0 %v3374
      %v3560 = vpop.f32.mrf.mxu0
      %v3561 = vadd.f32 0.0, %v3560
      %v3562 = vpop.f32.mrf.mxu0
      %3563 = vmatprep.mubr.f32.mxu0 0.0
      %3564 = vmatmul.mubr.f32.gmra.mxu0 %v3377
      %v3565 = vpop.f32.mrf.mxu0
      %v3566 = vadd.f32 0.0, %v3565
      %v3567 = vpop.f32.mrf.mxu0
      %3568 = vmatprep.mubr.f32.mxu0 0.0
      %3569 = vmatmul.mubr.f32.gmra.mxu0 %v3380
      %v3570 = vpop.f32.mrf.mxu0
      %v3571 = vadd.f32 0.0, %v3570
      %v3572 = vpop.f32.mrf.mxu0
      %3573 = vmatprep.mubr.f32.mxu0 0.0
      %3574 = vmatmul.mubr.f32.gmra.mxu0 %v3383
      %v3575 = vpop.f32.mrf.mxu0
      %v3576 = vadd.f32 0.0, %v3575
      %v3577 = vpop.f32.mrf.mxu0
      %3578 = vmatprep.mubr.f32.mxu0 0.0
      %3579 = vmatmul.mubr.f32.gmra.mxu0 %v3386
      %v3580 = vpop.f32.mrf.mxu0
      %v3581 = vadd.f32 0.0, %v3580
      %v3582 = vpop.f32.mrf.mxu0
      %3583 = vmatprep.mubr.f32.mxu0 0.0
      %3584 = vmatmul.mubr.f32.gmra.mxu0 %v3389
      %v3585 = vpop.f32.mrf.mxu0
      %v3586 = vadd.f32 0.0, %v3585
      %v3587 = vpop.f32.mrf.mxu0
      %3588 = vmatprep.mubr.f32.mxu0 0.0
      %3589 = vmatmul.mubr.f32.gmra.mxu0 %v3392
      %v3590 = vpop.f32.mrf.mxu0
      %v3591 = vadd.f32 0.0, %v3590
      %v3592 = vpop.f32.mrf.mxu0
      %3593 = vmatprep.mubr.f32.mxu0 0.0
      %3594 = vmatmul.mubr.f32.gmra.mxu0 %v3395
      %v3595 = vpop.f32.mrf.mxu0
      %v3596 = vadd.f32 0.0, %v3595
      %v3597 = vpop.f32.mrf.mxu0
      %3598 = vmatprep.mubr.f32.mxu0 0.0
      %3599 = vmatmul.mubr.f32.gmra.mxu0 %v3398
      %v3600 = vpop.f32.mrf.mxu0
      %v3601 = vadd.f32 0.0, %v3600
      %v3602 = vpop.f32.mrf.mxu0
      %3603 = vmatprep.mubr.f32.mxu0 0.0
      %3604 = vmatmul.mubr.f32.gmra.mxu0 %v3401
      %v3605 = vpop.f32.mrf.mxu0
      %v3606 = vadd.f32 0.0, %v3605
      %v3607 = vpop.f32.mrf.mxu0
      %3608 = vmatprep.mubr.f32.mxu0 0.0
      %3609 = vmatmul.mubr.f32.gmra.mxu0 %v3404
      %v3610 = vpop.f32.mrf.mxu0
      %v3611 = vadd.f32 0.0, %v3610
      %v3612 = vpop.f32.mrf.mxu0
      %3613 = vmatprep.mubr.f32.mxu0 0.0
      %3614 = vmatmul.mubr.f32.gmra.mxu0 %v3407
      %v3615 = vpop.f32.mrf.mxu0
      %v3616 = vadd.f32 0.0, %v3615
      %v3617 = vpop.f32.mrf.mxu0
      %3618 = vmatprep.mubr.f32.mxu0 0.0
      %3619 = vmatmul.mubr.f32.gmra.mxu0 %v3410
      %v3620 = vpop.f32.mrf.mxu0
      %v3621 = vadd.f32 0.0, %v3620
      %v3622 = vpop.f32.mrf.mxu0
      %3623 = vmatprep.mubr.f32.mxu0 0.0
      %3624 = vmatmul.mubr.f32.gmra.mxu0 %v3413
      %v3625 = vpop.f32.mrf.mxu0
      %v3626 = vadd.f32 0.0, %v3625
      %v3627 = vpop.f32.mrf.mxu0
      %3628 = vmatprep.mubr.f32.mxu0 0.0
      %3629 = vmatmul.mubr.f32.gmra.mxu0 %v3416
      %v3630 = vpop.f32.mrf.mxu0
      %v3631 = vadd.f32 0.0, %v3630
      %v3632 = vpop.f32.mrf.mxu0
      %3633 = vmatprep.mubr.f32.mxu0 0.0
      %3634 = vmatmul.mubr.f32.gmra.mxu0 %v3419
      %v3635 = vpop.f32.mrf.mxu0
      %v3636 = vadd.f32 0.0, %v3635
      %v3637 = vpop.f32.mrf.mxu0
      %3638 = vmatprep.mubr.f32.mxu0 0.0
      %3639 = vmatmul.mubr.f32.gmra.mxu0 %v3422
      %v3640 = vpop.f32.mrf.mxu0
      %v3641 = vadd.f32 0.0, %v3640
      %v3642 = vpop.f32.mrf.mxu0
      %3643 = vmatprep.mubr.f32.mxu0 0.0
      %3644 = vmatmul.mubr.f32.gmra.mxu0 %v3425
      %v3645 = vpop.f32.mrf.mxu0
      %v3646 = vadd.f32 0.0, %v3645
      %v3647 = vpop.f32.mrf.mxu0
      %3648 = vmatprep.mubr.f32.mxu0 0.0
      %3649 = vmatmul.mubr.f32.gmra.mxu0 %v3428
      %v3650 = vpop.f32.mrf.mxu0
      %v3651 = vadd.f32 0.0, %v3650
      %v3652 = vpop.f32.mrf.mxu0
      %3653 = vmatprep.mubr.f32.mxu0 0.0
      %3654 = vmatmul.mubr.f32.gmra.mxu0 %v3431
      %v3655 = vpop.f32.mrf.mxu0
      %v3656 = vadd.f32 0.0, %v3655
      %v3657 = vpop.f32.mrf.mxu0
      %3658 = vmatprep.mubr.f32.mxu0 0.0
      %3659 = vmatmul.mubr.f32.gmra.mxu0 %v3434
      %v3660 = vpop.f32.mrf.mxu0
      %v3661 = vadd.f32 0.0, %v3660
      %v3662 = vpop.f32.mrf.mxu0
      %3663 = vdwg.mxu0
      %v3664 = vadd.f32 %v3274, %v3506
      %v3665 = vadd.f32 %v3275, %v3511
      %v3666 = vadd.f32 %v3276, %v3516
      %v3667 = vadd.f32 %v3277, %v3521
      %v3668 = vadd.f32 %v3278, %v3526
      %v3669 = vadd.f32 %v3279, %v3531
      %v3670 = vadd.f32 %v3280, %v3536
      %v3671 = vadd.f32 %v3281, %v3541
      %v3672 = vadd.f32 %v3282, %v3546
      %v3673 = vadd.f32 %v3283, %v3551
      %v3674 = vadd.f32 %v3284, %v3556
      %v3675 = vadd.f32 %v3285, %v3561
      %v3676 = vadd.f32 %v3286, %v3566
      %v3677 = vadd.f32 %v3287, %v3571
      %v3678 = vadd.f32 %v3288, %v3576
      %v3679 = vadd.f32 %v3289, %v3581
      %v3680 = vadd.f32 %v3290, %v3586
      %v3681 = vadd.f32 %v3291, %v3591
      %v3682 = vadd.f32 %v3292, %v3596
      %v3683 = vadd.f32 %v3293, %v3601
      %v3684 = vadd.f32 %v3294, %v3606
      %v3685 = vadd.f32 %v3295, %v3611
      %v3686 = vadd.f32 %v3296, %v3616
      %v3687 = vadd.f32 %v3297, %v3621
      %v3688 = vadd.f32 %v3298, %v3626
      %v3689 = vadd.f32 %v3299, %v3631
      %v3690 = vadd.f32 %v3300, %v3636
      %v3691 = vadd.f32 %v3301, %v3641
      %v3692 = vadd.f32 %v3302, %v3646
      %v3693 = vadd.f32 %v3303, %v3651
      %v3694 = vadd.f32 %v3304, %v3656
      %v3695 = vadd.f32 %v3305, %v3661
      %v3696 = vld [vmem:[%s226] sm:$0x1]
      %v3698 = vlaneseq
      %v3699 = vshrl.u32 %v3698, 7
      %v3700 = vsub.s32 0, %v3699
      %v3701 = vrot.slane %v3696, %v3700
      %v3703 = vadd.f32 %v3664, %v3701
      %v3704 = vadd.f32 %v3665, %v3701
      %v3705 = vadd.f32 %v3666, %v3701
      %v3706 = vadd.f32 %v3667, %v3701
      %v3707 = vadd.f32 %v3668, %v3701
      %v3708 = vadd.f32 %v3669, %v3701
      %v3709 = vadd.f32 %v3670, %v3701
      %v3710 = vadd.f32 %v3671, %v3701
      %v3711 = vadd.f32 %v3672, %v3701
      %v3712 = vadd.f32 %v3673, %v3701
      %v3713 = vadd.f32 %v3674, %v3701
      %v3714 = vadd.f32 %v3675, %v3701
      %v3715 = vadd.f32 %v3676, %v3701
      %v3716 = vadd.f32 %v3677, %v3701
      %v3717 = vadd.f32 %v3678, %v3701
      %v3718 = vadd.f32 %v3679, %v3701
      %v3719 = vadd.f32 %v3680, %v3701
      %v3720 = vadd.f32 %v3681, %v3701
      %v3721 = vadd.f32 %v3682, %v3701
      %v3722 = vadd.f32 %v3683, %v3701
      %v3723 = vadd.f32 %v3684, %v3701
      %v3724 = vadd.f32 %v3685, %v3701
      %v3725 = vadd.f32 %v3686, %v3701
      %v3726 = vadd.f32 %v3687, %v3701
      %v3727 = vadd.f32 %v3688, %v3701
      %v3728 = vadd.f32 %v3689, %v3701
      %v3729 = vadd.f32 %v3690, %v3701
      %v3730 = vadd.f32 %v3691, %v3701
      %v3731 = vadd.f32 %v3692, %v3701
      %v3732 = vadd.f32 %v3693, %v3701
      %v3733 = vadd.f32 %v3694, %v3701
      %v3734 = vadd.f32 %v3695, %v3701
      %v3735 = vsub.f32 0.0, %v3703
      %v3736 = vsub.f32 0.0, %v3704
      %v3737 = vsub.f32 0.0, %v3705
      %v3738 = vsub.f32 0.0, %v3706
      %v3739 = vsub.f32 0.0, %v3707
      %v3740 = vsub.f32 0.0, %v3708
      %v3741 = vsub.f32 0.0, %v3709
      %v3742 = vsub.f32 0.0, %v3710
      %v3743 = vsub.f32 0.0, %v3711
      %v3744 = vsub.f32 0.0, %v3712
      %v3745 = vsub.f32 0.0, %v3713
      %v3746 = vsub.f32 0.0, %v3714
      %v3747 = vsub.f32 0.0, %v3715
      %v3748 = vsub.f32 0.0, %v3716
      %v3749 = vsub.f32 0.0, %v3717
      %v3750 = vsub.f32 0.0, %v3718
      %v3751 = vsub.f32 0.0, %v3719
      %v3752 = vsub.f32 0.0, %v3720
      %v3753 = vsub.f32 0.0, %v3721
      %v3754 = vsub.f32 0.0, %v3722
      %v3755 = vsub.f32 0.0, %v3723
      %v3756 = vsub.f32 0.0, %v3724
      %v3757 = vsub.f32 0.0, %v3725
      %v3758 = vsub.f32 0.0, %v3726
      %v3759 = vsub.f32 0.0, %v3727
      %v3760 = vsub.f32 0.0, %v3728
      %v3761 = vsub.f32 0.0, %v3729
      %v3762 = vsub.f32 0.0, %v3730
      %v3763 = vsub.f32 0.0, %v3731
      %v3764 = vsub.f32 0.0, %v3732
      %v3765 = vsub.f32 0.0, %v3733
      %v3766 = vsub.f32 0.0, %v3734
      %v3767 = vmul.f32 %v3735, 1.442695
      %v3768 = vpow.pop %v3767
      %v3769 = vmul.f32 %v3736, 1.442695
      %v3770 = vpow.pop %v3769
      %v3771 = vmul.f32 %v3737, 1.442695
      %v3772 = vpow.pop %v3771
      %v3773 = vmul.f32 %v3738, 1.442695
      %v3774 = vpow.pop %v3773
      %v3775 = vmul.f32 %v3739, 1.442695
      %v3776 = vpow.pop %v3775
      %v3777 = vmul.f32 %v3740, 1.442695
      %v3778 = vpow.pop %v3777
      %v3779 = vmul.f32 %v3741, 1.442695
      %v3780 = vpow.pop %v3779
      %v3781 = vmul.f32 %v3742, 1.442695
      %v3782 = vpow.pop %v3781
      %v3783 = vmul.f32 %v3743, 1.442695
      %v3784 = vpow.pop %v3783
      %v3785 = vmul.f32 %v3744, 1.442695
      %v3786 = vpow.pop %v3785
      %v3787 = vmul.f32 %v3745, 1.442695
      %v3788 = vpow.pop %v3787
      %v3789 = vmul.f32 %v3746, 1.442695
      %v3790 = vpow.pop %v3789
      %v3791 = vmul.f32 %v3747, 1.442695
      %v3792 = vpow.pop %v3791
      %v3793 = vmul.f32 %v3748, 1.442695
      %v3794 = vpow.pop %v3793
      %v3795 = vmul.f32 %v3749, 1.442695
      %v3796 = vpow.pop %v3795
      %v3797 = vmul.f32 %v3750, 1.442695
      %v3798 = vpow.pop %v3797
      %v3799 = vmul.f32 %v3751, 1.442695
      %v3800 = vpow.pop %v3799
      %v3801 = vmul.f32 %v3752, 1.442695
      %v3802 = vpow.pop %v3801
      %v3803 = vmul.f32 %v3753, 1.442695
      %v3804 = vpow.pop %v3803
      %v3805 = vmul.f32 %v3754, 1.442695
      %v3806 = vpow.pop %v3805
      %v3807 = vmul.f32 %v3755, 1.442695
      %v3808 = vpow.pop %v3807
      %v3809 = vmul.f32 %v3756, 1.442695
      %v3810 = vpow.pop %v3809
      %v3811 = vmul.f32 %v3757, 1.442695
      %v3812 = vpow.pop %v3811
      %v3813 = vmul.f32 %v3758, 1.442695
      %v3814 = vpow.pop %v3813
      %v3815 = vmul.f32 %v3759, 1.442695
      %v3816 = vpow.pop %v3815
      %v3817 = vmul.f32 %v3760, 1.442695
      %v3818 = vpow.pop %v3817
      %v3819 = vmul.f32 %v3761, 1.442695
      %v3820 = vpow.pop %v3819
      %v3821 = vmul.f32 %v3762, 1.442695
      %v3822 = vpow.pop %v3821
      %v3823 = vmul.f32 %v3763, 1.442695
      %v3824 = vpow.pop %v3823
      %v3825 = vmul.f32 %v3764, 1.442695
      %v3826 = vpow.pop %v3825
      %v3827 = vmul.f32 %v3765, 1.442695
      %v3828 = vpow.pop %v3827
      %v3829 = vmul.f32 %v3766, 1.442695
      %v3830 = vpow.pop %v3829
      %v3831 = vadd.f32 %v3768, 1.0
      %v3832 = vadd.f32 %v3770, 1.0
      %v3833 = vadd.f32 %v3772, 1.0
      %v3834 = vadd.f32 %v3774, 1.0
      %v3835 = vadd.f32 %v3776, 1.0
      %v3836 = vadd.f32 %v3778, 1.0
      %v3837 = vadd.f32 %v3780, 1.0
      %v3838 = vadd.f32 %v3782, 1.0
      %v3839 = vadd.f32 %v3784, 1.0
      %v3840 = vadd.f32 %v3786, 1.0
      %v3841 = vadd.f32 %v3788, 1.0
      %v3842 = vadd.f32 %v3790, 1.0
      %v3843 = vadd.f32 %v3792, 1.0
      %v3844 = vadd.f32 %v3794, 1.0
      %v3845 = vadd.f32 %v3796, 1.0
      %v3846 = vadd.f32 %v3798, 1.0
      %v3847 = vadd.f32 %v3800, 1.0
      %v3848 = vadd.f32 %v3802, 1.0
      %v3849 = vadd.f32 %v3804, 1.0
      %v3850 = vadd.f32 %v3806, 1.0
      %v3851 = vadd.f32 %v3808, 1.0
      %v3852 = vadd.f32 %v3810, 1.0
      %v3853 = vadd.f32 %v3812, 1.0
      %v3854 = vadd.f32 %v3814, 1.0
      %v3855 = vadd.f32 %v3816, 1.0
      %v3856 = vadd.f32 %v3818, 1.0
      %v3857 = vadd.f32 %v3820, 1.0
      %v3858 = vadd.f32 %v3822, 1.0
      %v3859 = vadd.f32 %v3824, 1.0
      %v3860 = vadd.f32 %v3826, 1.0
      %v3861 = vadd.f32 %v3828, 1.0
      %v3862 = vadd.f32 %v3830, 1.0
      %v3863 = vrcp.pop %v3831
      %v3864 = vmul.f32 1.0, %v3863
      %v3865 = vrcp.pop %v3832
      %v3866 = vmul.f32 1.0, %v3865
      %v3867 = vrcp.pop %v3833
      %v3868 = vmul.f32 1.0, %v3867
      %v3869 = vrcp.pop %v3834
      %v3870 = vmul.f32 1.0, %v3869
      %v3871 = vrcp.pop %v3835
      %v3872 = vmul.f32 1.0, %v3871
      %v3873 = vrcp.pop %v3836
      %v3874 = vmul.f32 1.0, %v3873
      %v3875 = vrcp.pop %v3837
      %v3876 = vmul.f32 1.0, %v3875
      %v3877 = vrcp.pop %v3838
      %v3878 = vmul.f32 1.0, %v3877
      %v3879 = vrcp.pop %v3839
      %v3880 = vmul.f32 1.0, %v3879
      %v3881 = vrcp.pop %v3840
      %v3882 = vmul.f32 1.0, %v3881
      %v3883 = vrcp.pop %v3841
      %v3884 = vmul.f32 1.0, %v3883
      %v3885 = vrcp.pop %v3842
      %v3886 = vmul.f32 1.0, %v3885
      %v3887 = vrcp.pop %v3843
      %v3888 = vmul.f32 1.0, %v3887
      %v3889 = vrcp.pop %v3844
      %v3890 = vmul.f32 1.0, %v3889
      %v3891 = vrcp.pop %v3845
      %v3892 = vmul.f32 1.0, %v3891
      %v3893 = vrcp.pop %v3846
      %v3894 = vmul.f32 1.0, %v3893
      %v3895 = vrcp.pop %v3847
      %v3896 = vmul.f32 1.0, %v3895
      %v3897 = vrcp.pop %v3848
      %v3898 = vmul.f32 1.0, %v3897
      %v3899 = vrcp.pop %v3849
      %v3900 = vmul.f32 1.0, %v3899
      %v3901 = vrcp.pop %v3850
      %v3902 = vmul.f32 1.0, %v3901
      %v3903 = vrcp.pop %v3851
      %v3904 = vmul.f32 1.0, %v3903
      %v3905 = vrcp.pop %v3852
      %v3906 = vmul.f32 1.0, %v3905
      %v3907 = vrcp.pop %v3853
      %v3908 = vmul.f32 1.0, %v3907
      %v3909 = vrcp.pop %v3854
      %v3910 = vmul.f32 1.0, %v3909
      %v3911 = vrcp.pop %v3855
      %v3912 = vmul.f32 1.0, %v3911
      %v3913 = vrcp.pop %v3856
      %v3914 = vmul.f32 1.0, %v3913
      %v3915 = vrcp.pop %v3857
      %v3916 = vmul.f32 1.0, %v3915
      %v3917 = vrcp.pop %v3858
      %v3918 = vmul.f32 1.0, %v3917
      %v3919 = vrcp.pop %v3859
      %v3920 = vmul.f32 1.0, %v3919
      %v3921 = vrcp.pop %v3860
      %v3922 = vmul.f32 1.0, %v3921
      %v3923 = vrcp.pop %v3861
      %v3924 = vmul.f32 1.0, %v3923
      %v3925 = vrcp.pop %v3862
      %v3926 = vmul.f32 1.0, %v3925
      %v3927 = vmul.f32 %v3703, %v3864
      %v3928 = vmul.f32 %v3704, %v3866
      %v3929 = vmul.f32 %v3705, %v3868
      %v3930 = vmul.f32 %v3706, %v3870
      %v3931 = vmul.f32 %v3707, %v3872
      %v3932 = vmul.f32 %v3708, %v3874
      %v3933 = vmul.f32 %v3709, %v3876
      %v3934 = vmul.f32 %v3710, %v3878
      %v3935 = vmul.f32 %v3711, %v3880
      %v3936 = vmul.f32 %v3712, %v3882
      %v3937 = vmul.f32 %v3713, %v3884
      %v3938 = vmul.f32 %v3714, %v3886
      %v3939 = vmul.f32 %v3715, %v3888
      %v3940 = vmul.f32 %v3716, %v3890
      %v3941 = vmul.f32 %v3717, %v3892
      %v3942 = vmul.f32 %v3718, %v3894
      %v3943 = vmul.f32 %v3719, %v3896
      %v3944 = vmul.f32 %v3720, %v3898
      %v3945 = vmul.f32 %v3721, %v3900
      %v3946 = vmul.f32 %v3722, %v3902
      %v3947 = vmul.f32 %v3723, %v3904
      %v3948 = vmul.f32 %v3724, %v3906
      %v3949 = vmul.f32 %v3725, %v3908
      %v3950 = vmul.f32 %v3726, %v3910
      %v3951 = vmul.f32 %v3727, %v3912
      %v3952 = vmul.f32 %v3728, %v3914
      %v3953 = vmul.f32 %v3729, %v3916
      %v3954 = vmul.f32 %v3730, %v3918
      %v3955 = vmul.f32 %v3731, %v3920
      %v3956 = vmul.f32 %v3732, %v3922
      %v3957 = vmul.f32 %v3733, %v3924
      %v3958 = vmul.f32 %v3734, %v3926
      %3959 = vst.msk [vmem:[%s238] sm:$0xff] %vm310, %v3927
      %3960 = vst.msk [vmem:[%s238 + $0x8] sm:$0xff] %vm310, %v3928
      %3961 = vst.msk [vmem:[%s238 + $0x10] sm:$0xff] %vm310, %v3929
      %3962 = vst.msk [vmem:[%s238 + $0x18] sm:$0xff] %vm310, %v3930
      %3963 = vst.msk [vmem:[%s238 + $0x20] sm:$0xff] %vm310, %v3931
      %3964 = vst.msk [vmem:[%s238 + $0x28] sm:$0xff] %vm310, %v3932
      %3965 = vst.msk [vmem:[%s238 + $0x30] sm:$0xff] %vm310, %v3933
      %3966 = vst.msk [vmem:[%s238 + $0x38] sm:$0xff] %vm310, %v3934
      %3967 = vst.msk [vmem:[%s238 + $0x40] sm:$0xff] %vm310, %v3935
      %3968 = vst.msk [vmem:[%s238 + $0x48] sm:$0xff] %vm310, %v3936
      %3969 = vst.msk [vmem:[%s238 + $0x50] sm:$0xff] %vm310, %v3937
      %3970 = vst.msk [vmem:[%s238 + $0x58] sm:$0xff] %vm310, %v3938
      %3971 = vst.msk [vmem:[%s238 + $0x60] sm:$0xff] %vm310, %v3939
      %3972 = vst.msk [vmem:[%s238 + $0x68] sm:$0xff] %vm310, %v3940
      %3973 = vst.msk [vmem:[%s238 + $0x70] sm:$0xff] %vm310, %v3941
      %3974 = vst.msk [vmem:[%s238 + $0x78] sm:$0xff] %vm310, %v3942
      %3975 = vst.msk [vmem:[%s238 + $0x80] sm:$0xff] %vm310, %v3943
      %3976 = vst.msk [vmem:[%s238 + $0x88] sm:$0xff] %vm310, %v3944
      %3977 = vst.msk [vmem:[%s238 + $0x90] sm:$0xff] %vm310, %v3945
      %3978 = vst.msk [vmem:[%s238 + $0x98] sm:$0xff] %vm310, %v3946
      %3979 = vst.msk [vmem:[%s238 + $0xa0] sm:$0xff] %vm310, %v3947
      %3980 = vst.msk [vmem:[%s238 + $0xa8] sm:$0xff] %vm310, %v3948
      %3981 = vst.msk [vmem:[%s238 + $0xb0] sm:$0xff] %vm310, %v3949
      %3982 = vst.msk [vmem:[%s238 + $0xb8] sm:$0xff] %vm310, %v3950
      %3983 = vst.msk [vmem:[%s238 + $0xc0] sm:$0xff] %vm310, %v3951
      %3984 = vst.msk [vmem:[%s238 + $0xc8] sm:$0xff] %vm310, %v3952
      %3985 = vst.msk [vmem:[%s238 + $0xd0] sm:$0xff] %vm310, %v3953
      %3986 = vst.msk [vmem:[%s238 + $0xd8] sm:$0xff] %vm310, %v3954
      %3987 = vst.msk [vmem:[%s238 + $0xe0] sm:$0xff] %vm310, %v3955
      %3988 = vst.msk [vmem:[%s238 + $0xe8] sm:$0xff] %vm310, %v3956
      %3989 = vst.msk [vmem:[%s238 + $0xf0] sm:$0xff] %vm310, %v3957
      %3990 = vst.msk [vmem:[%s238 + $0xf8] sm:$0xff] %vm310, %v3958
      %s3991 = smul.u32 32, %s21
      %p3992 = scmp.lt.s32.totalorder %s19, 1
      %s3993 = scalar_select %p3992, %s19, 1
      %p3994 = scmp.lt.s32.totalorder %s3991, 31
      %s3995 = scalar_select %p3994, %s3991, 31
      %p3996 = scmp.lt.s32.totalorder %s20, 0
      %s3997 = scalar_select %p3996, %s20, 0
      %s3998 = sadd.s32 %s3997, %s3995
      %s3999 = smul.addr %s3993, 32
      %s4000 = sadd.s32 %s3998, %s3999
      %s4001 = smul.addr %s4000, 8
      %s4002 = scalar_lea.vmem %s3, %s4001
      // Predicated region
      $region33: #{tpu_custom_call.1} parent=31 // pred_check
        %p4003 = pneg %p133
      $region34: #{tpu_custom_call.1} parent=31 // pred_check_branch
        %4005 = sbr.rel (%p4003) target = $region36
      $region35: #{tpu_custom_call.1} parent=31 // pred_region
        %s4006 = smul.u32 32, %s21
      $region36: #{tpu_custom_call.1} parent=31 // pred_fallthru
        _
    $region32: #{tpu_custom_call.1} parent=5 // pred_fallthru
      _
    %p4007 = scmp.le.s32.totalorder 2, %s9
    // Predicated region
    $region37: #{tpu_custom_call.1} parent=5 // pred_check
      %p4008 = pneg %p4007
    $region38: #{tpu_custom_call.1} parent=5 // pred_check_branch
      %4010 = sbr.rel (%p4008) target = $region40
    $region39: #{tpu_custom_call.1} parent=5 // pred_region
      %s4011 = ssub.s32 %s9, 2
      // Predicated region
      $region41: #{tpu_custom_call.1} parent=39 // pred_check
        %p4012 = pneg %p139
      $region42: #{tpu_custom_call.1} parent=39 // pred_check_branch
        %4014 = sbr.rel (%p4012) target = $region44
      $region43: #{tpu_custom_call.1} parent=39 // pred_region
        %s4015 = smul.u32 32, %s24
        %p4016 = scmp.lt.s32.totalorder %s22, 1
        %s4017 = scalar_select %p4016, %s22, 1
        %p4018 = scmp.lt.s32.totalorder %s4015, 31
        %s4019 = scalar_select %p4018, %s4015, 31
        %p4020 = scmp.lt.s32.totalorder %s23, 0
        %s4021 = scalar_select %p4020, %s23, 0
        %s4022 = sadd.s32 %s4021, %s4019
        %s4023 = smul.addr %s4017, 32
        %s4024 = sadd.s32 %s4022, %s4023
        %s4025 = smul.addr %s4024, 8
        %s4026 = scalar_lea.vmem %s3, %s4025
      $region44: #{tpu_custom_call.1} parent=39 // pred_fallthru
        _
    $region40: #{tpu_custom_call.1} parent=5 // pred_fallthru
      _
  $region6: #{tpu_custom_call.1} parent=0 // loop_footer
    %s13 = sadd.s32 1, %s9
  $region7: #{tpu_custom_call.1} parent=0 // loop_footer_branch
    %8 = sbr.rel target = $region3
  $region8: #{tpu_custom_call.1} parent=0 // loop_exit
    _

</llo_original>
